<compile_context>
chip_gen: v7x
topology: tpu7x:2x2x1
jax: 0.10.0
libtpu: 0.0.40
codegen_flags: <defaults>
</compile_context>

<pallas_src>
import numpy as np
import jax
import jax.numpy as jnp
from jax import lax
from jax.experimental import pallas as pl
from jax.experimental.pallas import tpu as pltpu

_HASH_PRIMES = (1, 2654435761, 805459861)


def _vmem_limit_bytes():
    """Generation-aware VMEM budget: <= 50% of physical, capped at 32 MiB."""
    cap = 128 * 1024 * 1024
    try:
        cap = int(pltpu.get_tpu_info().vmem_capacity_bytes)
    except Exception:
        pass
    return int(min(cap // 2, 32 * 1024 * 1024))


def _make_grid_kernel(num_dim, n_features, max_params, tp8):
    """Kernel body for one (point-tile, virtual-level) grid step.

    coords_ref : (1, num_dim, tile_n)  f32   points on the lane axis
    table_ref  : (L, n_features, tp8)  bf16  resident bit-packed slab (8 rows/byte)
    out_ref    : (1, n_features, tile_n) f32 lane-dense writeback
    """
    # int32 wrap-around multiply reproduces uint32 hashing bit-for-bit.
    primes_i32 = tuple((p - (1 << 32)) if p >= (1 << 31) else p
                       for p in _HASH_PRIMES[:num_dim])
    hash_mask = max_params - 1
    n_corners = 2 ** num_dim

    def kernel(res_ref, uh_ref, plane_ref, coords_ref, table_ref, out_ref):
        del plane_ref                                  # only used by index_maps
        lvl = pl.program_id(1)
        res = res_ref[lvl]                             # int32 scalar (SMEM)
        res_f = res.astype(jnp.float32)
        use_hash = uh_ref[lvl] != 0                    # precomputed on host

        x = coords_ref[0, :, :]                        # (D, TN), in [0, 1)
        tn = x.shape[1]
        pos = x * (res_f - 1.0)                        # align_corners scaling
        pos0 = jnp.clip(jnp.floor(pos), 0.0, jnp.maximum(res_f - 2.0, 0.0))
        frac = pos - pos0
        grid = pos0.astype(jnp.int32)                  # (D, TN)

        # --- corner-vectorized index / weight math: corners live on sublanes ---
        corner = lax.broadcasted_iota(jnp.int32, (n_corners, 1), 0)   # (C, 1)
        w = jnp.ones((n_corners, tn), jnp.float32)
        idx_dense = jnp.zeros((n_corners, tn), jnp.int32)
        idx_hash = jnp.zeros((n_corners, tn), jnp.int32)
        stride = 1
        for d in range(num_dim):
            bit_d = (corner >> d) & 1                  # (C, 1), static shifts
            g = grid[d:d + 1, :] + bit_d               # (C, TN)
            f = frac[d:d + 1, :]
            w = w * jnp.where(bit_d == 1, f, 1.0 - f)
            idx_dense = idx_dense + g * stride
            stride = stride * res
            idx_hash = idx_hash ^ (g * primes_i32[d])
        # Dense-branch int32 wrap on hash levels is garbage that the where()
        # discards -- do NOT turn this select into a cond that keeps it.
        idx = jnp.where(use_hash, idx_hash & hash_mask, idx_dense)    # (C, TN)

        byte_idx = idx >> 3                            # which packed byte
        bitpos = idx & 7                               # which bit in the byte
        # exact 2**-bitpos via selects of exact powers of two (no variable shifts)
        b0 = (bitpos & 1).astype(jnp.float32)
        b1 = ((bitpos >> 1) & 1).astype(jnp.float32)
        b2 = ((bitpos >> 2) & 1).astype(jnp.float32)
        inv_pow2 = (1.0 - 0.5 * b0) * (1.0 - 0.75 * b1) * (1.0 - 0.9375 * b2)

        row_ids = lax.broadcasted_iota(jnp.int32, (tp8, tn), 0)       # built once
        tbl = table_ref[lvl]                           # (F, tp8) bf16, bytes 0..255
        acc = jnp.zeros((n_features, tn), jnp.float32)
        for c in range(n_corners):                     # 8 (3D) / 4 (2D), unrolled
            # exact {0,1} one-hot over BYTES (T/8 rows), default-precision MXU dot
            oh = jnp.where(row_ids == byte_idx[c:c + 1, :],
                           1.0, 0.0).astype(jnp.bfloat16)             # (tp8, TN)
            byte_f = jnp.dot(tbl, oh,
                             preferred_element_type=jnp.float32)      # (F, TN) exact
            # exact bit extraction: bit = floor(byte * 2^-p) mod 2
            q = jnp.floor(byte_f * inv_pow2[c:c + 1, :])
            bit = q - 2.0 * jnp.floor(q * 0.5)                        # {0, 1}
            acc = acc + w[c:c + 1, :] * (2.0 * bit - 1.0)             # +-1 values
        out_ref[0, :, :] = acc

    return kernel


def _binarize_and_bitpack(level_params, tp8, n_features):
    """STE_binary forward applied ONCE, then 8 sign bits packed per byte value.

    Returns (L, n_features, tp8) bf16 with byte[f, b] = sum_j sign_bit(row 8b+j) << j.
    Byte values 0..255 are exact in bf16; padding bytes are 0 (never selected).
    """
    pow2 = jnp.asarray((2.0 ** np.arange(8)).astype(np.float32))
    levels = []
    for sub in level_params:
        size = sub.shape[0]
        assert size % 8 == 0
        bits = (sub >= 0.0).astype(jnp.float32)                 # (size, F); 0 -> +1 (as torch)
        bits = bits.T.reshape(n_features, size // 8, 8)          # (F, B, 8)
        byte_vals = (bits * pow2).sum(-1)                        # (F, B) in [0, 255]
        byte_vals = jnp.pad(byte_vals, ((0, 0), (0, tp8 - size // 8)))
        levels.append(byte_vals)
    return jnp.stack(levels, axis=0).astype(jnp.bfloat16)        # (L, F, tp8)


def _fuse_encoders(encoders, plane_ids):
    """Stack several same-dim encoders along a virtual level axis (host-side)."""
    num_dim = encoders[0]["num_dim"]
    n_features = encoders[0]["n_features"]
    max_params = encoders[0]["max_params"]
    for e in encoders:
        assert e["num_dim"] == num_dim
        assert e["n_features"] == n_features
        assert e["max_params"] == max_params
    res_list, uh_list, pln_list, level_params, sizes = [], [], [], [], []
    for enc, pid in zip(encoders, plane_ids):
        offs = np.asarray(enc["offsets"], np.int64)
        for l, r in enumerate(np.asarray(enc["resolutions"], np.int64)):
            size = int(offs[l + 1] - offs[l])
            res_list.append(int(r))
            # wide Python ints: no int32 overflow in r**num_dim
            uh_list.append(1 if int(r) ** num_dim > max_params else 0)
            pln_list.append(int(pid))
            level_params.append(enc["params"][int(offs[l]):int(offs[l]) + size, :])
            sizes.append(size)
    tp8 = int(np.ceil(max(sizes) / 8.0 / 8.0) * 8)               # bytes/level, mult of 8
    tables = _binarize_and_bitpack(level_params, tp8, n_features)
    return dict(tables=tables,
                res=np.asarray(res_list, np.int32),
                use_hash=np.asarray(uh_list, np.int32),
                plane=np.asarray(pln_list, np.int32),
                num_dim=num_dim, n_features=n_features, max_params=max_params)


def _fused_grid_forward(coords_planes, tables, res_np, use_hash_np, plane_np, *,
                        num_dim, n_features, max_params, tile_n=512):
    """coords_planes: (P, num_dim, n_pad) f32; tables: (L, F, tp8) bf16.
    Returns (L, F, n_pad) f32 in lane-dense layout."""
    P, D, n_pad = coords_planes.shape
    L, F, tp8 = tables.shape
    assert D == num_dim and F == n_features
    assert tile_n % 128 == 0 and n_pad % tile_n == 0
    n_tiles = n_pad // tile_n

    kernel = _make_grid_kernel(num_dim, n_features, max_params, tp8)
    return pl.pallas_call(
        kernel,
        out_shape=jax.ShapeDtypeStruct((L, F, n_pad), jnp.float32),
        grid_spec=pltpu.PrefetchScalarGridSpec(
            num_scalar_prefetch=3,                    # resolutions, use_hash, plane -> SMEM
            grid=(n_tiles, L),                        # tiles leading -> megacore splits on points
            in_specs=[
                # coordinate plane selected per virtual level via scalar prefetch
                pl.BlockSpec((1, D, tile_n), lambda i, l, res, uh, pln: (pln[l], 0, i)),
                # whole packed table slab kept VMEM-resident (constant index map)
                pl.BlockSpec((L, F, tp8), lambda i, l, res, uh, pln: (0, 0, 0)),
            ],
            out_specs=pl.BlockSpec((1, F, tile_n), lambda i, l, res, uh, pln: (l, 0, i)),
        ),
        compiler_params=pltpu.CompilerParams(
            dimension_semantics=("parallel", "arbitrary"),
            vmem_limit_bytes=_vmem_limit_bytes()),
    )(jnp.asarray(res_np, jnp.int32), jnp.asarray(use_hash_np, jnp.int32),
      jnp.asarray(plane_np, jnp.int32), coords_planes, tables)


def build_encoder(key, num_dim, n_features, resolutions_list, log2_hashmap_size):
    """Replicates GridEncoder.__init__ offsets/params (deterministic init)."""
    max_params = 2 ** log2_hashmap_size
    offsets = []
    offset = 0
    for r in resolutions_list:
        p = min(max_params, int(r) ** num_dim)
        p = int(np.ceil(p / 8) * 8)
        offsets.append(offset)
        offset += p
    offsets.append(offset)
    params = jax.random.uniform(key, (offset, n_features), jnp.float32, -1e-4, 1e-4)
    return dict(params=params,
                offsets=np.array(offsets, np.int64),
                resolutions=np.array(resolutions_list, np.int64),
                num_dim=num_dim, n_features=n_features, max_params=max_params)


def mix_3d2d_forward(x, enc_xyz, enc_xy, enc_xz, enc_yz, *, tile_n=512):
    n = x.shape[0]
    n_pad = (-(-n // tile_n)) * tile_n
    xt = jnp.pad(x.astype(jnp.float32), ((0, n_pad - n), (0, 0))).T      # (3, n_pad)
    xx, yy, zz = xt[0], xt[1], xt[2]

    def run(fused, coords_planes):
        out = _fused_grid_forward(coords_planes, fused["tables"], fused["res"],
                                  fused["use_hash"], fused["plane"],
                                  num_dim=fused["num_dim"],
                                  n_features=fused["n_features"],
                                  max_params=fused["max_params"], tile_n=tile_n)
        L = fused["tables"].shape[0]
        # (L, F, N_pad) -> crop -> (N, L, F) -> (N, L*F)  == torch permute(1,0,2).reshape
        # TODO(synk): downstream MLPs could consume the native lane-dense (L*F, N)
        #             layout and skip this transpose / HBM round-trip.
        return out[:, :, :n].transpose(2, 0, 1).reshape(n, L * fused["n_features"])

    # 3D encoder (one coordinate plane)
    fused_xyz = _fuse_encoders([enc_xyz], [0])
    out_xyz = run(fused_xyz, xt[None])                                    # (1, 3, n_pad)

    # the three 2D encoders fused into ONE pallas_call via plane ids 0/1/2
    fused_2d = _fuse_encoders([enc_xy, enc_xz, enc_yz], [0, 1, 2])
    coords_2d = jnp.stack([jnp.stack([xx, yy]),
                           jnp.stack([xx, zz]),
                           jnp.stack([yy, zz])], axis=0)                  # (3, 2, n_pad)
    out_2d = run(fused_2d, coords_2d)     # == concat([out_xy, out_xz, out_yz], -1)

    return jnp.concatenate([out_xyz, out_2d], axis=-1)


# ---------------- pure-numpy reference (for verification only) ----------------
def _grid_encoder_ref(coords, params, offsets, resolutions, num_dim, n_features, max_params):
    emb = np.where(np.asarray(params) >= 0, 1.0, -1.0).astype(np.float32)
    coords = np.asarray(coords, np.float32)
    n = coords.shape[0]
    outs = []
    for l in range(len(resolutions)):
        res = int(resolutions[l]); off = int(offsets[l])
        pos = coords * np.float32(res - 1)
        pos0 = np.clip(np.floor(pos), 0.0, max(res - 2, 0)).astype(np.float32)
        frac = pos - pos0
        g0 = pos0.astype(np.int64)
        use_hash = res ** num_dim > max_params
        acc = np.zeros((n, n_features), np.float32)
        for corner in range(2 ** num_dim):
            w = np.ones((n, 1), np.float32)
            idx_dense = np.zeros((n,), np.int64)
            idx_hash = np.zeros((n,), np.uint32)
            stride = 1
            for d in range(num_dim):
                bit = (corner >> d) & 1
                g = g0[:, d] + bit
                f = frac[:, d:d + 1]
                w = w * (f if bit else (1.0 - f))
                idx_dense = idx_dense + g * stride
                stride *= res
                idx_hash = idx_hash ^ (g.astype(np.uint32) * np.uint32(_HASH_PRIMES[d]))
            idx_hash = (idx_hash & np.uint32(max_params - 1)).astype(np.int64)
            idx = (idx_hash if use_hash else idx_dense) + off
            acc = acc + w * emb[idx]
        outs.append(acc)
    return np.stack(outs, 0).transpose(1, 0, 2).reshape(n, len(resolutions) * n_features)


if __name__ == "__main__":
    key = jax.random.PRNGKey(0)
    k_x, k_xyz, k_xy, k_xz, k_yz = jax.random.split(key, 5)

    # small, deterministic config (module defaults scaled down); levels include
    # both dense and hashed grids.
    n_features = 2
    enc_xyz = build_encoder(k_xyz, 3, n_features, (4, 8, 16), log2_hashmap_size=10)
    enc_xy = build_encoder(k_xy, 2, n_features, (8, 16), log2_hashmap_size=6)
    enc_xz = build_encoder(k_xz, 2, n_features, (8, 16), log2_hashmap_size=6)
    enc_yz = build_encoder(k_yz, 2, n_features, (8, 16), log2_hashmap_size=6)

    N = 300   # deliberately NOT a multiple of tile_n: exercises tail padding
    x = jax.random.uniform(k_x, (N, 3), jnp.float32, 0.0, 1.0)

    out = mix_3d2d_forward(x, enc_xyz, enc_xy, enc_xz, enc_yz)
    out = jax.block_until_ready(out)

    # verify against the pure-numpy reference
    xn = np.asarray(x)
    xx, yy, zz = xn[:, 0:1], xn[:, 1:2], xn[:, 2:3]
    refs = []
    for enc, c in ((enc_xyz, xn),
                   (enc_xy, np.concatenate([xx, yy], -1)),
                   (enc_xz, np.concatenate([xx, zz], -1)),
                   (enc_yz, np.concatenate([yy, zz], -1))):
        refs.append(_grid_encoder_ref(c, enc["params"], enc["offsets"],
                                      enc["resolutions"], enc["num_dim"],
                                      enc["n_features"], enc["max_params"]))
    ref = np.concatenate(refs, -1)

    expected_dim = 3 * n_features + 3 * (2 * n_features)   # xyz levels + 3x 2D levels
    assert out.shape == (N, expected_dim), out.shape
    np.testing.assert_allclose(np.asarray(out), ref, rtol=1e-5, atol=1e-5)
    print("KERNEL_OK")
</pallas_src>

<mosaic_0001>
module attributes {stable_mosaic.version = 11 : i64} {
  func.func @kernel(%arg0: i32, %arg1: i32, %arg2: memref<3xi32, #tpu.memory_space<smem>>, %arg3: memref<3xi32, #tpu.memory_space<smem>>, %arg4: memref<3xi32, #tpu.memory_space<smem>>, %arg5: memref<1x3x512xf32, #tpu.memory_space<vmem>>, %arg6: memref<3x2x128xbf16, #tpu.memory_space<vmem>>, %arg7: memref<1x2x512xf32, #tpu.memory_space<vmem>>) attributes {dimension_semantics = [#tpu.dimension_semantics<parallel>, #tpu.dimension_semantics<arbitrary>], iteration_bounds = array<i64: 1, 3>, scalar_prefetch = 3 : i64, scratch_operands = 0 : i64, tpu.core_type = #tpu.core_type<tc>, window_params = [{transform_indices = @transform_0, window_bounds = array<i64: 1, 3, 512>}, {pipeline_mode = #tpu.pipeline_mode<synchronous>, transform_indices = @transform_1, window_bounds = array<i64: 3, 2, 128>}, {transform_indices = @transform_2, window_bounds = array<i64: 1, 2, 512>}]} {
    %0 = arith.index_cast %arg1 : i32 to index
    %1 = memref.load %arg2[%0] : memref<3xi32, #tpu.memory_space<smem>>
    %2 = arith.sitofp %1 : i32 to f32
    %3 = arith.index_cast %arg1 : i32 to index
    %4 = memref.load %arg3[%3] : memref<3xi32, #tpu.memory_space<smem>>
    %c0_i32 = arith.constant 0 : i32
    %5 = arith.cmpi ne, %4, %c0_i32 : i32
    %c0 = arith.constant 0 : index
    %c0_0 = arith.constant 0 : index
    %c0_1 = arith.constant 0 : index
    %6 = vector.load %arg5[%c0, %c0_0, %c0_1] : memref<1x3x512xf32, #tpu.memory_space<vmem>>, vector<1x3x512xf32>
    %7 = vector.shape_cast %6 : vector<1x3x512xf32> to vector<3x512xf32>
    %cst = arith.constant 1.000000e+00 : f32
    %8 = arith.subf %2, %cst : f32
    %9 = vector.broadcast %8 : f32 to vector<3x512xf32>
    %10 = arith.mulf %7, %9 : vector<3x512xf32>
    %11 = math.floor %10 : vector<3x512xf32>
    %cst_2 = arith.constant 2.000000e+00 : f32
    %12 = arith.subf %2, %cst_2 : f32
    %cst_3 = arith.constant 0.000000e+00 : f32
    %13 = arith.maximumf %12, %cst_3 : f32
    %cst_4 = arith.constant 0.000000e+00 : f32
    %14 = vector.broadcast %cst_4 : f32 to vector<3x512xf32>
    %15 = arith.maximumf %14, %11 : vector<3x512xf32>
    %16 = vector.broadcast %13 : f32 to vector<3x512xf32>
    %17 = arith.minimumf %16, %15 : vector<3x512xf32>
    %18 = arith.subf %10, %17 : vector<3x512xf32>
    %19 = arith.fptosi %17 : vector<3x512xf32> to vector<3x512xi32>
    %20 = tpu.iota {dimensions = array<i32: 0>} : vector<8x1xi32>
    %cst_5 = arith.constant 1.000000e+00 : f32
    %21 = vector.broadcast %cst_5 : f32 to vector<8x512xf32>
    %c0_i32_6 = arith.constant 0 : i32
    %22 = vector.broadcast %c0_i32_6 : i32 to vector<8x512xi32>
    %c0_i32_7 = arith.constant 0 : i32
    %23 = vector.broadcast %c0_i32_7 : i32 to vector<8x512xi32>
    %c0_i32_8 = arith.constant 0 : i32
    %24 = vector.broadcast %c0_i32_8 : i32 to vector<8x1xi32>
    %25 = arith.shrsi %20, %24 : vector<8x1xi32>
    %c1_i32 = arith.constant 1 : i32
    %26 = vector.broadcast %c1_i32 : i32 to vector<8x1xi32>
    %27 = arith.andi %25, %26 : vector<8x1xi32>
    %28 = vector.extract_strided_slice %19 {offsets = [0, 0], sizes = [1, 512], strides = [1, 1]} : vector<3x512xi32> to vector<1x512xi32>
    %29 = vector.broadcast %28 : vector<1x512xi32> to vector<8x512xi32>
    %30 = vector.broadcast %27 : vector<8x1xi32> to vector<8x512xi32>
    %31 = arith.addi %29, %30 : vector<8x512xi32>
    %32 = vector.extract_strided_slice %18 {offsets = [0, 0], sizes = [1, 512], strides = [1, 1]} : vector<3x512xf32> to vector<1x512xf32>
    %c1_i32_9 = arith.constant 1 : i32
    %33 = vector.broadcast %c1_i32_9 : i32 to vector<8x1xi32>
    %34 = arith.cmpi eq, %27, %33 : vector<8x1xi32>
    %cst_10 = arith.constant 1.000000e+00 : f32
    %35 = vector.broadcast %cst_10 : f32 to vector<1x512xf32>
    %36 = arith.subf %35, %32 : vector<1x512xf32>
    %37 = vector.shape_cast %34 : vector<8x1xi1> to vector<8x1xi1>
    %38 = vector.broadcast %37 : vector<8x1xi1> to vector<8x512xi1>
    %39 = vector.shape_cast %32 : vector<1x512xf32> to vector<1x512xf32>
    %40 = vector.broadcast %39 : vector<1x512xf32> to vector<8x512xf32>
    %41 = vector.shape_cast %36 : vector<1x512xf32> to vector<1x512xf32>
    %42 = vector.broadcast %41 : vector<1x512xf32> to vector<8x512xf32>
    %43 = arith.select %38, %40, %42 : vector<8x512xi1>, vector<8x512xf32>
    %44 = arith.mulf %21, %43 : vector<8x512xf32>
    %c1_i32_11 = arith.constant 1 : i32
    %45 = vector.broadcast %c1_i32_11 : i32 to vector<8x512xi32>
    %46 = arith.muli %31, %45 : vector<8x512xi32>
    %47 = arith.addi %22, %46 : vector<8x512xi32>
    %c1_i32_12 = arith.constant 1 : i32
    %48 = arith.muli %c1_i32_12, %1 : i32
    %c1_i32_13 = arith.constant 1 : i32
    %49 = vector.broadcast %c1_i32_13 : i32 to vector<8x512xi32>
    %50 = arith.muli %31, %49 : vector<8x512xi32>
    %51 = arith.xori %23, %50 : vector<8x512xi32>
    %c1_i32_14 = arith.constant 1 : i32
    %52 = vector.broadcast %c1_i32_14 : i32 to vector<8x1xi32>
    %53 = arith.shrsi %20, %52 : vector<8x1xi32>
    %c1_i32_15 = arith.constant 1 : i32
    %54 = vector.broadcast %c1_i32_15 : i32 to vector<8x1xi32>
    %55 = arith.andi %53, %54 : vector<8x1xi32>
    %56 = vector.extract_strided_slice %19 {offsets = [1, 0], sizes = [1, 512], strides = [1, 1]} : vector<3x512xi32> to vector<1x512xi32>
    %57 = vector.broadcast %56 : vector<1x512xi32> to vector<8x512xi32>
    %58 = vector.broadcast %55 : vector<8x1xi32> to vector<8x512xi32>
    %59 = arith.addi %57, %58 : vector<8x512xi32>
    %60 = vector.extract_strided_slice %18 {offsets = [1, 0], sizes = [1, 512], strides = [1, 1]} : vector<3x512xf32> to vector<1x512xf32>
    %c1_i32_16 = arith.constant 1 : i32
    %61 = vector.broadcast %c1_i32_16 : i32 to vector<8x1xi32>
    %62 = arith.cmpi eq, %55, %61 : vector<8x1xi32>
    %cst_17 = arith.constant 1.000000e+00 : f32
    %63 = vector.broadcast %cst_17 : f32 to vector<1x512xf32>
    %64 = arith.subf %63, %60 : vector<1x512xf32>
    %65 = vector.shape_cast %62 : vector<8x1xi1> to vector<8x1xi1>
    %66 = vector.broadcast %65 : vector<8x1xi1> to vector<8x512xi1>
    %67 = vector.shape_cast %60 : vector<1x512xf32> to vector<1x512xf32>
    %68 = vector.broadcast %67 : vector<1x512xf32> to vector<8x512xf32>
    %69 = vector.shape_cast %64 : vector<1x512xf32> to vector<1x512xf32>
    %70 = vector.broadcast %69 : vector<1x512xf32> to vector<8x512xf32>
    %71 = arith.select %66, %68, %70 : vector<8x512xi1>, vector<8x512xf32>
    %72 = arith.mulf %44, %71 : vector<8x512xf32>
    %73 = vector.broadcast %48 : i32 to vector<8x512xi32>
    %74 = arith.muli %59, %73 : vector<8x512xi32>
    %75 = arith.addi %47, %74 : vector<8x512xi32>
    %76 = arith.muli %48, %1 : i32
    %c-1640531535_i32 = arith.constant -1640531535 : i32
    %77 = vector.broadcast %c-1640531535_i32 : i32 to vector<8x512xi32>
    %78 = arith.muli %59, %77 : vector<8x512xi32>
    %79 = arith.xori %51, %78 : vector<8x512xi32>
    %c2_i32 = arith.constant 2 : i32
    %80 = vector.broadcast %c2_i32 : i32 to vector<8x1xi32>
    %81 = arith.shrsi %20, %80 : vector<8x1xi32>
    %c1_i32_18 = arith.constant 1 : i32
    %82 = vector.broadcast %c1_i32_18 : i32 to vector<8x1xi32>
    %83 = arith.andi %81, %82 : vector<8x1xi32>
    %84 = vector.extract_strided_slice %19 {offsets = [2, 0], sizes = [1, 512], strides = [1, 1]} : vector<3x512xi32> to vector<1x512xi32>
    %85 = vector.broadcast %84 : vector<1x512xi32> to vector<8x512xi32>
    %86 = vector.broadcast %83 : vector<8x1xi32> to vector<8x512xi32>
    %87 = arith.addi %85, %86 : vector<8x512xi32>
    %88 = vector.extract_strided_slice %18 {offsets = [2, 0], sizes = [1, 512], strides = [1, 1]} : vector<3x512xf32> to vector<1x512xf32>
    %c1_i32_19 = arith.constant 1 : i32
    %89 = vector.broadcast %c1_i32_19 : i32 to vector<8x1xi32>
    %90 = arith.cmpi eq, %83, %89 : vector<8x1xi32>
    %cst_20 = arith.constant 1.000000e+00 : f32
    %91 = vector.broadcast %cst_20 : f32 to vector<1x512xf32>
    %92 = arith.subf %91, %88 : vector<1x512xf32>
    %93 = vector.shape_cast %90 : vector<8x1xi1> to vector<8x1xi1>
    %94 = vector.broadcast %93 : vector<8x1xi1> to vector<8x512xi1>
    %95 = vector.shape_cast %88 : vector<1x512xf32> to vector<1x512xf32>
    %96 = vector.broadcast %95 : vector<1x512xf32> to vector<8x512xf32>
    %97 = vector.shape_cast %92 : vector<1x512xf32> to vector<1x512xf32>
    %98 = vector.broadcast %97 : vector<1x512xf32> to vector<8x512xf32>
    %99 = arith.select %94, %96, %98 : vector<8x512xi1>, vector<8x512xf32>
    %100 = arith.mulf %72, %99 : vector<8x512xf32>
    %101 = vector.broadcast %76 : i32 to vector<8x512xi32>
    %102 = arith.muli %87, %101 : vector<8x512xi32>
    %103 = arith.addi %75, %102 : vector<8x512xi32>
    %c805459861_i32 = arith.constant 805459861 : i32
    %104 = vector.broadcast %c805459861_i32 : i32 to vector<8x512xi32>
    %105 = arith.muli %87, %104 : vector<8x512xi32>
    %106 = arith.xori %79, %105 : vector<8x512xi32>
    %c1023_i32 = arith.constant 1023 : i32
    %107 = vector.broadcast %c1023_i32 : i32 to vector<8x512xi32>
    %108 = arith.andi %106, %107 : vector<8x512xi32>
    %109 = arith.select %5, %108, %103 : vector<8x512xi32>
    %c3_i32 = arith.constant 3 : i32
    %110 = vector.broadcast %c3_i32 : i32 to vector<8x512xi32>
    %111 = arith.shrsi %109, %110 : vector<8x512xi32>
    %c7_i32 = arith.constant 7 : i32
    %112 = vector.broadcast %c7_i32 : i32 to vector<8x512xi32>
    %113 = arith.andi %109, %112 : vector<8x512xi32>
    %c1_i32_21 = arith.constant 1 : i32
    %114 = vector.broadcast %c1_i32_21 : i32 to vector<8x512xi32>
    %115 = arith.andi %113, %114 : vector<8x512xi32>
    %116 = arith.sitofp %115 : vector<8x512xi32> to vector<8x512xf32>
    %c1_i32_22 = arith.constant 1 : i32
    %117 = vector.broadcast %c1_i32_22 : i32 to vector<8x512xi32>
    %118 = arith.shrsi %113, %117 : vector<8x512xi32>
    %c1_i32_23 = arith.constant 1 : i32
    %119 = vector.broadcast %c1_i32_23 : i32 to vector<8x512xi32>
    %120 = arith.andi %118, %119 : vector<8x512xi32>
    %121 = arith.sitofp %120 : vector<8x512xi32> to vector<8x512xf32>
    %c2_i32_24 = arith.constant 2 : i32
    %122 = vector.broadcast %c2_i32_24 : i32 to vector<8x512xi32>
    %123 = arith.shrsi %113, %122 : vector<8x512xi32>
    %c1_i32_25 = arith.constant 1 : i32
    %124 = vector.broadcast %c1_i32_25 : i32 to vector<8x512xi32>
    %125 = arith.andi %123, %124 : vector<8x512xi32>
    %126 = arith.sitofp %125 : vector<8x512xi32> to vector<8x512xf32>
    %cst_26 = arith.constant 5.000000e-01 : f32
    %127 = vector.broadcast %cst_26 : f32 to vector<8x512xf32>
    %128 = arith.mulf %127, %116 : vector<8x512xf32>
    %cst_27 = arith.constant 1.000000e+00 : f32
    %129 = vector.broadcast %cst_27 : f32 to vector<8x512xf32>
    %130 = arith.subf %129, %128 : vector<8x512xf32>
    %cst_28 = arith.constant 7.500000e-01 : f32
    %131 = vector.broadcast %cst_28 : f32 to vector<8x512xf32>
    %132 = arith.mulf %131, %121 : vector<8x512xf32>
    %cst_29 = arith.constant 1.000000e+00 : f32
    %133 = vector.broadcast %cst_29 : f32 to vector<8x512xf32>
    %134 = arith.subf %133, %132 : vector<8x512xf32>
    %135 = arith.mulf %130, %134 : vector<8x512xf32>
    %cst_30 = arith.constant 9.375000e-01 : f32
    %136 = vector.broadcast %cst_30 : f32 to vector<8x512xf32>
    %137 = arith.mulf %136, %126 : vector<8x512xf32>
    %cst_31 = arith.constant 1.000000e+00 : f32
    %138 = vector.broadcast %cst_31 : f32 to vector<8x512xf32>
    %139 = arith.subf %138, %137 : vector<8x512xf32>
    %140 = arith.mulf %135, %139 : vector<8x512xf32>
    %141 = tpu.iota {dimensions = array<i32: 0>} : vector<128x512xi32>
    %142 = arith.index_cast %arg1 : i32 to index
    %c0_32 = arith.constant 0 : index
    %c0_33 = arith.constant 0 : index
    %143 = vector.load %arg6[%142, %c0_32, %c0_33] : memref<3x2x128xbf16, #tpu.memory_space<vmem>>, vector<1x2x128xbf16>
    %144 = vector.shape_cast %143 : vector<1x2x128xbf16> to vector<2x128xbf16>
    %cst_34 = arith.constant 0.000000e+00 : f32
    %145 = vector.broadcast %cst_34 : f32 to vector<2x512xf32>
    %146 = vector.extract_strided_slice %111 {offsets = [0, 0], sizes = [1, 512], strides = [1, 1]} : vector<8x512xi32> to vector<1x512xi32>
    %147 = vector.broadcast %146 : vector<1x512xi32> to vector<128x512xi32>
    %148 = arith.cmpi eq, %141, %147 : vector<128x512xi32>
    %cst_35 = arith.constant 1.000000e+00 : f32
    %cst_36 = arith.constant 0.000000e+00 : f32
    %149 = vector.broadcast %cst_35 : f32 to vector<128x512xf32>
    %150 = vector.broadcast %cst_36 : f32 to vector<128x512xf32>
    %151 = arith.select %148, %149, %150 : vector<128x512xi1>, vector<128x512xf32>
    %152 = arith.truncf %151 : vector<128x512xf32> to vector<128x512xbf16>
    %cst_37 = arith.constant dense<0.000000e+00> : vector<2x512xf32>
    %153 = tpu.matmul %144, %152, %cst_37 {dimension_numbers = #tpu.dot_dimension_numbers<[1], [0], [0], [1], [0, 0, 1, 1], [], []>} : vector<2x128xbf16>, vector<128x512xbf16>, vector<2x512xf32> -> vector<2x512xf32>
    %154 = vector.extract_strided_slice %140 {offsets = [0, 0], sizes = [1, 512], strides = [1, 1]} : vector<8x512xf32> to vector<1x512xf32>
    %155 = vector.broadcast %154 : vector<1x512xf32> to vector<2x512xf32>
    %156 = arith.mulf %153, %155 : vector<2x512xf32>
    %157 = math.floor %156 : vector<2x512xf32>
    %cst_38 = arith.constant 5.000000e-01 : f32
    %158 = vector.broadcast %cst_38 : f32 to vector<2x512xf32>
    %159 = arith.mulf %157, %158 : vector<2x512xf32>
    %160 = math.floor %159 : vector<2x512xf32>
    %cst_39 = arith.constant 2.000000e+00 : f32
    %161 = vector.broadcast %cst_39 : f32 to vector<2x512xf32>
    %162 = arith.mulf %161, %160 : vector<2x512xf32>
    %163 = arith.subf %157, %162 : vector<2x512xf32>
    %164 = vector.extract_strided_slice %100 {offsets = [0, 0], sizes = [1, 512], strides = [1, 1]} : vector<8x512xf32> to vector<1x512xf32>
    %cst_40 = arith.constant 2.000000e+00 : f32
    %165 = vector.broadcast %cst_40 : f32 to vector<2x512xf32>
    %166 = arith.mulf %165, %163 : vector<2x512xf32>
    %cst_41 = arith.constant 1.000000e+00 : f32
    %167 = vector.broadcast %cst_41 : f32 to vector<2x512xf32>
    %168 = arith.subf %166, %167 : vector<2x512xf32>
    %169 = vector.broadcast %164 : vector<1x512xf32> to vector<2x512xf32>
    %170 = arith.mulf %169, %168 : vector<2x512xf32>
    %171 = arith.addf %145, %170 : vector<2x512xf32>
    %172 = vector.extract_strided_slice %111 {offsets = [1, 0], sizes = [1, 512], strides = [1, 1]} : vector<8x512xi32> to vector<1x512xi32>
    %173 = vector.broadcast %172 : vector<1x512xi32> to vector<128x512xi32>
    %174 = arith.cmpi eq, %141, %173 : vector<128x512xi32>
    %cst_42 = arith.constant 1.000000e+00 : f32
    %cst_43 = arith.constant 0.000000e+00 : f32
    %175 = vector.broadcast %cst_42 : f32 to vector<128x512xf32>
    %176 = vector.broadcast %cst_43 : f32 to vector<128x512xf32>
    %177 = arith.select %174, %175, %176 : vector<128x512xi1>, vector<128x512xf32>
    %178 = arith.truncf %177 : vector<128x512xf32> to vector<128x512xbf16>
    %cst_44 = arith.constant dense<0.000000e+00> : vector<2x512xf32>
    %179 = tpu.matmul %144, %178, %cst_44 {dimension_numbers = #tpu.dot_dimension_numbers<[1], [0], [0], [1], [0, 0, 1, 1], [], []>} : vector<2x128xbf16>, vector<128x512xbf16>, vector<2x512xf32> -> vector<2x512xf32>
    %180 = vector.extract_strided_slice %140 {offsets = [1, 0], sizes = [1, 512], strides = [1, 1]} : vector<8x512xf32> to vector<1x512xf32>
    %181 = vector.broadcast %180 : vector<1x512xf32> to vector<2x512xf32>
    %182 = arith.mulf %179, %181 : vector<2x512xf32>
    %183 = math.floor %182 : vector<2x512xf32>
    %cst_45 = arith.constant 5.000000e-01 : f32
    %184 = vector.broadcast %cst_45 : f32 to vector<2x512xf32>
    %185 = arith.mulf %183, %184 : vector<2x512xf32>
    %186 = math.floor %185 : vector<2x512xf32>
    %cst_46 = arith.constant 2.000000e+00 : f32
    %187 = vector.broadcast %cst_46 : f32 to vector<2x512xf32>
    %188 = arith.mulf %187, %186 : vector<2x512xf32>
    %189 = arith.subf %183, %188 : vector<2x512xf32>
    %190 = vector.extract_strided_slice %100 {offsets = [1, 0], sizes = [1, 512], strides = [1, 1]} : vector<8x512xf32> to vector<1x512xf32>
    %cst_47 = arith.constant 2.000000e+00 : f32
    %191 = vector.broadcast %cst_47 : f32 to vector<2x512xf32>
    %192 = arith.mulf %191, %189 : vector<2x512xf32>
    %cst_48 = arith.constant 1.000000e+00 : f32
    %193 = vector.broadcast %cst_48 : f32 to vector<2x512xf32>
    %194 = arith.subf %192, %193 : vector<2x512xf32>
    %195 = vector.broadcast %190 : vector<1x512xf32> to vector<2x512xf32>
    %196 = arith.mulf %195, %194 : vector<2x512xf32>
    %197 = arith.addf %171, %196 : vector<2x512xf32>
    %198 = vector.extract_strided_slice %111 {offsets = [2, 0], sizes = [1, 512], strides = [1, 1]} : vector<8x512xi32> to vector<1x512xi32>
    %199 = vector.broadcast %198 : vector<1x512xi32> to vector<128x512xi32>
    %200 = arith.cmpi eq, %141, %199 : vector<128x512xi32>
    %cst_49 = arith.constant 1.000000e+00 : f32
    %cst_50 = arith.constant 0.000000e+00 : f32
    %201 = vector.broadcast %cst_49 : f32 to vector<128x512xf32>
    %202 = vector.broadcast %cst_50 : f32 to vector<128x512xf32>
    %203 = arith.select %200, %201, %202 : vector<128x512xi1>, vector<128x512xf32>
    %204 = arith.truncf %203 : vector<128x512xf32> to vector<128x512xbf16>
    %cst_51 = arith.constant dense<0.000000e+00> : vector<2x512xf32>
    %205 = tpu.matmul %144, %204, %cst_51 {dimension_numbers = #tpu.dot_dimension_numbers<[1], [0], [0], [1], [0, 0, 1, 1], [], []>} : vector<2x128xbf16>, vector<128x512xbf16>, vector<2x512xf32> -> vector<2x512xf32>
    %206 = vector.extract_strided_slice %140 {offsets = [2, 0], sizes = [1, 512], strides = [1, 1]} : vector<8x512xf32> to vector<1x512xf32>
    %207 = vector.broadcast %206 : vector<1x512xf32> to vector<2x512xf32>
    %208 = arith.mulf %205, %207 : vector<2x512xf32>
    %209 = math.floor %208 : vector<2x512xf32>
    %cst_52 = arith.constant 5.000000e-01 : f32
    %210 = vector.broadcast %cst_52 : f32 to vector<2x512xf32>
    %211 = arith.mulf %209, %210 : vector<2x512xf32>
    %212 = math.floor %211 : vector<2x512xf32>
    %cst_53 = arith.constant 2.000000e+00 : f32
    %213 = vector.broadcast %cst_53 : f32 to vector<2x512xf32>
    %214 = arith.mulf %213, %212 : vector<2x512xf32>
    %215 = arith.subf %209, %214 : vector<2x512xf32>
    %216 = vector.extract_strided_slice %100 {offsets = [2, 0], sizes = [1, 512], strides = [1, 1]} : vector<8x512xf32> to vector<1x512xf32>
    %cst_54 = arith.constant 2.000000e+00 : f32
    %217 = vector.broadcast %cst_54 : f32 to vector<2x512xf32>
    %218 = arith.mulf %217, %215 : vector<2x512xf32>
    %cst_55 = arith.constant 1.000000e+00 : f32
    %219 = vector.broadcast %cst_55 : f32 to vector<2x512xf32>
    %220 = arith.subf %218, %219 : vector<2x512xf32>
    %221 = vector.broadcast %216 : vector<1x512xf32> to vector<2x512xf32>
    %222 = arith.mulf %221, %220 : vector<2x512xf32>
    %223 = arith.addf %197, %222 : vector<2x512xf32>
    %224 = vector.extract_strided_slice %111 {offsets = [3, 0], sizes = [1, 512], strides = [1, 1]} : vector<8x512xi32> to vector<1x512xi32>
    %225 = vector.broadcast %224 : vector<1x512xi32> to vector<128x512xi32>
    %226 = arith.cmpi eq, %141, %225 : vector<128x512xi32>
    %cst_56 = arith.constant 1.000000e+00 : f32
    %cst_57 = arith.constant 0.000000e+00 : f32
    %227 = vector.broadcast %cst_56 : f32 to vector<128x512xf32>
    %228 = vector.broadcast %cst_57 : f32 to vector<128x512xf32>
    %229 = arith.select %226, %227, %228 : vector<128x512xi1>, vector<128x512xf32>
    %230 = arith.truncf %229 : vector<128x512xf32> to vector<128x512xbf16>
    %cst_58 = arith.constant dense<0.000000e+00> : vector<2x512xf32>
    %231 = tpu.matmul %144, %230, %cst_58 {dimension_numbers = #tpu.dot_dimension_numbers<[1], [0], [0], [1], [0, 0, 1, 1], [], []>} : vector<2x128xbf16>, vector<128x512xbf16>, vector<2x512xf32> -> vector<2x512xf32>
    %232 = vector.extract_strided_slice %140 {offsets = [3, 0], sizes = [1, 512], strides = [1, 1]} : vector<8x512xf32> to vector<1x512xf32>
    %233 = vector.broadcast %232 : vector<1x512xf32> to vector<2x512xf32>
    %234 = arith.mulf %231, %233 : vector<2x512xf32>
    %235 = math.floor %234 : vector<2x512xf32>
    %cst_59 = arith.constant 5.000000e-01 : f32
    %236 = vector.broadcast %cst_59 : f32 to vector<2x512xf32>
    %237 = arith.mulf %235, %236 : vector<2x512xf32>
    %238 = math.floor %237 : vector<2x512xf32>
    %cst_60 = arith.constant 2.000000e+00 : f32
    %239 = vector.broadcast %cst_60 : f32 to vector<2x512xf32>
    %240 = arith.mulf %239, %238 : vector<2x512xf32>
    %241 = arith.subf %235, %240 : vector<2x512xf32>
    %242 = vector.extract_strided_slice %100 {offsets = [3, 0], sizes = [1, 512], strides = [1, 1]} : vector<8x512xf32> to vector<1x512xf32>
    %cst_61 = arith.constant 2.000000e+00 : f32
    %243 = vector.broadcast %cst_61 : f32 to vector<2x512xf32>
    %244 = arith.mulf %243, %241 : vector<2x512xf32>
    %cst_62 = arith.constant 1.000000e+00 : f32
    %245 = vector.broadcast %cst_62 : f32 to vector<2x512xf32>
    %246 = arith.subf %244, %245 : vector<2x512xf32>
    %247 = vector.broadcast %242 : vector<1x512xf32> to vector<2x512xf32>
    %248 = arith.mulf %247, %246 : vector<2x512xf32>
    %249 = arith.addf %223, %248 : vector<2x512xf32>
    %250 = vector.extract_strided_slice %111 {offsets = [4, 0], sizes = [1, 512], strides = [1, 1]} : vector<8x512xi32> to vector<1x512xi32>
    %251 = vector.broadcast %250 : vector<1x512xi32> to vector<128x512xi32>
    %252 = arith.cmpi eq, %141, %251 : vector<128x512xi32>
    %cst_63 = arith.constant 1.000000e+00 : f32
    %cst_64 = arith.constant 0.000000e+00 : f32
    %253 = vector.broadcast %cst_63 : f32 to vector<128x512xf32>
    %254 = vector.broadcast %cst_64 : f32 to vector<128x512xf32>
    %255 = arith.select %252, %253, %254 : vector<128x512xi1>, vector<128x512xf32>
    %256 = arith.truncf %255 : vector<128x512xf32> to vector<128x512xbf16>
    %cst_65 = arith.constant dense<0.000000e+00> : vector<2x512xf32>
    %257 = tpu.matmul %144, %256, %cst_65 {dimension_numbers = #tpu.dot_dimension_numbers<[1], [0], [0], [1], [0, 0, 1, 1], [], []>} : vector<2x128xbf16>, vector<128x512xbf16>, vector<2x512xf32> -> vector<2x512xf32>
    %258 = vector.extract_strided_slice %140 {offsets = [4, 0], sizes = [1, 512], strides = [1, 1]} : vector<8x512xf32> to vector<1x512xf32>
    %259 = vector.broadcast %258 : vector<1x512xf32> to vector<2x512xf32>
    %260 = arith.mulf %257, %259 : vector<2x512xf32>
    %261 = math.floor %260 : vector<2x512xf32>
    %cst_66 = arith.constant 5.000000e-01 : f32
    %262 = vector.broadcast %cst_66 : f32 to vector<2x512xf32>
    %263 = arith.mulf %261, %262 : vector<2x512xf32>
    %264 = math.floor %263 : vector<2x512xf32>
    %cst_67 = arith.constant 2.000000e+00 : f32
    %265 = vector.broadcast %cst_67 : f32 to vector<2x512xf32>
    %266 = arith.mulf %265, %264 : vector<2x512xf32>
    %267 = arith.subf %261, %266 : vector<2x512xf32>
    %268 = vector.extract_strided_slice %100 {offsets = [4, 0], sizes = [1, 512], strides = [1, 1]} : vector<8x512xf32> to vector<1x512xf32>
    %cst_68 = arith.constant 2.000000e+00 : f32
    %269 = vector.broadcast %cst_68 : f32 to vector<2x512xf32>
    %270 = arith.mulf %269, %267 : vector<2x512xf32>
    %cst_69 = arith.constant 1.000000e+00 : f32
    %271 = vector.broadcast %cst_69 : f32 to vector<2x512xf32>
    %272 = arith.subf %270, %271 : vector<2x512xf32>
    %273 = vector.broadcast %268 : vector<1x512xf32> to vector<2x512xf32>
    %274 = arith.mulf %273, %272 : vector<2x512xf32>
    %275 = arith.addf %249, %274 : vector<2x512xf32>
    %276 = vector.extract_strided_slice %111 {offsets = [5, 0], sizes = [1, 512], strides = [1, 1]} : vector<8x512xi32> to vector<1x512xi32>
    %277 = vector.broadcast %276 : vector<1x512xi32> to vector<128x512xi32>
    %278 = arith.cmpi eq, %141, %277 : vector<128x512xi32>
    %cst_70 = arith.constant 1.000000e+00 : f32
    %cst_71 = arith.constant 0.000000e+00 : f32
    %279 = vector.broadcast %cst_70 : f32 to vector<128x512xf32>
    %280 = vector.broadcast %cst_71 : f32 to vector<128x512xf32>
    %281 = arith.select %278, %279, %280 : vector<128x512xi1>, vector<128x512xf32>
    %282 = arith.truncf %281 : vector<128x512xf32> to vector<128x512xbf16>
    %cst_72 = arith.constant dense<0.000000e+00> : vector<2x512xf32>
    %283 = tpu.matmul %144, %282, %cst_72 {dimension_numbers = #tpu.dot_dimension_numbers<[1], [0], [0], [1], [0, 0, 1, 1], [], []>} : vector<2x128xbf16>, vector<128x512xbf16>, vector<2x512xf32> -> vector<2x512xf32>
    %284 = vector.extract_strided_slice %140 {offsets = [5, 0], sizes = [1, 512], strides = [1, 1]} : vector<8x512xf32> to vector<1x512xf32>
    %285 = vector.broadcast %284 : vector<1x512xf32> to vector<2x512xf32>
    %286 = arith.mulf %283, %285 : vector<2x512xf32>
    %287 = math.floor %286 : vector<2x512xf32>
    %cst_73 = arith.constant 5.000000e-01 : f32
    %288 = vector.broadcast %cst_73 : f32 to vector<2x512xf32>
    %289 = arith.mulf %287, %288 : vector<2x512xf32>
    %290 = math.floor %289 : vector<2x512xf32>
    %cst_74 = arith.constant 2.000000e+00 : f32
    %291 = vector.broadcast %cst_74 : f32 to vector<2x512xf32>
    %292 = arith.mulf %291, %290 : vector<2x512xf32>
    %293 = arith.subf %287, %292 : vector<2x512xf32>
    %294 = vector.extract_strided_slice %100 {offsets = [5, 0], sizes = [1, 512], strides = [1, 1]} : vector<8x512xf32> to vector<1x512xf32>
    %cst_75 = arith.constant 2.000000e+00 : f32
    %295 = vector.broadcast %cst_75 : f32 to vector<2x512xf32>
    %296 = arith.mulf %295, %293 : vector<2x512xf32>
    %cst_76 = arith.constant 1.000000e+00 : f32
    %297 = vector.broadcast %cst_76 : f32 to vector<2x512xf32>
    %298 = arith.subf %296, %297 : vector<2x512xf32>
    %299 = vector.broadcast %294 : vector<1x512xf32> to vector<2x512xf32>
    %300 = arith.mulf %299, %298 : vector<2x512xf32>
    %301 = arith.addf %275, %300 : vector<2x512xf32>
    %302 = vector.extract_strided_slice %111 {offsets = [6, 0], sizes = [1, 512], strides = [1, 1]} : vector<8x512xi32> to vector<1x512xi32>
    %303 = vector.broadcast %302 : vector<1x512xi32> to vector<128x512xi32>
    %304 = arith.cmpi eq, %141, %303 : vector<128x512xi32>
    %cst_77 = arith.constant 1.000000e+00 : f32
    %cst_78 = arith.constant 0.000000e+00 : f32
    %305 = vector.broadcast %cst_77 : f32 to vector<128x512xf32>
    %306 = vector.broadcast %cst_78 : f32 to vector<128x512xf32>
    %307 = arith.select %304, %305, %306 : vector<128x512xi1>, vector<128x512xf32>
    %308 = arith.truncf %307 : vector<128x512xf32> to vector<128x512xbf16>
    %cst_79 = arith.constant dense<0.000000e+00> : vector<2x512xf32>
    %309 = tpu.matmul %144, %308, %cst_79 {dimension_numbers = #tpu.dot_dimension_numbers<[1], [0], [0], [1], [0, 0, 1, 1], [], []>} : vector<2x128xbf16>, vector<128x512xbf16>, vector<2x512xf32> -> vector<2x512xf32>
    %310 = vector.extract_strided_slice %140 {offsets = [6, 0], sizes = [1, 512], strides = [1, 1]} : vector<8x512xf32> to vector<1x512xf32>
    %311 = vector.broadcast %310 : vector<1x512xf32> to vector<2x512xf32>
    %312 = arith.mulf %309, %311 : vector<2x512xf32>
    %313 = math.floor %312 : vector<2x512xf32>
    %cst_80 = arith.constant 5.000000e-01 : f32
    %314 = vector.broadcast %cst_80 : f32 to vector<2x512xf32>
    %315 = arith.mulf %313, %314 : vector<2x512xf32>
    %316 = math.floor %315 : vector<2x512xf32>
    %cst_81 = arith.constant 2.000000e+00 : f32
    %317 = vector.broadcast %cst_81 : f32 to vector<2x512xf32>
    %318 = arith.mulf %317, %316 : vector<2x512xf32>
    %319 = arith.subf %313, %318 : vector<2x512xf32>
    %320 = vector.extract_strided_slice %100 {offsets = [6, 0], sizes = [1, 512], strides = [1, 1]} : vector<8x512xf32> to vector<1x512xf32>
    %cst_82 = arith.constant 2.000000e+00 : f32
    %321 = vector.broadcast %cst_82 : f32 to vector<2x512xf32>
    %322 = arith.mulf %321, %319 : vector<2x512xf32>
    %cst_83 = arith.constant 1.000000e+00 : f32
    %323 = vector.broadcast %cst_83 : f32 to vector<2x512xf32>
    %324 = arith.subf %322, %323 : vector<2x512xf32>
    %325 = vector.broadcast %320 : vector<1x512xf32> to vector<2x512xf32>
    %326 = arith.mulf %325, %324 : vector<2x512xf32>
    %327 = arith.addf %301, %326 : vector<2x512xf32>
    %328 = vector.extract_strided_slice %111 {offsets = [7, 0], sizes = [1, 512], strides = [1, 1]} : vector<8x512xi32> to vector<1x512xi32>
    %329 = vector.broadcast %328 : vector<1x512xi32> to vector<128x512xi32>
    %330 = arith.cmpi eq, %141, %329 : vector<128x512xi32>
    %cst_84 = arith.constant 1.000000e+00 : f32
    %cst_85 = arith.constant 0.000000e+00 : f32
    %331 = vector.broadcast %cst_84 : f32 to vector<128x512xf32>
    %332 = vector.broadcast %cst_85 : f32 to vector<128x512xf32>
    %333 = arith.select %330, %331, %332 : vector<128x512xi1>, vector<128x512xf32>
    %334 = arith.truncf %333 : vector<128x512xf32> to vector<128x512xbf16>
    %cst_86 = arith.constant dense<0.000000e+00> : vector<2x512xf32>
    %335 = tpu.matmul %144, %334, %cst_86 {dimension_numbers = #tpu.dot_dimension_numbers<[1], [0], [0], [1], [0, 0, 1, 1], [], []>} : vector<2x128xbf16>, vector<128x512xbf16>, vector<2x512xf32> -> vector<2x512xf32>
    %336 = vector.extract_strided_slice %140 {offsets = [7, 0], sizes = [1, 512], strides = [1, 1]} : vector<8x512xf32> to vector<1x512xf32>
    %337 = vector.broadcast %336 : vector<1x512xf32> to vector<2x512xf32>
    %338 = arith.mulf %335, %337 : vector<2x512xf32>
    %339 = math.floor %338 : vector<2x512xf32>
    %cst_87 = arith.constant 5.000000e-01 : f32
    %340 = vector.broadcast %cst_87 : f32 to vector<2x512xf32>
    %341 = arith.mulf %339, %340 : vector<2x512xf32>
    %342 = math.floor %341 : vector<2x512xf32>
    %cst_88 = arith.constant 2.000000e+00 : f32
    %343 = vector.broadcast %cst_88 : f32 to vector<2x512xf32>
    %344 = arith.mulf %343, %342 : vector<2x512xf32>
    %345 = arith.subf %339, %344 : vector<2x512xf32>
    %346 = vector.extract_strided_slice %100 {offsets = [7, 0], sizes = [1, 512], strides = [1, 1]} : vector<8x512xf32> to vector<1x512xf32>
    %cst_89 = arith.constant 2.000000e+00 : f32
    %347 = vector.broadcast %cst_89 : f32 to vector<2x512xf32>
    %348 = arith.mulf %347, %345 : vector<2x512xf32>
    %cst_90 = arith.constant 1.000000e+00 : f32
    %349 = vector.broadcast %cst_90 : f32 to vector<2x512xf32>
    %350 = arith.subf %348, %349 : vector<2x512xf32>
    %351 = vector.broadcast %346 : vector<1x512xf32> to vector<2x512xf32>
    %352 = arith.mulf %351, %350 : vector<2x512xf32>
    %353 = arith.addf %327, %352 : vector<2x512xf32>
    %c0_91 = arith.constant 0 : index
    %c0_92 = arith.constant 0 : index
    %c0_93 = arith.constant 0 : index
    %354 = vector.load %arg7[%c0_91, %c0_92, %c0_93] : memref<1x2x512xf32, #tpu.memory_space<vmem>>, vector<1x2x512xf32>
    %355 = vector.shape_cast %354 : vector<1x2x512xf32> to vector<2x512xf32>
    %356 = vector.shape_cast %353 : vector<2x512xf32> to vector<1x2x512xf32>
    tpu.vector_store %arg7[%c0_91, %c0_92, %c0_93], %356 {strides = array<i32>} : memref<1x2x512xf32, #tpu.memory_space<vmem>>, vector<1x2x512xf32>,
    return
  }
  func.func @transform_0(%arg0: i32, %arg1: i32, %arg2: memref<3xi32, #tpu.memory_space<smem>>, %arg3: memref<3xi32, #tpu.memory_space<smem>>, %arg4: memref<3xi32, #tpu.memory_space<smem>>) -> (i32, i32, i32) {
    %0 = arith.index_cast %arg1 : i32 to index
    %1 = memref.load %arg4[%0] : memref<3xi32, #tpu.memory_space<smem>>
    %c0_i32 = arith.constant 0 : i32
    %c0_i32_0 = arith.constant 0 : i32
    return %1, %c0_i32, %arg0 : i32, i32, i32
  }
  func.func @transform_1(%arg0: i32, %arg1: i32, %arg2: memref<3xi32, #tpu.memory_space<smem>>, %arg3: memref<3xi32, #tpu.memory_space<smem>>, %arg4: memref<3xi32, #tpu.memory_space<smem>>) -> (i32, i32, i32) {
    %c0_i32 = arith.constant 0 : i32
    %c0_i32_0 = arith.constant 0 : i32
    %c0_i32_1 = arith.constant 0 : i32
    %c0_i32_2 = arith.constant 0 : i32
    return %c0_i32, %c0_i32_0, %c0_i32_1 : i32, i32, i32
  }
  func.func @transform_2(%arg0: i32, %arg1: i32, %arg2: memref<3xi32, #tpu.memory_space<smem>>, %arg3: memref<3xi32, #tpu.memory_space<smem>>, %arg4: memref<3xi32, #tpu.memory_space<smem>>) -> (i32, i32, i32) {
    %c0_i32 = arith.constant 0 : i32
    %c0_i32_0 = arith.constant 0 : i32
    return %arg1, %c0_i32, %arg0 : i32, i32, i32
  }
}

</mosaic_0001>

<llo_original>
// kernel: tpu_custom_call.1
$region0: #{tpu_custom_call.1}
  #allocation0 [shape = 'u32[]', space=smem, size = 0x4, offset = 0x4, fixed_abs, tag = 'smem constant byte address 0x4 - core index']
  #allocation1 [shape = 'u32[144,128]{1,0:T(1,128)}', space=vmem, size = 0x12000, scoped, tag = 'internal scratch']
  #allocation2 [shape = 's32[1]{0}', space=sflag, size = 0x4, scoped, tag = 'scoped memory for tpu_custom_call.1']
  #allocation3 [shape = 'u8[512]{0}', space=smem, size = 0x200, scoped, tag = 'prefetched SMEM operand 0']
  #allocation4 [shape = 'u8[512]{0}', space=smem, size = 0x200, scoped, tag = 'prefetched SMEM operand 1']
  #allocation5 [shape = 'u8[512]{0}', space=smem, size = 0x200, scoped, tag = 'prefetched SMEM operand 2']
  %s0 = inlined_call_operand.vmem [shape: s32[3], index: 0, kind: input, shape index: {}]
  %s1 = inlined_call_operand.vmem [shape: s32[3], index: 1, kind: input, shape index: {}]
  %s2 = inlined_call_operand.vmem [shape: s32[3], index: 2, kind: input, shape index: {}]
  %s3 = inlined_call_operand.vmem [shape: f32[1,3,512], index: 3, kind: input, shape index: {}]
  %s4 = inlined_call_operand.vmem [shape: bf16[3,2,128], index: 4, kind: input, shape index: {}]
  %s5 = inlined_call_operand.hbm [shape: f32[3,2,512], index: 5, kind: output, shape index: {}]
  %s6 = sld [smem:[#allocation0]]
  $region41: #{tpu_custom_call.1} parent=0
    _
  %s8 = ssub.s32 1, %s6
  %s9 = scalar_select 0, %s8, %s6
  %s10 = sshll.u32 %s0, 4
  %s11 = int_to_ptr.vmem [resolvable:$true] %s10
  %13 = dma.vmem_to_smem %s11, 16, [#allocation3], [#allocation2]
  %s14 = sshll.u32 %s1, 4
  %s15 = int_to_ptr.vmem [resolvable:$true] %s14
  %17 = dma.vmem_to_smem %s15, 16, [#allocation4], [#allocation2]
  %s18 = sshll.u32 %s2, 4
  %s19 = int_to_ptr.vmem [resolvable:$true] %s18
  %21 = dma.vmem_to_smem %s19, 16, [#allocation5], [#allocation2]
  %22 = dma.done [#allocation2], 48
  %23 = sfence
  $region1: #{tpu_custom_call.1} parent=0
    #allocation6 [shape = 'u8[8192]{0}', space=vmem, size = 0x2000, scoped, tag = 'output window, operand 0']
    #allocation7 [shape = 's32[2]{0}', space=sflag, size = 0x8, scoped, tag = 'scoped memory for tpu_custom_call.1']
    %24 = vsyncpa [#allocation7], 0
    %s25 = scalar_lea.sflag [#allocation7], 1
    %26 = vsyncpa %s25, 0
    loop: start=0, step=1, limit=5
    $region2: #{tpu_custom_call.1} parent=1 // loop_pre_header
      _
    $region3: #{tpu_custom_call.1} parent=1 // loop_header
      %s28 = sphi 0, %s32
      %p29 = scmp.ge.s32.totalorder %s28, 5
      %s35 = sphi 0, %s47
      %s36 = sphi 0, %s43
      %s37 = sphi 0, %s35
      %s38 = sphi 0, %s36
      %s39 = sphi 0, %s37
      %s40 = sphi 0, %s38
      %s54 = sphi 0, %s56
      %s57 = sphi 0, %s54
      %s58 = sphi 0, %s57
      %s74 = sphi 0, %s58
      %s78 = sphi 0, %s78
      %s80 = sphi 0, %s78
      %s81 = sphi 0, %s80
      %s95 = sphi 0, %s81
      %s103 = sphi 0, %s105
      %s106 = sphi 0, %s103
      %s107 = sphi 0, %s106
      %s123 = sphi 0, %s107
    $region4: #{tpu_custom_call.1} parent=1 // loop_header_branch
      %31 = sbr.rel (%p29) target = $region8
    $region5: #{tpu_custom_call.1} parent=1 // loop_body
      %s33 = ssub.s32 %s28, 1
      %s34 = ssub.s32 %s28, 2
      %s41 = sadd.s32 1, %s36
      %p42 = scmp.ge.s32.totalorder %s41, 3
      %s43 = scalar_select %p42, 0, %s41
      %s44 = sadd.s32 1, %s35
      %s45 = scalar_select %p42, %s44, %s35
      %p46 = scmp.ge.s32.totalorder %s45, 1
      %s47 = scalar_select %p46, 0, %s45
      %s48 = sld [smem:[#allocation5 + %s36]]
      %s49 = sld [smem:[#allocation5 + %s43]]
      %s50 = ssub.s32 %s48, %s49
      %s51 = ssub.s32 %s35, %s47
      %s52 = sor.u32 %s50, %s51
      %p53 = scmp.eq.s32.totalorder %s52, 0
      %s55 = sadd.s32 %s54, 1
      %s56 = scalar_select %p53, %s54, %s55
      %p59 = pneg %p53
      %p60 = scmp.eq.s32.totalorder %s28, 2
      %p61 = por %p59, %p60
      %p62 = scmp.ne.s32.totalorder %s54, %s57
      %p63 = scmp.eq.s32.totalorder %s28, 0
      %p64 = por %p62, %p63
      %p65 = scmp.ne.s32.totalorder %s54, %s57
      %p66 = scmp.eq.s32.totalorder %s33, 2
      %p67 = por %p65, %p66
      %p68 = scmp.ne.s32.totalorder %s57, %s58
      %p69 = scmp.eq.s32.totalorder %s33, 0
      %p70 = por %p68, %p69
      %p71 = scmp.ne.s32.totalorder %s57, %s58
      %p72 = scmp.eq.s32.totalorder %s34, 2
      %p73 = por %p71, %p72
      %p75 = scmp.ne.s32.totalorder %s58, %s74
      %p76 = scmp.eq.s32.totalorder %s34, 0
      %p77 = por %p75, %p76
      %s79 = sadd.s32 %s78, 1
      %p82 = scmp.eq.s32.totalorder %s28, 2
      %p83 = scmp.ne.s32.totalorder %s78, %s80
      %p84 = scmp.eq.s32.totalorder %s28, 0
      %p85 = por %p83, %p84
      %p86 = scmp.ne.s32.totalorder %s78, %s80
      %p87 = scmp.eq.s32.totalorder %s33, 2
      %p88 = por %p86, %p87
      %p89 = scmp.ne.s32.totalorder %s80, %s81
      %p90 = scmp.eq.s32.totalorder %s33, 0
      %p91 = por %p89, %p90
      %p92 = scmp.ne.s32.totalorder %s80, %s81
      %p93 = scmp.eq.s32.totalorder %s34, 2
      %p94 = por %p92, %p93
      %p96 = scmp.ne.s32.totalorder %s81, %s95
      %p97 = scmp.eq.s32.totalorder %s34, 0
      %p98 = por %p96, %p97
      %s99 = ssub.s32 %s36, %s43
      %s100 = ssub.s32 %s35, %s47
      %s101 = sor.u32 %s99, %s100
      %p102 = scmp.eq.s32.totalorder %s101, 0
      %s104 = sadd.s32 %s103, 1
      %s105 = scalar_select %p102, %s103, %s104
      %p108 = pneg %p102
      %p109 = scmp.eq.s32.totalorder %s28, 2
      %p110 = por %p108, %p109
      %p111 = scmp.ne.s32.totalorder %s103, %s106
      %p112 = scmp.eq.s32.totalorder %s28, 0
      %p113 = por %p111, %p112
      %p114 = scmp.ne.s32.totalorder %s103, %s106
      %p115 = scmp.eq.s32.totalorder %s33, 2
      %p116 = por %p114, %p115
      %p117 = scmp.ne.s32.totalorder %s106, %s107
      %p118 = scmp.eq.s32.totalorder %s33, 0
      %p119 = por %p117, %p118
      %p120 = scmp.ne.s32.totalorder %s106, %s107
      %p121 = scmp.eq.s32.totalorder %s34, 2
      %p122 = por %p120, %p121
      %p124 = scmp.ne.s32.totalorder %s107, %s123
      %p125 = scmp.eq.s32.totalorder %s34, 0
      %p126 = por %p124, %p125
      %p127 = scmp.le.s32.totalorder 1, %s28
      %p128 = scmp.lt.s32.totalorder %s28, 4
      %p129 = pnand %p127, %p128
      %p130 = pneg %p129
      // Predicated region
      $region9: #{tpu_custom_call.1} parent=5 // pred_check
        _
      $region10: #{tpu_custom_call.1} parent=5 // pred_check_branch
        %132 = sbr.rel (%p129) target = $region12
      $region11: #{tpu_custom_call.1} parent=5 // pred_region
        %s133 = ssub.s32 %s28, 1
        // Predicated region
        $region13: #{tpu_custom_call.1} parent=11 // pred_check
          %p134 = pneg %p91
        $region14: #{tpu_custom_call.1} parent=11 // pred_check_branch
          %136 = sbr.rel (%p134) target = $region16
        $region15: #{tpu_custom_call.1} parent=11 // pred_region
          _
        $region16: #{tpu_custom_call.1} parent=11 // pred_fallthru
          _
      $region12: #{tpu_custom_call.1} parent=5 // pred_fallthru
        _
      %p137 = scmp.lt.s32.totalorder %s28, 3
      // Predicated region
      $region17: #{tpu_custom_call.1} parent=5 // pred_check
        %p138 = pneg %p137
      $region18: #{tpu_custom_call.1} parent=5 // pred_check_branch
        %140 = sbr.rel (%p138) target = $region20
      $region19: #{tpu_custom_call.1} parent=5 // pred_region
        // Predicated region
        $region21: #{tpu_custom_call.1} parent=19 // pred_check
          %p141 = pneg %p64
        $region22: #{tpu_custom_call.1} parent=19 // pred_check_branch
          %143 = sbr.rel (%p141) target = $region24
        $region23: #{tpu_custom_call.1} parent=19 // pred_region
          %s144 = sld [smem:[#allocation5 + %s36]]
          %s145 = smul.u32 4, %s35
          %p146 = scmp.lt.s32.totalorder %s144, 0
          %s147 = scalar_select %p146, %s144, 0
          %p148 = scmp.lt.s32.totalorder %s145, 3
          %s149 = scalar_select %p148, %s145, 3
          %s150 = smul.addr %s147, 4
          %s151 = sadd.s32 %s149, %s150
          %s152 = smul.addr %s151, 4
          %s153 = scalar_lea.vmem %s3, %s152
          %s154 = sld [smem:[#allocation5 + %s36]]
          %s155 = smul.u32 4, %s35
        $region24: #{tpu_custom_call.1} parent=19 // pred_fallthru
          _
      $region20: #{tpu_custom_call.1} parent=5 // pred_fallthru
        _
      %p156 = scmp.le.s32.totalorder 1, %s28
      %p157 = scmp.lt.s32.totalorder %s28, 4
      %p158 = pnand %p156, %p157
      %p159 = pneg %p158
      // Predicated region
      $region25: #{tpu_custom_call.1} parent=5 // pred_check
        _
      $region26: #{tpu_custom_call.1} parent=5 // pred_check_branch
        %161 = sbr.rel (%p158) target = $region28
      $region27: #{tpu_custom_call.1} parent=5 // pred_region
        %s162 = ssub.s32 %s28, 1
        %s163 = sld [smem:[#allocation5 + %s38]]
        %s164 = smul.u32 4, %s37
        %p165 = scmp.lt.s32.totalorder %s163, 0
        %s166 = scalar_select %p165, %s163, 0
        %p167 = scmp.lt.s32.totalorder %s164, 3
        %s168 = scalar_select %p167, %s164, 3
        %s169 = smul.addr %s166, 4
        %s170 = sadd.s32 %s168, %s169
        %s171 = smul.addr %s170, 4
        %s172 = scalar_lea.vmem %s3, %s171
        %p173 = pneg %p70
        %p174 = pneg %p67
        %p175 = pneg %p91
        %p176 = pneg %p88
        %p177 = pneg %p119
        %p178 = pneg %p116
        %s179 = sand.u32 %s106, 1
        %s180 = scalar_lea.sflag [#allocation7], %s179
        %s181 = sand.u32 %s106, 1
        %s182 = smul.addr %s181, 8
        %s183 = scalar_lea.vmem [#allocation6], %s182
        %s184 = sld [smem:[#allocation5 + %s38]]
        %s185 = smul.u32 4, %s37
        %p186 = scmp.lt.s32.totalorder %s184, 0
        %s187 = scalar_select %p186, %s184, 0
        %p188 = scmp.lt.s32.totalorder %s185, 3
        %s189 = scalar_select %p188, %s185, 3
        %s190 = smul.addr %s187, 4
        %s191 = sadd.s32 %s189, %s190
        %s192 = smul.addr %s191, 4
        %s193 = scalar_lea.vmem %s3, %s192
        %s194 = sld [smem:[#allocation5 + %s38]]
        %s195 = smul.u32 4, %s37
        %s196 = smul.u32 4, %s37
        %s198 = sld [smem:[#allocation3 + %s38]]
        %s199 = scvt.s32.f32 %s198
        %s200 = sld [smem:[#allocation4 + %s38]]
        %p201 = scmp.ne.s32.totalorder %s200, 0
        %v202 = vld [vmem:[%s193] sm:$0x77]
        %v203 = vld [vmem:[%s193 + $0x8] sm:$0x77]
        %s204 = ssub.f32 %s199, 1.0
        %v205 = vstv %s204
        %v206 = vmul.f32 %v202, %v205
        %v207 = vmul.f32 %v203, %v205
        %v208 = vfloor.f32 %v206
        %v209 = vfloor.f32 %v207
        %s210 = ssub.f32 %s199, 2.0
        %s211 = smax.f32 %s210, 0.0
        %v212 = vmax.f32 %v208, 0.0
        %v213 = vmax.f32 %v209, 0.0
        %v214 = vstv %s211
        %v215 = vmin.f32 %v214, %v212
        %v216 = vmin.f32 %v214, %v213
        %v217 = vsub.f32 %v206, %v215
        %v218 = vsub.f32 %v207, %v216
        %v219 = vcvt.f32.s32.to.zero.pseudo %v215
        %v220 = vcvt.f32.s32.to.zero.pseudo %v216
        %v221 = vlaneseq
        %v222 = vshrl.u32 %v221, 7
        %v223 = vand.u32 %v222, 1
        %v224 = vlaneseq
        %v225 = vshrl.u32 %v224, 7
        %v226 = vsub.s32 0, %v225
        %v227 = vrot.slane %v219, %v226
        %v228 = vlaneseq
        %v229 = vshrl.u32 %v228, 7
        %v230 = vsub.s32 4, %v229
        %v231 = vrot.slane %v219, %v230
        %v232 = vlaneseq
        %v233 = vshrl.u32 %v232, 7
        %v234 = vsub.s32 0, %v233
        %v235 = vrot.slane %v220, %v234
        %v236 = vlaneseq
        %v237 = vshrl.u32 %v236, 7
        %v238 = vsub.s32 4, %v237
        %v239 = vrot.slane %v220, %v238
        %v240 = vlaneseq
        %v241 = vshrl.u32 %v240, 7
        %v242 = vsub.s32 0, %v241
        %v243 = vrot.slane %v227, %v242
        %v244 = vlaneseq
        %v245 = vshrl.u32 %v244, 7
        %v246 = vsub.s32 0, %v245
        %v247 = vrot.slane %v231, %v246
        %v248 = vlaneseq
        %v249 = vshrl.u32 %v248, 7
        %v250 = vsub.s32 0, %v249
        %v251 = vrot.slane %v235, %v250
        %v252 = vlaneseq
        %v253 = vshrl.u32 %v252, 7
        %v254 = vsub.s32 0, %v253
        %v255 = vrot.slane %v239, %v254
        %v256 = vadd.s32 %v243, %v223
        %v257 = vadd.s32 %v247, %v223
        %v258 = vadd.s32 %v251, %v223
        %v259 = vadd.s32 %v255, %v223
        %vm260 = vcmp.eq.s32.totalorder %v223, 1
        %v261 = vsub.f32 1.0, %v217
        %v262 = vsub.f32 1.0, %v218
        %v263 = vsel %vm260, 1, 0
        %vm264 = vcmp.eq.s32.totalorder %v263, 1
        %v267 = vlaneseq
        %v268 = vshrl.u32 %v267, 7
        %v269 = vsub.s32 0, %v268
        %v270 = vrot.slane %v217, %v269
        %v271 = vlaneseq
        %v272 = vshrl.u32 %v271, 7
        %v273 = vsub.s32 4, %v272
        %v274 = vrot.slane %v217, %v273
        %v275 = vlaneseq
        %v276 = vshrl.u32 %v275, 7
        %v277 = vsub.s32 0, %v276
        %v278 = vrot.slane %v218, %v277
        %v279 = vlaneseq
        %v280 = vshrl.u32 %v279, 7
        %v281 = vsub.s32 4, %v280
        %v282 = vrot.slane %v218, %v281
        %v287 = vlaneseq
        %v288 = vshrl.u32 %v287, 7
        %v289 = vsub.s32 0, %v288
        %v290 = vrot.slane %v270, %v289
        %v291 = vlaneseq
        %v292 = vshrl.u32 %v291, 7
        %v293 = vsub.s32 0, %v292
        %v294 = vrot.slane %v274, %v293
        %v295 = vlaneseq
        %v296 = vshrl.u32 %v295, 7
        %v297 = vsub.s32 0, %v296
        %v298 = vrot.slane %v278, %v297
        %v299 = vlaneseq
        %v300 = vshrl.u32 %v299, 7
        %v301 = vsub.s32 0, %v300
        %v302 = vrot.slane %v282, %v301
        %v305 = vlaneseq
        %v306 = vshrl.u32 %v305, 7
        %v307 = vsub.s32 0, %v306
        %v308 = vrot.slane %v261, %v307
        %v309 = vlaneseq
        %v310 = vshrl.u32 %v309, 7
        %v311 = vsub.s32 4, %v310
        %v312 = vrot.slane %v261, %v311
        %v313 = vlaneseq
        %v314 = vshrl.u32 %v313, 7
        %v315 = vsub.s32 0, %v314
        %v316 = vrot.slane %v262, %v315
        %v317 = vlaneseq
        %v318 = vshrl.u32 %v317, 7
        %v319 = vsub.s32 4, %v318
        %v320 = vrot.slane %v262, %v319
        %v325 = vlaneseq
        %v326 = vshrl.u32 %v325, 7
        %v327 = vsub.s32 0, %v326
        %v328 = vrot.slane %v308, %v327
        %v329 = vlaneseq
        %v330 = vshrl.u32 %v329, 7
        %v331 = vsub.s32 0, %v330
        %v332 = vrot.slane %v312, %v331
        %v333 = vlaneseq
        %v334 = vshrl.u32 %v333, 7
        %v335 = vsub.s32 0, %v334
        %v336 = vrot.slane %v316, %v335
        %v337 = vlaneseq
        %v338 = vshrl.u32 %v337, 7
        %v339 = vsub.s32 0, %v338
        %v340 = vrot.slane %v320, %v339
        %v341 = vsel %vm264, %v290, %v328
        %v342 = vsel %vm264, %v294, %v332
        %v343 = vsel %vm264, %v298, %v336
        %v344 = vsel %vm264, %v302, %v340
        %v345 = vshra.s32 %v222, 1
        %v346 = vand.u32 %v345, 1
        %v347 = vlaneseq
        %v348 = vshrl.u32 %v347, 7
        %v349 = vsub.s32 1, %v348
        %v350 = vrot.slane %v219, %v349
        %v351 = vlaneseq
        %v352 = vshrl.u32 %v351, 7
        %v353 = vsub.s32 5, %v352
        %v354 = vrot.slane %v219, %v353
        %v355 = vlaneseq
        %v356 = vshrl.u32 %v355, 7
        %v357 = vsub.s32 1, %v356
        %v358 = vrot.slane %v220, %v357
        %v359 = vlaneseq
        %v360 = vshrl.u32 %v359, 7
        %v361 = vsub.s32 5, %v360
        %v362 = vrot.slane %v220, %v361
        %v363 = vlaneseq
        %v364 = vshrl.u32 %v363, 7
        %v365 = vsub.s32 1, %v364
        %v366 = vrot.slane %v350, %v365
        %v367 = vlaneseq
        %v368 = vshrl.u32 %v367, 7
        %v369 = vsub.s32 1, %v368
        %v370 = vrot.slane %v354, %v369
        %v371 = vlaneseq
        %v372 = vshrl.u32 %v371, 7
        %v373 = vsub.s32 1, %v372
        %v374 = vrot.slane %v358, %v373
        %v375 = vlaneseq
        %v376 = vshrl.u32 %v375, 7
        %v377 = vsub.s32 1, %v376
        %v378 = vrot.slane %v362, %v377
        %v379 = vadd.s32 %v366, %v346
        %v380 = vadd.s32 %v370, %v346
        %v381 = vadd.s32 %v374, %v346
        %v382 = vadd.s32 %v378, %v346
        %vm383 = vcmp.eq.s32.totalorder %v346, 1
        %v384 = vsel %vm383, 1, 0
        %vm385 = vcmp.eq.s32.totalorder %v384, 1
        %v386 = vlaneseq
        %v387 = vshrl.u32 %v386, 7
        %v388 = vsub.s32 1, %v387
        %v389 = vrot.slane %v217, %v388
        %v390 = vlaneseq
        %v391 = vshrl.u32 %v390, 7
        %v392 = vsub.s32 5, %v391
        %v393 = vrot.slane %v217, %v392
        %v394 = vlaneseq
        %v395 = vshrl.u32 %v394, 7
        %v396 = vsub.s32 1, %v395
        %v397 = vrot.slane %v218, %v396
        %v398 = vlaneseq
        %v399 = vshrl.u32 %v398, 7
        %v400 = vsub.s32 5, %v399
        %v401 = vrot.slane %v218, %v400
        %v406 = vlaneseq
        %v407 = vshrl.u32 %v406, 7
        %v408 = vsub.s32 1, %v407
        %v409 = vrot.slane %v389, %v408
        %v410 = vlaneseq
        %v411 = vshrl.u32 %v410, 7
        %v412 = vsub.s32 1, %v411
        %v413 = vrot.slane %v393, %v412
        %v414 = vlaneseq
        %v415 = vshrl.u32 %v414, 7
        %v416 = vsub.s32 1, %v415
        %v417 = vrot.slane %v397, %v416
        %v418 = vlaneseq
        %v419 = vshrl.u32 %v418, 7
        %v420 = vsub.s32 1, %v419
        %v421 = vrot.slane %v401, %v420
        %v422 = vlaneseq
        %v423 = vshrl.u32 %v422, 7
        %v424 = vsub.s32 1, %v423
        %v425 = vrot.slane %v261, %v424
        %v426 = vlaneseq
        %v427 = vshrl.u32 %v426, 7
        %v428 = vsub.s32 5, %v427
        %v429 = vrot.slane %v261, %v428
        %v430 = vlaneseq
        %v431 = vshrl.u32 %v430, 7
        %v432 = vsub.s32 1, %v431
        %v433 = vrot.slane %v262, %v432
        %v434 = vlaneseq
        %v435 = vshrl.u32 %v434, 7
        %v436 = vsub.s32 5, %v435
        %v437 = vrot.slane %v262, %v436
        %v442 = vlaneseq
        %v443 = vshrl.u32 %v442, 7
        %v444 = vsub.s32 1, %v443
        %v445 = vrot.slane %v425, %v444
        %v446 = vlaneseq
        %v447 = vshrl.u32 %v446, 7
        %v448 = vsub.s32 1, %v447
        %v449 = vrot.slane %v429, %v448
        %v450 = vlaneseq
        %v451 = vshrl.u32 %v450, 7
        %v452 = vsub.s32 1, %v451
        %v453 = vrot.slane %v433, %v452
        %v454 = vlaneseq
        %v455 = vshrl.u32 %v454, 7
        %v456 = vsub.s32 1, %v455
        %v457 = vrot.slane %v437, %v456
        %v458 = vsel %vm385, %v409, %v445
        %v459 = vsel %vm385, %v413, %v449
        %v460 = vsel %vm385, %v417, %v453
        %v461 = vsel %vm385, %v421, %v457
        %v462 = vmul.f32 %v341, %v458
        %v463 = vmul.f32 %v342, %v459
        %v464 = vmul.f32 %v343, %v460
        %v465 = vmul.f32 %v344, %v461
        %v466 = vstv %s198
        %v467 = vmul.u32 %v379, %v466
        %v468 = vmul.u32 %v380, %v466
        %v469 = vmul.u32 %v381, %v466
        %v470 = vmul.u32 %v382, %v466
        %v471 = vadd.s32 %v256, %v467
        %v472 = vadd.s32 %v257, %v468
        %v473 = vadd.s32 %v258, %v469
        %v474 = vadd.s32 %v259, %v470
        %s475 = smul.u32 %s198, %s198
        %v476 = vmul.u32 %v379, 2654435761
        %v477 = vmul.u32 %v380, 2654435761
        %v478 = vmul.u32 %v381, 2654435761
        %v479 = vmul.u32 %v382, 2654435761
        %v480 = vxor.u32 %v256, %v476
        %v481 = vxor.u32 %v257, %v477
        %v482 = vxor.u32 %v258, %v478
        %v483 = vxor.u32 %v259, %v479
        %v484 = vshra.s32 %v222, 2
        %v485 = vand.u32 %v484, 1
        %v486 = vlaneseq
        %v487 = vshrl.u32 %v486, 7
        %v488 = vsub.s32 2, %v487
        %v489 = vrot.slane %v219, %v488
        %v490 = vlaneseq
        %v491 = vshrl.u32 %v490, 7
        %v492 = vsub.s32 6, %v491
        %v493 = vrot.slane %v219, %v492
        %v494 = vlaneseq
        %v495 = vshrl.u32 %v494, 7
        %v496 = vsub.s32 2, %v495
        %v497 = vrot.slane %v220, %v496
        %v498 = vlaneseq
        %v499 = vshrl.u32 %v498, 7
        %v500 = vsub.s32 6, %v499
        %v501 = vrot.slane %v220, %v500
        %v502 = vlaneseq
        %v503 = vshrl.u32 %v502, 7
        %v504 = vsub.s32 2, %v503
        %v505 = vrot.slane %v489, %v504
        %v506 = vlaneseq
        %v507 = vshrl.u32 %v506, 7
        %v508 = vsub.s32 2, %v507
        %v509 = vrot.slane %v493, %v508
        %v510 = vlaneseq
        %v511 = vshrl.u32 %v510, 7
        %v512 = vsub.s32 2, %v511
        %v513 = vrot.slane %v497, %v512
        %v514 = vlaneseq
        %v515 = vshrl.u32 %v514, 7
        %v516 = vsub.s32 2, %v515
        %v517 = vrot.slane %v501, %v516
        %v518 = vadd.s32 %v505, %v485
        %v519 = vadd.s32 %v509, %v485
        %v520 = vadd.s32 %v513, %v485
        %v521 = vadd.s32 %v517, %v485
        %vm522 = vcmp.eq.s32.totalorder %v485, 1
        %v523 = vsel %vm522, 1, 0
        %vm524 = vcmp.eq.s32.totalorder %v523, 1
        %v525 = vlaneseq
        %v526 = vshrl.u32 %v525, 7
        %v527 = vsub.s32 2, %v526
        %v528 = vrot.slane %v217, %v527
        %v529 = vlaneseq
        %v530 = vshrl.u32 %v529, 7
        %v531 = vsub.s32 6, %v530
        %v532 = vrot.slane %v217, %v531
        %v533 = vlaneseq
        %v534 = vshrl.u32 %v533, 7
        %v535 = vsub.s32 2, %v534
        %v536 = vrot.slane %v218, %v535
        %v537 = vlaneseq
        %v538 = vshrl.u32 %v537, 7
        %v539 = vsub.s32 6, %v538
        %v540 = vrot.slane %v218, %v539
        %v545 = vlaneseq
        %v546 = vshrl.u32 %v545, 7
        %v547 = vsub.s32 2, %v546
        %v548 = vrot.slane %v528, %v547
        %v549 = vlaneseq
        %v550 = vshrl.u32 %v549, 7
        %v551 = vsub.s32 2, %v550
        %v552 = vrot.slane %v532, %v551
        %v553 = vlaneseq
        %v554 = vshrl.u32 %v553, 7
        %v555 = vsub.s32 2, %v554
        %v556 = vrot.slane %v536, %v555
        %v557 = vlaneseq
        %v558 = vshrl.u32 %v557, 7
        %v559 = vsub.s32 2, %v558
        %v560 = vrot.slane %v540, %v559
        %v561 = vlaneseq
        %v562 = vshrl.u32 %v561, 7
        %v563 = vsub.s32 2, %v562
        %v564 = vrot.slane %v261, %v563
        %v565 = vlaneseq
        %v566 = vshrl.u32 %v565, 7
        %v567 = vsub.s32 6, %v566
        %v568 = vrot.slane %v261, %v567
        %v569 = vlaneseq
        %v570 = vshrl.u32 %v569, 7
        %v571 = vsub.s32 2, %v570
        %v572 = vrot.slane %v262, %v571
        %v573 = vlaneseq
        %v574 = vshrl.u32 %v573, 7
        %v575 = vsub.s32 6, %v574
        %v576 = vrot.slane %v262, %v575
        %v581 = vlaneseq
        %v582 = vshrl.u32 %v581, 7
        %v583 = vsub.s32 2, %v582
        %v584 = vrot.slane %v564, %v583
        %v585 = vlaneseq
        %v586 = vshrl.u32 %v585, 7
        %v587 = vsub.s32 2, %v586
        %v588 = vrot.slane %v568, %v587
        %v589 = vlaneseq
        %v590 = vshrl.u32 %v589, 7
        %v591 = vsub.s32 2, %v590
        %v592 = vrot.slane %v572, %v591
        %v593 = vlaneseq
        %v594 = vshrl.u32 %v593, 7
        %v595 = vsub.s32 2, %v594
        %v596 = vrot.slane %v576, %v595
        %v597 = vsel %vm524, %v548, %v584
        %v598 = vsel %vm524, %v552, %v588
        %v599 = vsel %vm524, %v556, %v592
        %v600 = vsel %vm524, %v560, %v596
        %v601 = vmul.f32 %v462, %v597
        %v602 = vmul.f32 %v463, %v598
        %v603 = vmul.f32 %v464, %v599
        %v604 = vmul.f32 %v465, %v600
        %v605 = vstv %s475
        %v606 = vmul.u32 %v518, %v605
        %v607 = vmul.u32 %v519, %v605
        %v608 = vmul.u32 %v520, %v605
        %v609 = vmul.u32 %v521, %v605
        %v610 = vadd.s32 %v471, %v606
        %v611 = vadd.s32 %v472, %v607
        %v612 = vadd.s32 %v473, %v608
        %v613 = vadd.s32 %v474, %v609
        %v614 = vmul.u32 %v518, 805459861
        %v615 = vmul.u32 %v519, 805459861
        %v616 = vmul.u32 %v520, 805459861
        %v617 = vmul.u32 %v521, 805459861
        %v618 = vxor.u32 %v480, %v614
        %v619 = vxor.u32 %v481, %v615
        %v620 = vxor.u32 %v482, %v616
        %v621 = vxor.u32 %v483, %v617
        %v622 = vand.u32 %v618, 1023
        %v623 = vand.u32 %v619, 1023
        %v624 = vand.u32 %v620, 1023
        %v625 = vand.u32 %v621, 1023
        %s626 = scalar_select %p201, 1, 0
        %v627 = vstv %s626
        %vm628 = vcmp.eq.s32.totalorder %v627, 1
        %v629 = vsel %vm628, %v622, %v610
        %v630 = vsel %vm628, %v623, %v611
        %v631 = vsel %vm628, %v624, %v612
        %v632 = vsel %vm628, %v625, %v613
        %v633 = vshra.s32 %v629, 3
        %v634 = vshra.s32 %v630, 3
        %v635 = vshra.s32 %v631, 3
        %v636 = vshra.s32 %v632, 3
        %v637 = vand.u32 %v629, 7
        %v638 = vand.u32 %v630, 7
        %v639 = vand.u32 %v631, 7
        %v640 = vand.u32 %v632, 7
        %v641 = vand.u32 %v637, 1
        %v642 = vand.u32 %v638, 1
        %v643 = vand.u32 %v639, 1
        %v644 = vand.u32 %v640, 1
        %v645 = vcvt.s32.f32 %v641
        %v646 = vcvt.s32.f32 %v642
        %v647 = vcvt.s32.f32 %v643
        %v648 = vcvt.s32.f32 %v644
        %v649 = vshra.s32 %v637, 1
        %v650 = vshra.s32 %v638, 1
        %v651 = vshra.s32 %v639, 1
        %v652 = vshra.s32 %v640, 1
        %v653 = vand.u32 %v649, 1
        %v654 = vand.u32 %v650, 1
        %v655 = vand.u32 %v651, 1
        %v656 = vand.u32 %v652, 1
        %v657 = vcvt.s32.f32 %v653
        %v658 = vcvt.s32.f32 %v654
        %v659 = vcvt.s32.f32 %v655
        %v660 = vcvt.s32.f32 %v656
        %v661 = vshra.s32 %v637, 2
        %v662 = vshra.s32 %v638, 2
        %v663 = vshra.s32 %v639, 2
        %v664 = vshra.s32 %v640, 2
        %v665 = vand.u32 %v661, 1
        %v666 = vand.u32 %v662, 1
        %v667 = vand.u32 %v663, 1
        %v668 = vand.u32 %v664, 1
        %v669 = vcvt.s32.f32 %v665
        %v670 = vcvt.s32.f32 %v666
        %v671 = vcvt.s32.f32 %v667
        %v672 = vcvt.s32.f32 %v668
        %v673 = vmul.f32 %v645, 0.5
        %v674 = vmul.f32 %v646, 0.5
        %v675 = vmul.f32 %v647, 0.5
        %v676 = vmul.f32 %v648, 0.5
        %v677 = vsub.f32 1.0, %v673
        %v678 = vsub.f32 1.0, %v674
        %v679 = vsub.f32 1.0, %v675
        %v680 = vsub.f32 1.0, %v676
        %v681 = vmul.f32 %v657, 0.75
        %v682 = vmul.f32 %v658, 0.75
        %v683 = vmul.f32 %v659, 0.75
        %v684 = vmul.f32 %v660, 0.75
        %v685 = vsub.f32 1.0, %v681
        %v686 = vsub.f32 1.0, %v682
        %v687 = vsub.f32 1.0, %v683
        %v688 = vsub.f32 1.0, %v684
        %v689 = vmul.f32 %v677, %v685
        %v690 = vmul.f32 %v678, %v686
        %v691 = vmul.f32 %v679, %v687
        %v692 = vmul.f32 %v680, %v688
        %v693 = vmul.f32 %v669, 0.9375
        %v694 = vmul.f32 %v670, 0.9375
        %v695 = vmul.f32 %v671, 0.9375
        %v696 = vmul.f32 %v672, 0.9375
        %v697 = vsub.f32 1.0, %v693
        %v698 = vsub.f32 1.0, %v694
        %v699 = vsub.f32 1.0, %v695
        %v700 = vsub.f32 1.0, %v696
        %v701 = vmul.f32 %v689, %v697
        %v702 = vmul.f32 %v690, %v698
        %v703 = vmul.f32 %v691, %v699
        %v704 = vmul.f32 %v692, %v700
        %v705 = vadd.s32 %v222, 8
        %v706 = vadd.s32 %v222, 16
        %v707 = vadd.s32 %v222, 24
        %v708 = vadd.s32 %v222, 32
        %v709 = vadd.s32 %v222, 40
        %v710 = vadd.s32 %v222, 48
        %v711 = vadd.s32 %v222, 56
        %v712 = vadd.s32 %v222, 64
        %v713 = vadd.s32 %v222, 72
        %v714 = vadd.s32 %v222, 80
        %v715 = vadd.s32 %v222, 88
        %v716 = vadd.s32 %v222, 96
        %v717 = vadd.s32 %v222, 104
        %v718 = vadd.s32 %v222, 112
        %v719 = vadd.s32 %v222, 120
        %s720 = scalar_lea.vmem %s4, %s38
        %v721 = vld [vmem:[%s720] sm:$0x1]
        %v722 = vlaneseq
        %v723 = vshrl.u32 %v722, 7
        %v724 = vsub.s32 0, %v723
        %v725 = vrot.slane %v633, %v724
        %v726 = vlaneseq
        %v727 = vshrl.u32 %v726, 7
        %v728 = vsub.s32 0, %v727
        %v729 = vrot.slane %v634, %v728
        %v730 = vlaneseq
        %v731 = vshrl.u32 %v730, 7
        %v732 = vsub.s32 0, %v731
        %v733 = vrot.slane %v635, %v732
        %v734 = vlaneseq
        %v735 = vshrl.u32 %v734, 7
        %v736 = vsub.s32 0, %v735
        %v737 = vrot.slane %v636, %v736
        %vm738 = vcmp.eq.s32.totalorder %v222, %v725
        %vm739 = vcmp.eq.s32.totalorder %v222, %v729
        %vm740 = vcmp.eq.s32.totalorder %v222, %v733
        %vm741 = vcmp.eq.s32.totalorder %v222, %v737
        %vm742 = vcmp.eq.s32.totalorder %v705, %v725
        %vm743 = vcmp.eq.s32.totalorder %v705, %v729
        %vm744 = vcmp.eq.s32.totalorder %v705, %v733
        %vm745 = vcmp.eq.s32.totalorder %v705, %v737
        %vm746 = vcmp.eq.s32.totalorder %v706, %v725
        %vm747 = vcmp.eq.s32.totalorder %v706, %v729
        %vm748 = vcmp.eq.s32.totalorder %v706, %v733
        %vm749 = vcmp.eq.s32.totalorder %v706, %v737
        %vm750 = vcmp.eq.s32.totalorder %v707, %v725
        %vm751 = vcmp.eq.s32.totalorder %v707, %v729
        %vm752 = vcmp.eq.s32.totalorder %v707, %v733
        %vm753 = vcmp.eq.s32.totalorder %v707, %v737
        %vm754 = vcmp.eq.s32.totalorder %v708, %v725
        %vm755 = vcmp.eq.s32.totalorder %v708, %v729
        %vm756 = vcmp.eq.s32.totalorder %v708, %v733
        %vm757 = vcmp.eq.s32.totalorder %v708, %v737
        %vm758 = vcmp.eq.s32.totalorder %v709, %v725
        %vm759 = vcmp.eq.s32.totalorder %v709, %v729
        %vm760 = vcmp.eq.s32.totalorder %v709, %v733
        %vm761 = vcmp.eq.s32.totalorder %v709, %v737
        %vm762 = vcmp.eq.s32.totalorder %v710, %v725
        %vm763 = vcmp.eq.s32.totalorder %v710, %v729
        %vm764 = vcmp.eq.s32.totalorder %v710, %v733
        %vm765 = vcmp.eq.s32.totalorder %v710, %v737
        %vm766 = vcmp.eq.s32.totalorder %v711, %v725
        %vm767 = vcmp.eq.s32.totalorder %v711, %v729
        %vm768 = vcmp.eq.s32.totalorder %v711, %v733
        %vm769 = vcmp.eq.s32.totalorder %v711, %v737
        %vm770 = vcmp.eq.s32.totalorder %v712, %v725
        %vm771 = vcmp.eq.s32.totalorder %v712, %v729
        %vm772 = vcmp.eq.s32.totalorder %v712, %v733
        %vm773 = vcmp.eq.s32.totalorder %v712, %v737
        %vm774 = vcmp.eq.s32.totalorder %v713, %v725
        %vm775 = vcmp.eq.s32.totalorder %v713, %v729
        %vm776 = vcmp.eq.s32.totalorder %v713, %v733
        %vm777 = vcmp.eq.s32.totalorder %v713, %v737
        %vm778 = vcmp.eq.s32.totalorder %v714, %v725
        %vm779 = vcmp.eq.s32.totalorder %v714, %v729
        %vm780 = vcmp.eq.s32.totalorder %v714, %v733
        %vm781 = vcmp.eq.s32.totalorder %v714, %v737
        %vm782 = vcmp.eq.s32.totalorder %v715, %v725
        %vm783 = vcmp.eq.s32.totalorder %v715, %v729
        %vm784 = vcmp.eq.s32.totalorder %v715, %v733
        %vm785 = vcmp.eq.s32.totalorder %v715, %v737
        %vm786 = vcmp.eq.s32.totalorder %v716, %v725
        %vm787 = vcmp.eq.s32.totalorder %v716, %v729
        %vm788 = vcmp.eq.s32.totalorder %v716, %v733
        %vm789 = vcmp.eq.s32.totalorder %v716, %v737
        %vm790 = vcmp.eq.s32.totalorder %v717, %v725
        %vm791 = vcmp.eq.s32.totalorder %v717, %v729
        %vm792 = vcmp.eq.s32.totalorder %v717, %v733
        %vm793 = vcmp.eq.s32.totalorder %v717, %v737
        %vm794 = vcmp.eq.s32.totalorder %v718, %v725
        %vm795 = vcmp.eq.s32.totalorder %v718, %v729
        %vm796 = vcmp.eq.s32.totalorder %v718, %v733
        %vm797 = vcmp.eq.s32.totalorder %v718, %v737
        %vm798 = vcmp.eq.s32.totalorder %v719, %v725
        %vm799 = vcmp.eq.s32.totalorder %v719, %v729
        %vm800 = vcmp.eq.s32.totalorder %v719, %v733
        %vm801 = vcmp.eq.s32.totalorder %v719, %v737
        %v802 = vsel %vm738, 1.0, 0.0
        %v803 = vsel %vm739, 1.0, 0.0
        %v804 = vsel %vm740, 1.0, 0.0
        %v805 = vsel %vm741, 1.0, 0.0
        %v806 = vsel %vm742, 1.0, 0.0
        %v807 = vsel %vm743, 1.0, 0.0
        %v808 = vsel %vm744, 1.0, 0.0
        %v809 = vsel %vm745, 1.0, 0.0
        %v810 = vsel %vm746, 1.0, 0.0
        %v811 = vsel %vm747, 1.0, 0.0
        %v812 = vsel %vm748, 1.0, 0.0
        %v813 = vsel %vm749, 1.0, 0.0
        %v814 = vsel %vm750, 1.0, 0.0
        %v815 = vsel %vm751, 1.0, 0.0
        %v816 = vsel %vm752, 1.0, 0.0
        %v817 = vsel %vm753, 1.0, 0.0
        %v818 = vsel %vm754, 1.0, 0.0
        %v819 = vsel %vm755, 1.0, 0.0
        %v820 = vsel %vm756, 1.0, 0.0
        %v821 = vsel %vm757, 1.0, 0.0
        %v822 = vsel %vm758, 1.0, 0.0
        %v823 = vsel %vm759, 1.0, 0.0
        %v824 = vsel %vm760, 1.0, 0.0
        %v825 = vsel %vm761, 1.0, 0.0
        %v826 = vsel %vm762, 1.0, 0.0
        %v827 = vsel %vm763, 1.0, 0.0
        %v828 = vsel %vm764, 1.0, 0.0
        %v829 = vsel %vm765, 1.0, 0.0
        %v830 = vsel %vm766, 1.0, 0.0
        %v831 = vsel %vm767, 1.0, 0.0
        %v832 = vsel %vm768, 1.0, 0.0
        %v833 = vsel %vm769, 1.0, 0.0
        %v834 = vsel %vm770, 1.0, 0.0
        %v835 = vsel %vm771, 1.0, 0.0
        %v836 = vsel %vm772, 1.0, 0.0
        %v837 = vsel %vm773, 1.0, 0.0
        %v838 = vsel %vm774, 1.0, 0.0
        %v839 = vsel %vm775, 1.0, 0.0
        %v840 = vsel %vm776, 1.0, 0.0
        %v841 = vsel %vm777, 1.0, 0.0
        %v842 = vsel %vm778, 1.0, 0.0
        %v843 = vsel %vm779, 1.0, 0.0
        %v844 = vsel %vm780, 1.0, 0.0
        %v845 = vsel %vm781, 1.0, 0.0
        %v846 = vsel %vm782, 1.0, 0.0
        %v847 = vsel %vm783, 1.0, 0.0
        %v848 = vsel %vm784, 1.0, 0.0
        %v849 = vsel %vm785, 1.0, 0.0
        %v850 = vsel %vm786, 1.0, 0.0
        %v851 = vsel %vm787, 1.0, 0.0
        %v852 = vsel %vm788, 1.0, 0.0
        %v853 = vsel %vm789, 1.0, 0.0
        %v854 = vsel %vm790, 1.0, 0.0
        %v855 = vsel %vm791, 1.0, 0.0
        %v856 = vsel %vm792, 1.0, 0.0
        %v857 = vsel %vm793, 1.0, 0.0
        %v858 = vsel %vm794, 1.0, 0.0
        %v859 = vsel %vm795, 1.0, 0.0
        %v860 = vsel %vm796, 1.0, 0.0
        %v861 = vsel %vm797, 1.0, 0.0
        %v862 = vsel %vm798, 1.0, 0.0
        %v863 = vsel %vm799, 1.0, 0.0
        %v864 = vsel %vm800, 1.0, 0.0
        %v865 = vsel %vm801, 1.0, 0.0
        %v866 = vpack.c.bf16 %v806, %v802
        %v867 = vpack.c.bf16 %v807, %v803
        %v868 = vpack.c.bf16 %v808, %v804
        %v869 = vpack.c.bf16 %v809, %v805
        %v870 = vpack.c.bf16 %v814, %v810
        %v871 = vpack.c.bf16 %v815, %v811
        %v872 = vpack.c.bf16 %v816, %v812
        %v873 = vpack.c.bf16 %v817, %v813
        %v874 = vpack.c.bf16 %v822, %v818
        %v875 = vpack.c.bf16 %v823, %v819
        %v876 = vpack.c.bf16 %v824, %v820
        %v877 = vpack.c.bf16 %v825, %v821
        %v878 = vpack.c.bf16 %v830, %v826
        %v879 = vpack.c.bf16 %v831, %v827
        %v880 = vpack.c.bf16 %v832, %v828
        %v881 = vpack.c.bf16 %v833, %v829
        %v882 = vpack.c.bf16 %v838, %v834
        %v883 = vpack.c.bf16 %v839, %v835
        %v884 = vpack.c.bf16 %v840, %v836
        %v885 = vpack.c.bf16 %v841, %v837
        %v886 = vpack.c.bf16 %v846, %v842
        %v887 = vpack.c.bf16 %v847, %v843
        %v888 = vpack.c.bf16 %v848, %v844
        %v889 = vpack.c.bf16 %v849, %v845
        %v890 = vpack.c.bf16 %v854, %v850
        %v891 = vpack.c.bf16 %v855, %v851
        %v892 = vpack.c.bf16 %v856, %v852
        %v893 = vpack.c.bf16 %v857, %v853
        %v894 = vpack.c.bf16 %v862, %v858
        %v895 = vpack.c.bf16 %v863, %v859
        %v896 = vpack.c.bf16 %v864, %v860
        %v897 = vpack.c.bf16 %v865, %v861
        %898 = vmatprep.subr.bf16.mxu0 %v867
        %899 = vmatpush1.bf16.msra.mxu0 %v866
        %900 = vmatprep.subr.bf16.mxu0 %v871
        %901 = vmatpush1.bf16.msra.mxu0 %v870
        %902 = vmatprep.subr.bf16.mxu0 %v875
        %903 = vmatpush1.bf16.msra.mxu0 %v874
        %904 = vmatprep.subr.bf16.mxu0 %v879
        %905 = vmatpush1.bf16.msra.mxu0 %v878
        %906 = vmatprep.subr.bf16.mxu0 %v883
        %907 = vmatpush1.bf16.msra.mxu0 %v882
        %908 = vmatprep.subr.bf16.mxu0 %v887
        %909 = vmatpush1.bf16.msra.mxu0 %v886
        %910 = vmatprep.subr.bf16.mxu0 %v891
        %911 = vmatpush1.bf16.msra.mxu0 %v890
        %912 = vmatprep.subr.bf16.mxu0 %v895
        %913 = vmatpush1.bf16.msra.mxu0 %v894
        %914 = vmatprep.subr.bf16.mxu0 0
        %915 = vmatpush1.bf16.msra.mxu0 0
        %916 = vmatprep.subr.bf16.mxu0 0
        %917 = vmatpush1.bf16.msra.mxu0 0
        %918 = vmatprep.subr.bf16.mxu0 0
        %919 = vmatpush1.bf16.msra.mxu0 0
        %920 = vmatprep.subr.bf16.mxu0 0
        %921 = vmatpush1.bf16.msra.mxu0 0
        %922 = vmatprep.subr.bf16.mxu0 0
        %923 = vmatpush1.bf16.msra.mxu0 0
        %924 = vmatprep.subr.bf16.mxu0 0
        %925 = vmatpush1.bf16.msra.mxu0 0
        %926 = vmatprep.subr.bf16.mxu0 0
        %927 = vmatpush1.bf16.msra.mxu0 0
        %928 = vmatprep.subr.bf16.mxu0 0
        %929 = vmatpush1.bf16.msra.mxu0 0
        %930 = vmatprep.mubr.bf16.mxu0 0
        %931 = vmatmul.mubr.bf16.gmra.mrb[0].mxu0 %v721
        %v932 = vpop.f32.mrb[0].mxu0
        %v933 = vadd.f32 0.0, %v932
        %v934 = vpop.f32.mrb[0].mxu0
        %v935 = vadd.f32 0.0, %v934
        %v936 = vpop.f32.mrb[0].mxu0
        %v937 = vpop.f32.mrb[0].mxu0
        %938 = vdwg.mxu0
        %939 = vmatprep.subr.bf16.mxu0 %v869
        %940 = vmatpush1.bf16.msra.mxu0 %v868
        %941 = vmatprep.subr.bf16.mxu0 %v873
        %942 = vmatpush1.bf16.msra.mxu0 %v872
        %943 = vmatprep.subr.bf16.mxu0 %v877
        %944 = vmatpush1.bf16.msra.mxu0 %v876
        %945 = vmatprep.subr.bf16.mxu0 %v881
        %946 = vmatpush1.bf16.msra.mxu0 %v880
        %947 = vmatprep.subr.bf16.mxu0 %v885
        %948 = vmatpush1.bf16.msra.mxu0 %v884
        %949 = vmatprep.subr.bf16.mxu0 %v889
        %950 = vmatpush1.bf16.msra.mxu0 %v888
        %951 = vmatprep.subr.bf16.mxu0 %v893
        %952 = vmatpush1.bf16.msra.mxu0 %v892
        %953 = vmatprep.subr.bf16.mxu0 %v897
        %954 = vmatpush1.bf16.msra.mxu0 %v896
        %955 = vmatprep.subr.bf16.mxu0 0
        %956 = vmatpush1.bf16.msra.mxu0 0
        %957 = vmatprep.subr.bf16.mxu0 0
        %958 = vmatpush1.bf16.msra.mxu0 0
        %959 = vmatprep.subr.bf16.mxu0 0
        %960 = vmatpush1.bf16.msra.mxu0 0
        %961 = vmatprep.subr.bf16.mxu0 0
        %962 = vmatpush1.bf16.msra.mxu0 0
        %963 = vmatprep.subr.bf16.mxu0 0
        %964 = vmatpush1.bf16.msra.mxu0 0
        %965 = vmatprep.subr.bf16.mxu0 0
        %966 = vmatpush1.bf16.msra.mxu0 0
        %967 = vmatprep.subr.bf16.mxu0 0
        %968 = vmatpush1.bf16.msra.mxu0 0
        %969 = vmatprep.subr.bf16.mxu0 0
        %970 = vmatpush1.bf16.msra.mxu0 0
        %971 = vmatprep.mubr.bf16.mxu0 0
        %972 = vmatmul.mubr.bf16.gmra.mrb[0].mxu0 %v721
        %v973 = vpop.f32.mrb[0].mxu0
        %v974 = vadd.f32 0.0, %v973
        %v975 = vpop.f32.mrb[0].mxu0
        %v976 = vadd.f32 0.0, %v975
        %v977 = vpop.f32.mrb[0].mxu0
        %v978 = vpop.f32.mrb[0].mxu0
        %979 = vdwg.mxu0
        %v980 = vlaneseq
        %v981 = vshrl.u32 %v980, 7
        %v982 = vsub.s32 0, %v981
        %v983 = vrot.slane %v701, %v982
        %v984 = vlaneseq
        %v985 = vshrl.u32 %v984, 7
        %v986 = vsub.s32 0, %v985
        %v987 = vrot.slane %v702, %v986
        %v988 = vlaneseq
        %v989 = vshrl.u32 %v988, 7
        %v990 = vsub.s32 0, %v989
        %v991 = vrot.slane %v703, %v990
        %v992 = vlaneseq
        %v993 = vshrl.u32 %v992, 7
        %v994 = vsub.s32 0, %v993
        %v995 = vrot.slane %v704, %v994
        %v996 = vmul.f32 %v933, %v983
        %v997 = vmul.f32 %v935, %v987
        %v998 = vmul.f32 %v974, %v991
        %v999 = vmul.f32 %v976, %v995
        %v1000 = vfloor.f32 %v996
        %v1001 = vfloor.f32 %v997
        %v1002 = vfloor.f32 %v998
        %v1003 = vfloor.f32 %v999
        %v1004 = vmul.f32 %v1000, 0.5
        %v1005 = vmul.f32 %v1001, 0.5
        %v1006 = vmul.f32 %v1002, 0.5
        %v1007 = vmul.f32 %v1003, 0.5
        %v1008 = vfloor.f32 %v1004
        %v1009 = vfloor.f32 %v1005
        %v1010 = vfloor.f32 %v1006
        %v1011 = vfloor.f32 %v1007
        %v1012 = vmul.f32 %v1008, 2.0
        %v1013 = vmul.f32 %v1009, 2.0
        %v1014 = vmul.f32 %v1010, 2.0
        %v1015 = vmul.f32 %v1011, 2.0
        %v1016 = vsub.f32 %v1000, %v1012
        %v1017 = vsub.f32 %v1001, %v1013
        %v1018 = vsub.f32 %v1002, %v1014
        %v1019 = vsub.f32 %v1003, %v1015
        %v1020 = vmul.f32 %v1016, 2.0
        %v1021 = vmul.f32 %v1017, 2.0
        %v1022 = vmul.f32 %v1018, 2.0
        %v1023 = vmul.f32 %v1019, 2.0
        %v1024 = vsub.f32 %v1020, 1.0
        %v1025 = vsub.f32 %v1021, 1.0
        %v1026 = vsub.f32 %v1022, 1.0
        %v1027 = vsub.f32 %v1023, 1.0
        %v1028 = vlaneseq
        %v1029 = vshrl.u32 %v1028, 7
        %v1030 = vsub.s32 0, %v1029
        %v1031 = vrot.slane %v601, %v1030
        %v1032 = vlaneseq
        %v1033 = vshrl.u32 %v1032, 7
        %v1034 = vsub.s32 0, %v1033
        %v1035 = vrot.slane %v602, %v1034
        %v1036 = vlaneseq
        %v1037 = vshrl.u32 %v1036, 7
        %v1038 = vsub.s32 0, %v1037
        %v1039 = vrot.slane %v603, %v1038
        %v1040 = vlaneseq
        %v1041 = vshrl.u32 %v1040, 7
        %v1042 = vsub.s32 0, %v1041
        %v1043 = vrot.slane %v604, %v1042
        %v1044 = vmul.f32 %v1031, %v1024
        %v1045 = vmul.f32 %v1035, %v1025
        %v1046 = vmul.f32 %v1039, %v1026
        %v1047 = vmul.f32 %v1043, %v1027
        %v1048 = vadd.f32 %v1044, 0.0
        %v1049 = vadd.f32 %v1045, 0.0
        %v1050 = vadd.f32 %v1046, 0.0
        %v1051 = vadd.f32 %v1047, 0.0
        %v1052 = vlaneseq
        %v1053 = vshrl.u32 %v1052, 7
        %v1054 = vsub.s32 1, %v1053
        %v1055 = vrot.slane %v633, %v1054
        %v1056 = vlaneseq
        %v1057 = vshrl.u32 %v1056, 7
        %v1058 = vsub.s32 1, %v1057
        %v1059 = vrot.slane %v634, %v1058
        %v1060 = vlaneseq
        %v1061 = vshrl.u32 %v1060, 7
        %v1062 = vsub.s32 1, %v1061
        %v1063 = vrot.slane %v635, %v1062
        %v1064 = vlaneseq
        %v1065 = vshrl.u32 %v1064, 7
        %v1066 = vsub.s32 1, %v1065
        %v1067 = vrot.slane %v636, %v1066
        %vm1068 = vcmp.eq.s32.totalorder %v222, %v1055
        %vm1069 = vcmp.eq.s32.totalorder %v222, %v1059
        %vm1070 = vcmp.eq.s32.totalorder %v222, %v1063
        %vm1071 = vcmp.eq.s32.totalorder %v222, %v1067
        %vm1072 = vcmp.eq.s32.totalorder %v705, %v1055
        %vm1073 = vcmp.eq.s32.totalorder %v705, %v1059
        %vm1074 = vcmp.eq.s32.totalorder %v705, %v1063
        %vm1075 = vcmp.eq.s32.totalorder %v705, %v1067
        %vm1076 = vcmp.eq.s32.totalorder %v706, %v1055
        %vm1077 = vcmp.eq.s32.totalorder %v706, %v1059
        %vm1078 = vcmp.eq.s32.totalorder %v706, %v1063
        %vm1079 = vcmp.eq.s32.totalorder %v706, %v1067
        %vm1080 = vcmp.eq.s32.totalorder %v707, %v1055
        %vm1081 = vcmp.eq.s32.totalorder %v707, %v1059
        %vm1082 = vcmp.eq.s32.totalorder %v707, %v1063
        %vm1083 = vcmp.eq.s32.totalorder %v707, %v1067
        %vm1084 = vcmp.eq.s32.totalorder %v708, %v1055
        %vm1085 = vcmp.eq.s32.totalorder %v708, %v1059
        %vm1086 = vcmp.eq.s32.totalorder %v708, %v1063
        %vm1087 = vcmp.eq.s32.totalorder %v708, %v1067
        %vm1088 = vcmp.eq.s32.totalorder %v709, %v1055
        %vm1089 = vcmp.eq.s32.totalorder %v709, %v1059
        %vm1090 = vcmp.eq.s32.totalorder %v709, %v1063
        %vm1091 = vcmp.eq.s32.totalorder %v709, %v1067
        %vm1092 = vcmp.eq.s32.totalorder %v710, %v1055
        %vm1093 = vcmp.eq.s32.totalorder %v710, %v1059
        %vm1094 = vcmp.eq.s32.totalorder %v710, %v1063
        %vm1095 = vcmp.eq.s32.totalorder %v710, %v1067
        %vm1096 = vcmp.eq.s32.totalorder %v711, %v1055
        %vm1097 = vcmp.eq.s32.totalorder %v711, %v1059
        %vm1098 = vcmp.eq.s32.totalorder %v711, %v1063
        %vm1099 = vcmp.eq.s32.totalorder %v711, %v1067
        %vm1100 = vcmp.eq.s32.totalorder %v712, %v1055
        %vm1101 = vcmp.eq.s32.totalorder %v712, %v1059
        %vm1102 = vcmp.eq.s32.totalorder %v712, %v1063
        %vm1103 = vcmp.eq.s32.totalorder %v712, %v1067
        %vm1104 = vcmp.eq.s32.totalorder %v713, %v1055
        %vm1105 = vcmp.eq.s32.totalorder %v713, %v1059
        %vm1106 = vcmp.eq.s32.totalorder %v713, %v1063
        %vm1107 = vcmp.eq.s32.totalorder %v713, %v1067
        %vm1108 = vcmp.eq.s32.totalorder %v714, %v1055
        %vm1109 = vcmp.eq.s32.totalorder %v714, %v1059
        %vm1110 = vcmp.eq.s32.totalorder %v714, %v1063
        %vm1111 = vcmp.eq.s32.totalorder %v714, %v1067
        %vm1112 = vcmp.eq.s32.totalorder %v715, %v1055
        %vm1113 = vcmp.eq.s32.totalorder %v715, %v1059
        %vm1114 = vcmp.eq.s32.totalorder %v715, %v1063
        %vm1115 = vcmp.eq.s32.totalorder %v715, %v1067
        %vm1116 = vcmp.eq.s32.totalorder %v716, %v1055
        %vm1117 = vcmp.eq.s32.totalorder %v716, %v1059
        %vm1118 = vcmp.eq.s32.totalorder %v716, %v1063
        %vm1119 = vcmp.eq.s32.totalorder %v716, %v1067
        %vm1120 = vcmp.eq.s32.totalorder %v717, %v1055
        %vm1121 = vcmp.eq.s32.totalorder %v717, %v1059
        %vm1122 = vcmp.eq.s32.totalorder %v717, %v1063
        %vm1123 = vcmp.eq.s32.totalorder %v717, %v1067
        %vm1124 = vcmp.eq.s32.totalorder %v718, %v1055
        %vm1125 = vcmp.eq.s32.totalorder %v718, %v1059
        %vm1126 = vcmp.eq.s32.totalorder %v718, %v1063
        %vm1127 = vcmp.eq.s32.totalorder %v718, %v1067
        %vm1128 = vcmp.eq.s32.totalorder %v719, %v1055
        %vm1129 = vcmp.eq.s32.totalorder %v719, %v1059
        %vm1130 = vcmp.eq.s32.totalorder %v719, %v1063
        %vm1131 = vcmp.eq.s32.totalorder %v719, %v1067
        %v1132 = vsel %vm1068, 1.0, 0.0
        %v1133 = vsel %vm1069, 1.0, 0.0
        %v1134 = vsel %vm1070, 1.0, 0.0
        %v1135 = vsel %vm1071, 1.0, 0.0
        %v1136 = vsel %vm1072, 1.0, 0.0
        %v1137 = vsel %vm1073, 1.0, 0.0
        %v1138 = vsel %vm1074, 1.0, 0.0
        %v1139 = vsel %vm1075, 1.0, 0.0
        %v1140 = vsel %vm1076, 1.0, 0.0
        %v1141 = vsel %vm1077, 1.0, 0.0
        %v1142 = vsel %vm1078, 1.0, 0.0
        %v1143 = vsel %vm1079, 1.0, 0.0
        %v1144 = vsel %vm1080, 1.0, 0.0
        %v1145 = vsel %vm1081, 1.0, 0.0
        %v1146 = vsel %vm1082, 1.0, 0.0
        %v1147 = vsel %vm1083, 1.0, 0.0
        %v1148 = vsel %vm1084, 1.0, 0.0
        %v1149 = vsel %vm1085, 1.0, 0.0
        %v1150 = vsel %vm1086, 1.0, 0.0
        %v1151 = vsel %vm1087, 1.0, 0.0
        %v1152 = vsel %vm1088, 1.0, 0.0
        %v1153 = vsel %vm1089, 1.0, 0.0
        %v1154 = vsel %vm1090, 1.0, 0.0
        %v1155 = vsel %vm1091, 1.0, 0.0
        %v1156 = vsel %vm1092, 1.0, 0.0
        %v1157 = vsel %vm1093, 1.0, 0.0
        %v1158 = vsel %vm1094, 1.0, 0.0
        %v1159 = vsel %vm1095, 1.0, 0.0
        %v1160 = vsel %vm1096, 1.0, 0.0
        %v1161 = vsel %vm1097, 1.0, 0.0
        %v1162 = vsel %vm1098, 1.0, 0.0
        %v1163 = vsel %vm1099, 1.0, 0.0
        %v1164 = vsel %vm1100, 1.0, 0.0
        %v1165 = vsel %vm1101, 1.0, 0.0
        %v1166 = vsel %vm1102, 1.0, 0.0
        %v1167 = vsel %vm1103, 1.0, 0.0
        %v1168 = vsel %vm1104, 1.0, 0.0
        %v1169 = vsel %vm1105, 1.0, 0.0
        %v1170 = vsel %vm1106, 1.0, 0.0
        %v1171 = vsel %vm1107, 1.0, 0.0
        %v1172 = vsel %vm1108, 1.0, 0.0
        %v1173 = vsel %vm1109, 1.0, 0.0
        %v1174 = vsel %vm1110, 1.0, 0.0
        %v1175 = vsel %vm1111, 1.0, 0.0
        %v1176 = vsel %vm1112, 1.0, 0.0
        %v1177 = vsel %vm1113, 1.0, 0.0
        %v1178 = vsel %vm1114, 1.0, 0.0
        %v1179 = vsel %vm1115, 1.0, 0.0
        %v1180 = vsel %vm1116, 1.0, 0.0
        %v1181 = vsel %vm1117, 1.0, 0.0
        %v1182 = vsel %vm1118, 1.0, 0.0
        %v1183 = vsel %vm1119, 1.0, 0.0
        %v1184 = vsel %vm1120, 1.0, 0.0
        %v1185 = vsel %vm1121, 1.0, 0.0
        %v1186 = vsel %vm1122, 1.0, 0.0
        %v1187 = vsel %vm1123, 1.0, 0.0
        %v1188 = vsel %vm1124, 1.0, 0.0
        %v1189 = vsel %vm1125, 1.0, 0.0
        %v1190 = vsel %vm1126, 1.0, 0.0
        %v1191 = vsel %vm1127, 1.0, 0.0
        %v1192 = vsel %vm1128, 1.0, 0.0
        %v1193 = vsel %vm1129, 1.0, 0.0
        %v1194 = vsel %vm1130, 1.0, 0.0
        %v1195 = vsel %vm1131, 1.0, 0.0
        %v1196 = vpack.c.bf16 %v1136, %v1132
        %v1197 = vpack.c.bf16 %v1137, %v1133
        %v1198 = vpack.c.bf16 %v1138, %v1134
        %v1199 = vpack.c.bf16 %v1139, %v1135
        %v1200 = vpack.c.bf16 %v1144, %v1140
        %v1201 = vpack.c.bf16 %v1145, %v1141
        %v1202 = vpack.c.bf16 %v1146, %v1142
        %v1203 = vpack.c.bf16 %v1147, %v1143
        %v1204 = vpack.c.bf16 %v1152, %v1148
        %v1205 = vpack.c.bf16 %v1153, %v1149
        %v1206 = vpack.c.bf16 %v1154, %v1150
        %v1207 = vpack.c.bf16 %v1155, %v1151
        %v1208 = vpack.c.bf16 %v1160, %v1156
        %v1209 = vpack.c.bf16 %v1161, %v1157
        %v1210 = vpack.c.bf16 %v1162, %v1158
        %v1211 = vpack.c.bf16 %v1163, %v1159
        %v1212 = vpack.c.bf16 %v1168, %v1164
        %v1213 = vpack.c.bf16 %v1169, %v1165
        %v1214 = vpack.c.bf16 %v1170, %v1166
        %v1215 = vpack.c.bf16 %v1171, %v1167
        %v1216 = vpack.c.bf16 %v1176, %v1172
        %v1217 = vpack.c.bf16 %v1177, %v1173
        %v1218 = vpack.c.bf16 %v1178, %v1174
        %v1219 = vpack.c.bf16 %v1179, %v1175
        %v1220 = vpack.c.bf16 %v1184, %v1180
        %v1221 = vpack.c.bf16 %v1185, %v1181
        %v1222 = vpack.c.bf16 %v1186, %v1182
        %v1223 = vpack.c.bf16 %v1187, %v1183
        %v1224 = vpack.c.bf16 %v1192, %v1188
        %v1225 = vpack.c.bf16 %v1193, %v1189
        %v1226 = vpack.c.bf16 %v1194, %v1190
        %v1227 = vpack.c.bf16 %v1195, %v1191
        %1228 = vmatprep.subr.bf16.mxu0 %v1197
        %1229 = vmatpush1.bf16.msra.mxu0 %v1196
        %1230 = vmatprep.subr.bf16.mxu0 %v1201
        %1231 = vmatpush1.bf16.msra.mxu0 %v1200
        %1232 = vmatprep.subr.bf16.mxu0 %v1205
        %1233 = vmatpush1.bf16.msra.mxu0 %v1204
        %1234 = vmatprep.subr.bf16.mxu0 %v1209
        %1235 = vmatpush1.bf16.msra.mxu0 %v1208
        %1236 = vmatprep.subr.bf16.mxu0 %v1213
        %1237 = vmatpush1.bf16.msra.mxu0 %v1212
        %1238 = vmatprep.subr.bf16.mxu0 %v1217
        %1239 = vmatpush1.bf16.msra.mxu0 %v1216
        %1240 = vmatprep.subr.bf16.mxu0 %v1221
        %1241 = vmatpush1.bf16.msra.mxu0 %v1220
        %1242 = vmatprep.subr.bf16.mxu0 %v1225
        %1243 = vmatpush1.bf16.msra.mxu0 %v1224
        %1244 = vmatprep.subr.bf16.mxu0 0
        %1245 = vmatpush1.bf16.msra.mxu0 0
        %1246 = vmatprep.subr.bf16.mxu0 0
        %1247 = vmatpush1.bf16.msra.mxu0 0
        %1248 = vmatprep.subr.bf16.mxu0 0
        %1249 = vmatpush1.bf16.msra.mxu0 0
        %1250 = vmatprep.subr.bf16.mxu0 0
        %1251 = vmatpush1.bf16.msra.mxu0 0
        %1252 = vmatprep.subr.bf16.mxu0 0
        %1253 = vmatpush1.bf16.msra.mxu0 0
        %1254 = vmatprep.subr.bf16.mxu0 0
        %1255 = vmatpush1.bf16.msra.mxu0 0
        %1256 = vmatprep.subr.bf16.mxu0 0
        %1257 = vmatpush1.bf16.msra.mxu0 0
        %1258 = vmatprep.subr.bf16.mxu0 0
        %1259 = vmatpush1.bf16.msra.mxu0 0
        %1260 = vmatprep.mubr.bf16.mxu0 0
        %1261 = vmatmul.mubr.bf16.gmra.mrb[0].mxu0 %v721
        %v1262 = vpop.f32.mrb[0].mxu0
        %v1263 = vadd.f32 0.0, %v1262
        %v1264 = vpop.f32.mrb[0].mxu0
        %v1265 = vadd.f32 0.0, %v1264
        %v1266 = vpop.f32.mrb[0].mxu0
        %v1267 = vpop.f32.mrb[0].mxu0
        %1268 = vdwg.mxu0
        %1269 = vmatprep.subr.bf16.mxu0 %v1199
        %1270 = vmatpush1.bf16.msra.mxu0 %v1198
        %1271 = vmatprep.subr.bf16.mxu0 %v1203
        %1272 = vmatpush1.bf16.msra.mxu0 %v1202
        %1273 = vmatprep.subr.bf16.mxu0 %v1207
        %1274 = vmatpush1.bf16.msra.mxu0 %v1206
        %1275 = vmatprep.subr.bf16.mxu0 %v1211
        %1276 = vmatpush1.bf16.msra.mxu0 %v1210
        %1277 = vmatprep.subr.bf16.mxu0 %v1215
        %1278 = vmatpush1.bf16.msra.mxu0 %v1214
        %1279 = vmatprep.subr.bf16.mxu0 %v1219
        %1280 = vmatpush1.bf16.msra.mxu0 %v1218
        %1281 = vmatprep.subr.bf16.mxu0 %v1223
        %1282 = vmatpush1.bf16.msra.mxu0 %v1222
        %1283 = vmatprep.subr.bf16.mxu0 %v1227
        %1284 = vmatpush1.bf16.msra.mxu0 %v1226
        %1285 = vmatprep.subr.bf16.mxu0 0
        %1286 = vmatpush1.bf16.msra.mxu0 0
        %1287 = vmatprep.subr.bf16.mxu0 0
        %1288 = vmatpush1.bf16.msra.mxu0 0
        %1289 = vmatprep.subr.bf16.mxu0 0
        %1290 = vmatpush1.bf16.msra.mxu0 0
        %1291 = vmatprep.subr.bf16.mxu0 0
        %1292 = vmatpush1.bf16.msra.mxu0 0
        %1293 = vmatprep.subr.bf16.mxu0 0
        %1294 = vmatpush1.bf16.msra.mxu0 0
        %1295 = vmatprep.subr.bf16.mxu0 0
        %1296 = vmatpush1.bf16.msra.mxu0 0
        %1297 = vmatprep.subr.bf16.mxu0 0
        %1298 = vmatpush1.bf16.msra.mxu0 0
        %1299 = vmatprep.subr.bf16.mxu0 0
        %1300 = vmatpush1.bf16.msra.mxu0 0
        %1301 = vmatprep.mubr.bf16.mxu0 0
        %1302 = vmatmul.mubr.bf16.gmra.mrb[0].mxu0 %v721
        %v1303 = vpop.f32.mrb[0].mxu0
        %v1304 = vadd.f32 0.0, %v1303
        %v1305 = vpop.f32.mrb[0].mxu0
        %v1306 = vadd.f32 0.0, %v1305
        %v1307 = vpop.f32.mrb[0].mxu0
        %v1308 = vpop.f32.mrb[0].mxu0
        %1309 = vdwg.mxu0
        %v1310 = vlaneseq
        %v1311 = vshrl.u32 %v1310, 7
        %v1312 = vsub.s32 1, %v1311
        %v1313 = vrot.slane %v701, %v1312
        %v1314 = vlaneseq
        %v1315 = vshrl.u32 %v1314, 7
        %v1316 = vsub.s32 1, %v1315
        %v1317 = vrot.slane %v702, %v1316
        %v1318 = vlaneseq
        %v1319 = vshrl.u32 %v1318, 7
        %v1320 = vsub.s32 1, %v1319
        %v1321 = vrot.slane %v703, %v1320
        %v1322 = vlaneseq
        %v1323 = vshrl.u32 %v1322, 7
        %v1324 = vsub.s32 1, %v1323
        %v1325 = vrot.slane %v704, %v1324
        %v1326 = vmul.f32 %v1263, %v1313
        %v1327 = vmul.f32 %v1265, %v1317
        %v1328 = vmul.f32 %v1304, %v1321
        %v1329 = vmul.f32 %v1306, %v1325
        %v1330 = vfloor.f32 %v1326
        %v1331 = vfloor.f32 %v1327
        %v1332 = vfloor.f32 %v1328
        %v1333 = vfloor.f32 %v1329
        %v1334 = vmul.f32 %v1330, 0.5
        %v1335 = vmul.f32 %v1331, 0.5
        %v1336 = vmul.f32 %v1332, 0.5
        %v1337 = vmul.f32 %v1333, 0.5
        %v1338 = vfloor.f32 %v1334
        %v1339 = vfloor.f32 %v1335
        %v1340 = vfloor.f32 %v1336
        %v1341 = vfloor.f32 %v1337
        %v1342 = vmul.f32 %v1338, 2.0
        %v1343 = vmul.f32 %v1339, 2.0
        %v1344 = vmul.f32 %v1340, 2.0
        %v1345 = vmul.f32 %v1341, 2.0
        %v1346 = vsub.f32 %v1330, %v1342
        %v1347 = vsub.f32 %v1331, %v1343
        %v1348 = vsub.f32 %v1332, %v1344
        %v1349 = vsub.f32 %v1333, %v1345
        %v1350 = vmul.f32 %v1346, 2.0
        %v1351 = vmul.f32 %v1347, 2.0
        %v1352 = vmul.f32 %v1348, 2.0
        %v1353 = vmul.f32 %v1349, 2.0
        %v1354 = vsub.f32 %v1350, 1.0
        %v1355 = vsub.f32 %v1351, 1.0
        %v1356 = vsub.f32 %v1352, 1.0
        %v1357 = vsub.f32 %v1353, 1.0
        %v1358 = vlaneseq
        %v1359 = vshrl.u32 %v1358, 7
        %v1360 = vsub.s32 1, %v1359
        %v1361 = vrot.slane %v601, %v1360
        %v1362 = vlaneseq
        %v1363 = vshrl.u32 %v1362, 7
        %v1364 = vsub.s32 1, %v1363
        %v1365 = vrot.slane %v602, %v1364
        %v1366 = vlaneseq
        %v1367 = vshrl.u32 %v1366, 7
        %v1368 = vsub.s32 1, %v1367
        %v1369 = vrot.slane %v603, %v1368
        %v1370 = vlaneseq
        %v1371 = vshrl.u32 %v1370, 7
        %v1372 = vsub.s32 1, %v1371
        %v1373 = vrot.slane %v604, %v1372
        %v1374 = vmul.f32 %v1361, %v1354
        %v1375 = vmul.f32 %v1365, %v1355
        %v1376 = vmul.f32 %v1369, %v1356
        %v1377 = vmul.f32 %v1373, %v1357
        %v1378 = vadd.f32 %v1048, %v1374
        %v1379 = vadd.f32 %v1049, %v1375
        %v1380 = vadd.f32 %v1050, %v1376
        %v1381 = vadd.f32 %v1051, %v1377
        %v1382 = vlaneseq
        %v1383 = vshrl.u32 %v1382, 7
        %v1384 = vsub.s32 2, %v1383
        %v1385 = vrot.slane %v633, %v1384
        %v1386 = vlaneseq
        %v1387 = vshrl.u32 %v1386, 7
        %v1388 = vsub.s32 2, %v1387
        %v1389 = vrot.slane %v634, %v1388
        %v1390 = vlaneseq
        %v1391 = vshrl.u32 %v1390, 7
        %v1392 = vsub.s32 2, %v1391
        %v1393 = vrot.slane %v635, %v1392
        %v1394 = vlaneseq
        %v1395 = vshrl.u32 %v1394, 7
        %v1396 = vsub.s32 2, %v1395
        %v1397 = vrot.slane %v636, %v1396
        %vm1398 = vcmp.eq.s32.totalorder %v222, %v1385
        %vm1399 = vcmp.eq.s32.totalorder %v222, %v1389
        %vm1400 = vcmp.eq.s32.totalorder %v222, %v1393
        %vm1401 = vcmp.eq.s32.totalorder %v222, %v1397
        %vm1402 = vcmp.eq.s32.totalorder %v705, %v1385
        %vm1403 = vcmp.eq.s32.totalorder %v705, %v1389
        %vm1404 = vcmp.eq.s32.totalorder %v705, %v1393
        %vm1405 = vcmp.eq.s32.totalorder %v705, %v1397
        %vm1406 = vcmp.eq.s32.totalorder %v706, %v1385
        %vm1407 = vcmp.eq.s32.totalorder %v706, %v1389
        %vm1408 = vcmp.eq.s32.totalorder %v706, %v1393
        %vm1409 = vcmp.eq.s32.totalorder %v706, %v1397
        %vm1410 = vcmp.eq.s32.totalorder %v707, %v1385
        %vm1411 = vcmp.eq.s32.totalorder %v707, %v1389
        %vm1412 = vcmp.eq.s32.totalorder %v707, %v1393
        %vm1413 = vcmp.eq.s32.totalorder %v707, %v1397
        %vm1414 = vcmp.eq.s32.totalorder %v708, %v1385
        %vm1415 = vcmp.eq.s32.totalorder %v708, %v1389
        %vm1416 = vcmp.eq.s32.totalorder %v708, %v1393
        %vm1417 = vcmp.eq.s32.totalorder %v708, %v1397
        %vm1418 = vcmp.eq.s32.totalorder %v709, %v1385
        %vm1419 = vcmp.eq.s32.totalorder %v709, %v1389
        %vm1420 = vcmp.eq.s32.totalorder %v709, %v1393
        %vm1421 = vcmp.eq.s32.totalorder %v709, %v1397
        %vm1422 = vcmp.eq.s32.totalorder %v710, %v1385
        %vm1423 = vcmp.eq.s32.totalorder %v710, %v1389
        %vm1424 = vcmp.eq.s32.totalorder %v710, %v1393
        %vm1425 = vcmp.eq.s32.totalorder %v710, %v1397
        %vm1426 = vcmp.eq.s32.totalorder %v711, %v1385
        %vm1427 = vcmp.eq.s32.totalorder %v711, %v1389
        %vm1428 = vcmp.eq.s32.totalorder %v711, %v1393
        %vm1429 = vcmp.eq.s32.totalorder %v711, %v1397
        %vm1430 = vcmp.eq.s32.totalorder %v712, %v1385
        %vm1431 = vcmp.eq.s32.totalorder %v712, %v1389
        %vm1432 = vcmp.eq.s32.totalorder %v712, %v1393
        %vm1433 = vcmp.eq.s32.totalorder %v712, %v1397
        %vm1434 = vcmp.eq.s32.totalorder %v713, %v1385
        %vm1435 = vcmp.eq.s32.totalorder %v713, %v1389
        %vm1436 = vcmp.eq.s32.totalorder %v713, %v1393
        %vm1437 = vcmp.eq.s32.totalorder %v713, %v1397
        %vm1438 = vcmp.eq.s32.totalorder %v714, %v1385
        %vm1439 = vcmp.eq.s32.totalorder %v714, %v1389
        %vm1440 = vcmp.eq.s32.totalorder %v714, %v1393
        %vm1441 = vcmp.eq.s32.totalorder %v714, %v1397
        %vm1442 = vcmp.eq.s32.totalorder %v715, %v1385
        %vm1443 = vcmp.eq.s32.totalorder %v715, %v1389
        %vm1444 = vcmp.eq.s32.totalorder %v715, %v1393
        %vm1445 = vcmp.eq.s32.totalorder %v715, %v1397
        %vm1446 = vcmp.eq.s32.totalorder %v716, %v1385
        %vm1447 = vcmp.eq.s32.totalorder %v716, %v1389
        %vm1448 = vcmp.eq.s32.totalorder %v716, %v1393
        %vm1449 = vcmp.eq.s32.totalorder %v716, %v1397
        %vm1450 = vcmp.eq.s32.totalorder %v717, %v1385
        %vm1451 = vcmp.eq.s32.totalorder %v717, %v1389
        %vm1452 = vcmp.eq.s32.totalorder %v717, %v1393
        %vm1453 = vcmp.eq.s32.totalorder %v717, %v1397
        %vm1454 = vcmp.eq.s32.totalorder %v718, %v1385
        %vm1455 = vcmp.eq.s32.totalorder %v718, %v1389
        %vm1456 = vcmp.eq.s32.totalorder %v718, %v1393
        %vm1457 = vcmp.eq.s32.totalorder %v718, %v1397
        %vm1458 = vcmp.eq.s32.totalorder %v719, %v1385
        %vm1459 = vcmp.eq.s32.totalorder %v719, %v1389
        %vm1460 = vcmp.eq.s32.totalorder %v719, %v1393
        %vm1461 = vcmp.eq.s32.totalorder %v719, %v1397
        %v1462 = vsel %vm1398, 1.0, 0.0
        %v1463 = vsel %vm1399, 1.0, 0.0
        %v1464 = vsel %vm1400, 1.0, 0.0
        %v1465 = vsel %vm1401, 1.0, 0.0
        %v1466 = vsel %vm1402, 1.0, 0.0
        %v1467 = vsel %vm1403, 1.0, 0.0
        %v1468 = vsel %vm1404, 1.0, 0.0
        %v1469 = vsel %vm1405, 1.0, 0.0
        %v1470 = vsel %vm1406, 1.0, 0.0
        %v1471 = vsel %vm1407, 1.0, 0.0
        %v1472 = vsel %vm1408, 1.0, 0.0
        %v1473 = vsel %vm1409, 1.0, 0.0
        %v1474 = vsel %vm1410, 1.0, 0.0
        %v1475 = vsel %vm1411, 1.0, 0.0
        %v1476 = vsel %vm1412, 1.0, 0.0
        %v1477 = vsel %vm1413, 1.0, 0.0
        %v1478 = vsel %vm1414, 1.0, 0.0
        %v1479 = vsel %vm1415, 1.0, 0.0
        %v1480 = vsel %vm1416, 1.0, 0.0
        %v1481 = vsel %vm1417, 1.0, 0.0
        %v1482 = vsel %vm1418, 1.0, 0.0
        %v1483 = vsel %vm1419, 1.0, 0.0
        %v1484 = vsel %vm1420, 1.0, 0.0
        %v1485 = vsel %vm1421, 1.0, 0.0
        %v1486 = vsel %vm1422, 1.0, 0.0
        %v1487 = vsel %vm1423, 1.0, 0.0
        %v1488 = vsel %vm1424, 1.0, 0.0
        %v1489 = vsel %vm1425, 1.0, 0.0
        %v1490 = vsel %vm1426, 1.0, 0.0
        %v1491 = vsel %vm1427, 1.0, 0.0
        %v1492 = vsel %vm1428, 1.0, 0.0
        %v1493 = vsel %vm1429, 1.0, 0.0
        %v1494 = vsel %vm1430, 1.0, 0.0
        %v1495 = vsel %vm1431, 1.0, 0.0
        %v1496 = vsel %vm1432, 1.0, 0.0
        %v1497 = vsel %vm1433, 1.0, 0.0
        %v1498 = vsel %vm1434, 1.0, 0.0
        %v1499 = vsel %vm1435, 1.0, 0.0
        %v1500 = vsel %vm1436, 1.0, 0.0
        %v1501 = vsel %vm1437, 1.0, 0.0
        %v1502 = vsel %vm1438, 1.0, 0.0
        %v1503 = vsel %vm1439, 1.0, 0.0
        %v1504 = vsel %vm1440, 1.0, 0.0
        %v1505 = vsel %vm1441, 1.0, 0.0
        %v1506 = vsel %vm1442, 1.0, 0.0
        %v1507 = vsel %vm1443, 1.0, 0.0
        %v1508 = vsel %vm1444, 1.0, 0.0
        %v1509 = vsel %vm1445, 1.0, 0.0
        %v1510 = vsel %vm1446, 1.0, 0.0
        %v1511 = vsel %vm1447, 1.0, 0.0
        %v1512 = vsel %vm1448, 1.0, 0.0
        %v1513 = vsel %vm1449, 1.0, 0.0
        %v1514 = vsel %vm1450, 1.0, 0.0
        %v1515 = vsel %vm1451, 1.0, 0.0
        %v1516 = vsel %vm1452, 1.0, 0.0
        %v1517 = vsel %vm1453, 1.0, 0.0
        %v1518 = vsel %vm1454, 1.0, 0.0
        %v1519 = vsel %vm1455, 1.0, 0.0
        %v1520 = vsel %vm1456, 1.0, 0.0
        %v1521 = vsel %vm1457, 1.0, 0.0
        %v1522 = vsel %vm1458, 1.0, 0.0
        %v1523 = vsel %vm1459, 1.0, 0.0
        %v1524 = vsel %vm1460, 1.0, 0.0
        %v1525 = vsel %vm1461, 1.0, 0.0
        %v1526 = vpack.c.bf16 %v1466, %v1462
        %v1527 = vpack.c.bf16 %v1467, %v1463
        %v1528 = vpack.c.bf16 %v1468, %v1464
        %v1529 = vpack.c.bf16 %v1469, %v1465
        %v1530 = vpack.c.bf16 %v1474, %v1470
        %v1531 = vpack.c.bf16 %v1475, %v1471
        %v1532 = vpack.c.bf16 %v1476, %v1472
        %v1533 = vpack.c.bf16 %v1477, %v1473
        %v1534 = vpack.c.bf16 %v1482, %v1478
        %v1535 = vpack.c.bf16 %v1483, %v1479
        %v1536 = vpack.c.bf16 %v1484, %v1480
        %v1537 = vpack.c.bf16 %v1485, %v1481
        %v1538 = vpack.c.bf16 %v1490, %v1486
        %v1539 = vpack.c.bf16 %v1491, %v1487
        %v1540 = vpack.c.bf16 %v1492, %v1488
        %v1541 = vpack.c.bf16 %v1493, %v1489
        %v1542 = vpack.c.bf16 %v1498, %v1494
        %v1543 = vpack.c.bf16 %v1499, %v1495
        %v1544 = vpack.c.bf16 %v1500, %v1496
        %v1545 = vpack.c.bf16 %v1501, %v1497
        %v1546 = vpack.c.bf16 %v1506, %v1502
        %v1547 = vpack.c.bf16 %v1507, %v1503
        %v1548 = vpack.c.bf16 %v1508, %v1504
        %v1549 = vpack.c.bf16 %v1509, %v1505
        %v1550 = vpack.c.bf16 %v1514, %v1510
        %v1551 = vpack.c.bf16 %v1515, %v1511
        %v1552 = vpack.c.bf16 %v1516, %v1512
        %v1553 = vpack.c.bf16 %v1517, %v1513
        %v1554 = vpack.c.bf16 %v1522, %v1518
        %v1555 = vpack.c.bf16 %v1523, %v1519
        %v1556 = vpack.c.bf16 %v1524, %v1520
        %v1557 = vpack.c.bf16 %v1525, %v1521
        %1558 = vmatprep.subr.bf16.mxu0 %v1527
        %1559 = vmatpush1.bf16.msra.mxu0 %v1526
        %1560 = vmatprep.subr.bf16.mxu0 %v1531
        %1561 = vmatpush1.bf16.msra.mxu0 %v1530
        %1562 = vmatprep.subr.bf16.mxu0 %v1535
        %1563 = vmatpush1.bf16.msra.mxu0 %v1534
        %1564 = vmatprep.subr.bf16.mxu0 %v1539
        %1565 = vmatpush1.bf16.msra.mxu0 %v1538
        %1566 = vmatprep.subr.bf16.mxu0 %v1543
        %1567 = vmatpush1.bf16.msra.mxu0 %v1542
        %1568 = vmatprep.subr.bf16.mxu0 %v1547
        %1569 = vmatpush1.bf16.msra.mxu0 %v1546
        %1570 = vmatprep.subr.bf16.mxu0 %v1551
        %1571 = vmatpush1.bf16.msra.mxu0 %v1550
        %1572 = vmatprep.subr.bf16.mxu0 %v1555
        %1573 = vmatpush1.bf16.msra.mxu0 %v1554
        %1574 = vmatprep.subr.bf16.mxu0 0
        %1575 = vmatpush1.bf16.msra.mxu0 0
        %1576 = vmatprep.subr.bf16.mxu0 0
        %1577 = vmatpush1.bf16.msra.mxu0 0
        %1578 = vmatprep.subr.bf16.mxu0 0
        %1579 = vmatpush1.bf16.msra.mxu0 0
        %1580 = vmatprep.subr.bf16.mxu0 0
        %1581 = vmatpush1.bf16.msra.mxu0 0
        %1582 = vmatprep.subr.bf16.mxu0 0
        %1583 = vmatpush1.bf16.msra.mxu0 0
        %1584 = vmatprep.subr.bf16.mxu0 0
        %1585 = vmatpush1.bf16.msra.mxu0 0
        %1586 = vmatprep.subr.bf16.mxu0 0
        %1587 = vmatpush1.bf16.msra.mxu0 0
        %1588 = vmatprep.subr.bf16.mxu0 0
        %1589 = vmatpush1.bf16.msra.mxu0 0
        %1590 = vmatprep.mubr.bf16.mxu0 0
        %1591 = vmatmul.mubr.bf16.gmra.mrb[0].mxu0 %v721
        %v1592 = vpop.f32.mrb[0].mxu0
        %v1593 = vadd.f32 0.0, %v1592
        %v1594 = vpop.f32.mrb[0].mxu0
        %v1595 = vadd.f32 0.0, %v1594
        %v1596 = vpop.f32.mrb[0].mxu0
        %v1597 = vpop.f32.mrb[0].mxu0
        %1598 = vdwg.mxu0
        %1599 = vmatprep.subr.bf16.mxu0 %v1529
        %1600 = vmatpush1.bf16.msra.mxu0 %v1528
        %1601 = vmatprep.subr.bf16.mxu0 %v1533
        %1602 = vmatpush1.bf16.msra.mxu0 %v1532
        %1603 = vmatprep.subr.bf16.mxu0 %v1537
        %1604 = vmatpush1.bf16.msra.mxu0 %v1536
        %1605 = vmatprep.subr.bf16.mxu0 %v1541
        %1606 = vmatpush1.bf16.msra.mxu0 %v1540
        %1607 = vmatprep.subr.bf16.mxu0 %v1545
        %1608 = vmatpush1.bf16.msra.mxu0 %v1544
        %1609 = vmatprep.subr.bf16.mxu0 %v1549
        %1610 = vmatpush1.bf16.msra.mxu0 %v1548
        %1611 = vmatprep.subr.bf16.mxu0 %v1553
        %1612 = vmatpush1.bf16.msra.mxu0 %v1552
        %1613 = vmatprep.subr.bf16.mxu0 %v1557
        %1614 = vmatpush1.bf16.msra.mxu0 %v1556
        %1615 = vmatprep.subr.bf16.mxu0 0
        %1616 = vmatpush1.bf16.msra.mxu0 0
        %1617 = vmatprep.subr.bf16.mxu0 0
        %1618 = vmatpush1.bf16.msra.mxu0 0
        %1619 = vmatprep.subr.bf16.mxu0 0
        %1620 = vmatpush1.bf16.msra.mxu0 0
        %1621 = vmatprep.subr.bf16.mxu0 0
        %1622 = vmatpush1.bf16.msra.mxu0 0
        %1623 = vmatprep.subr.bf16.mxu0 0
        %1624 = vmatpush1.bf16.msra.mxu0 0
        %1625 = vmatprep.subr.bf16.mxu0 0
        %1626 = vmatpush1.bf16.msra.mxu0 0
        %1627 = vmatprep.subr.bf16.mxu0 0
        %1628 = vmatpush1.bf16.msra.mxu0 0
        %1629 = vmatprep.subr.bf16.mxu0 0
        %1630 = vmatpush1.bf16.msra.mxu0 0
        %1631 = vmatprep.mubr.bf16.mxu0 0
        %1632 = vmatmul.mubr.bf16.gmra.mrb[0].mxu0 %v721
        %v1633 = vpop.f32.mrb[0].mxu0
        %v1634 = vadd.f32 0.0, %v1633
        %v1635 = vpop.f32.mrb[0].mxu0
        %v1636 = vadd.f32 0.0, %v1635
        %v1637 = vpop.f32.mrb[0].mxu0
        %v1638 = vpop.f32.mrb[0].mxu0
        %1639 = vdwg.mxu0
        %v1640 = vlaneseq
        %v1641 = vshrl.u32 %v1640, 7
        %v1642 = vsub.s32 2, %v1641
        %v1643 = vrot.slane %v701, %v1642
        %v1644 = vlaneseq
        %v1645 = vshrl.u32 %v1644, 7
        %v1646 = vsub.s32 2, %v1645
        %v1647 = vrot.slane %v702, %v1646
        %v1648 = vlaneseq
        %v1649 = vshrl.u32 %v1648, 7
        %v1650 = vsub.s32 2, %v1649
        %v1651 = vrot.slane %v703, %v1650
        %v1652 = vlaneseq
        %v1653 = vshrl.u32 %v1652, 7
        %v1654 = vsub.s32 2, %v1653
        %v1655 = vrot.slane %v704, %v1654
        %v1656 = vmul.f32 %v1593, %v1643
        %v1657 = vmul.f32 %v1595, %v1647
        %v1658 = vmul.f32 %v1634, %v1651
        %v1659 = vmul.f32 %v1636, %v1655
        %v1660 = vfloor.f32 %v1656
        %v1661 = vfloor.f32 %v1657
        %v1662 = vfloor.f32 %v1658
        %v1663 = vfloor.f32 %v1659
        %v1664 = vmul.f32 %v1660, 0.5
        %v1665 = vmul.f32 %v1661, 0.5
        %v1666 = vmul.f32 %v1662, 0.5
        %v1667 = vmul.f32 %v1663, 0.5
        %v1668 = vfloor.f32 %v1664
        %v1669 = vfloor.f32 %v1665
        %v1670 = vfloor.f32 %v1666
        %v1671 = vfloor.f32 %v1667
        %v1672 = vmul.f32 %v1668, 2.0
        %v1673 = vmul.f32 %v1669, 2.0
        %v1674 = vmul.f32 %v1670, 2.0
        %v1675 = vmul.f32 %v1671, 2.0
        %v1676 = vsub.f32 %v1660, %v1672
        %v1677 = vsub.f32 %v1661, %v1673
        %v1678 = vsub.f32 %v1662, %v1674
        %v1679 = vsub.f32 %v1663, %v1675
        %v1680 = vmul.f32 %v1676, 2.0
        %v1681 = vmul.f32 %v1677, 2.0
        %v1682 = vmul.f32 %v1678, 2.0
        %v1683 = vmul.f32 %v1679, 2.0
        %v1684 = vsub.f32 %v1680, 1.0
        %v1685 = vsub.f32 %v1681, 1.0
        %v1686 = vsub.f32 %v1682, 1.0
        %v1687 = vsub.f32 %v1683, 1.0
        %v1688 = vlaneseq
        %v1689 = vshrl.u32 %v1688, 7
        %v1690 = vsub.s32 2, %v1689
        %v1691 = vrot.slane %v601, %v1690
        %v1692 = vlaneseq
        %v1693 = vshrl.u32 %v1692, 7
        %v1694 = vsub.s32 2, %v1693
        %v1695 = vrot.slane %v602, %v1694
        %v1696 = vlaneseq
        %v1697 = vshrl.u32 %v1696, 7
        %v1698 = vsub.s32 2, %v1697
        %v1699 = vrot.slane %v603, %v1698
        %v1700 = vlaneseq
        %v1701 = vshrl.u32 %v1700, 7
        %v1702 = vsub.s32 2, %v1701
        %v1703 = vrot.slane %v604, %v1702
        %v1704 = vmul.f32 %v1691, %v1684
        %v1705 = vmul.f32 %v1695, %v1685
        %v1706 = vmul.f32 %v1699, %v1686
        %v1707 = vmul.f32 %v1703, %v1687
        %v1708 = vadd.f32 %v1378, %v1704
        %v1709 = vadd.f32 %v1379, %v1705
        %v1710 = vadd.f32 %v1380, %v1706
        %v1711 = vadd.f32 %v1381, %v1707
        %v1712 = vlaneseq
        %v1713 = vshrl.u32 %v1712, 7
        %v1714 = vsub.s32 3, %v1713
        %v1715 = vrot.slane %v633, %v1714
        %v1716 = vlaneseq
        %v1717 = vshrl.u32 %v1716, 7
        %v1718 = vsub.s32 3, %v1717
        %v1719 = vrot.slane %v634, %v1718
        %v1720 = vlaneseq
        %v1721 = vshrl.u32 %v1720, 7
        %v1722 = vsub.s32 3, %v1721
        %v1723 = vrot.slane %v635, %v1722
        %v1724 = vlaneseq
        %v1725 = vshrl.u32 %v1724, 7
        %v1726 = vsub.s32 3, %v1725
        %v1727 = vrot.slane %v636, %v1726
        %vm1728 = vcmp.eq.s32.totalorder %v222, %v1715
        %vm1729 = vcmp.eq.s32.totalorder %v222, %v1719
        %vm1730 = vcmp.eq.s32.totalorder %v222, %v1723
        %vm1731 = vcmp.eq.s32.totalorder %v222, %v1727
        %vm1732 = vcmp.eq.s32.totalorder %v705, %v1715
        %vm1733 = vcmp.eq.s32.totalorder %v705, %v1719
        %vm1734 = vcmp.eq.s32.totalorder %v705, %v1723
        %vm1735 = vcmp.eq.s32.totalorder %v705, %v1727
        %vm1736 = vcmp.eq.s32.totalorder %v706, %v1715
        %vm1737 = vcmp.eq.s32.totalorder %v706, %v1719
        %vm1738 = vcmp.eq.s32.totalorder %v706, %v1723
        %vm1739 = vcmp.eq.s32.totalorder %v706, %v1727
        %vm1740 = vcmp.eq.s32.totalorder %v707, %v1715
        %vm1741 = vcmp.eq.s32.totalorder %v707, %v1719
        %vm1742 = vcmp.eq.s32.totalorder %v707, %v1723
        %vm1743 = vcmp.eq.s32.totalorder %v707, %v1727
        %vm1744 = vcmp.eq.s32.totalorder %v708, %v1715
        %vm1745 = vcmp.eq.s32.totalorder %v708, %v1719
        %vm1746 = vcmp.eq.s32.totalorder %v708, %v1723
        %vm1747 = vcmp.eq.s32.totalorder %v708, %v1727
        %vm1748 = vcmp.eq.s32.totalorder %v709, %v1715
        %vm1749 = vcmp.eq.s32.totalorder %v709, %v1719
        %vm1750 = vcmp.eq.s32.totalorder %v709, %v1723
        %vm1751 = vcmp.eq.s32.totalorder %v709, %v1727
        %vm1752 = vcmp.eq.s32.totalorder %v710, %v1715
        %vm1753 = vcmp.eq.s32.totalorder %v710, %v1719
        %vm1754 = vcmp.eq.s32.totalorder %v710, %v1723
        %vm1755 = vcmp.eq.s32.totalorder %v710, %v1727
        %vm1756 = vcmp.eq.s32.totalorder %v711, %v1715
        %vm1757 = vcmp.eq.s32.totalorder %v711, %v1719
        %vm1758 = vcmp.eq.s32.totalorder %v711, %v1723
        %vm1759 = vcmp.eq.s32.totalorder %v711, %v1727
        %vm1760 = vcmp.eq.s32.totalorder %v712, %v1715
        %vm1761 = vcmp.eq.s32.totalorder %v712, %v1719
        %vm1762 = vcmp.eq.s32.totalorder %v712, %v1723
        %vm1763 = vcmp.eq.s32.totalorder %v712, %v1727
        %vm1764 = vcmp.eq.s32.totalorder %v713, %v1715
        %vm1765 = vcmp.eq.s32.totalorder %v713, %v1719
        %vm1766 = vcmp.eq.s32.totalorder %v713, %v1723
        %vm1767 = vcmp.eq.s32.totalorder %v713, %v1727
        %vm1768 = vcmp.eq.s32.totalorder %v714, %v1715
        %vm1769 = vcmp.eq.s32.totalorder %v714, %v1719
        %vm1770 = vcmp.eq.s32.totalorder %v714, %v1723
        %vm1771 = vcmp.eq.s32.totalorder %v714, %v1727
        %vm1772 = vcmp.eq.s32.totalorder %v715, %v1715
        %vm1773 = vcmp.eq.s32.totalorder %v715, %v1719
        %vm1774 = vcmp.eq.s32.totalorder %v715, %v1723
        %vm1775 = vcmp.eq.s32.totalorder %v715, %v1727
        %vm1776 = vcmp.eq.s32.totalorder %v716, %v1715
        %vm1777 = vcmp.eq.s32.totalorder %v716, %v1719
        %vm1778 = vcmp.eq.s32.totalorder %v716, %v1723
        %vm1779 = vcmp.eq.s32.totalorder %v716, %v1727
        %vm1780 = vcmp.eq.s32.totalorder %v717, %v1715
        %vm1781 = vcmp.eq.s32.totalorder %v717, %v1719
        %vm1782 = vcmp.eq.s32.totalorder %v717, %v1723
        %vm1783 = vcmp.eq.s32.totalorder %v717, %v1727
        %vm1784 = vcmp.eq.s32.totalorder %v718, %v1715
        %vm1785 = vcmp.eq.s32.totalorder %v718, %v1719
        %vm1786 = vcmp.eq.s32.totalorder %v718, %v1723
        %vm1787 = vcmp.eq.s32.totalorder %v718, %v1727
        %vm1788 = vcmp.eq.s32.totalorder %v719, %v1715
        %vm1789 = vcmp.eq.s32.totalorder %v719, %v1719
        %vm1790 = vcmp.eq.s32.totalorder %v719, %v1723
        %vm1791 = vcmp.eq.s32.totalorder %v719, %v1727
        %v1792 = vsel %vm1728, 1.0, 0.0
        %v1793 = vsel %vm1729, 1.0, 0.0
        %v1794 = vsel %vm1730, 1.0, 0.0
        %v1795 = vsel %vm1731, 1.0, 0.0
        %v1796 = vsel %vm1732, 1.0, 0.0
        %v1797 = vsel %vm1733, 1.0, 0.0
        %v1798 = vsel %vm1734, 1.0, 0.0
        %v1799 = vsel %vm1735, 1.0, 0.0
        %v1800 = vsel %vm1736, 1.0, 0.0
        %v1801 = vsel %vm1737, 1.0, 0.0
        %v1802 = vsel %vm1738, 1.0, 0.0
        %v1803 = vsel %vm1739, 1.0, 0.0
        %v1804 = vsel %vm1740, 1.0, 0.0
        %v1805 = vsel %vm1741, 1.0, 0.0
        %v1806 = vsel %vm1742, 1.0, 0.0
        %v1807 = vsel %vm1743, 1.0, 0.0
        %v1808 = vsel %vm1744, 1.0, 0.0
        %v1809 = vsel %vm1745, 1.0, 0.0
        %v1810 = vsel %vm1746, 1.0, 0.0
        %v1811 = vsel %vm1747, 1.0, 0.0
        %v1812 = vsel %vm1748, 1.0, 0.0
        %v1813 = vsel %vm1749, 1.0, 0.0
        %v1814 = vsel %vm1750, 1.0, 0.0
        %v1815 = vsel %vm1751, 1.0, 0.0
        %v1816 = vsel %vm1752, 1.0, 0.0
        %v1817 = vsel %vm1753, 1.0, 0.0
        %v1818 = vsel %vm1754, 1.0, 0.0
        %v1819 = vsel %vm1755, 1.0, 0.0
        %v1820 = vsel %vm1756, 1.0, 0.0
        %v1821 = vsel %vm1757, 1.0, 0.0
        %v1822 = vsel %vm1758, 1.0, 0.0
        %v1823 = vsel %vm1759, 1.0, 0.0
        %v1824 = vsel %vm1760, 1.0, 0.0
        %v1825 = vsel %vm1761, 1.0, 0.0
        %v1826 = vsel %vm1762, 1.0, 0.0
        %v1827 = vsel %vm1763, 1.0, 0.0
        %v1828 = vsel %vm1764, 1.0, 0.0
        %v1829 = vsel %vm1765, 1.0, 0.0
        %v1830 = vsel %vm1766, 1.0, 0.0
        %v1831 = vsel %vm1767, 1.0, 0.0
        %v1832 = vsel %vm1768, 1.0, 0.0
        %v1833 = vsel %vm1769, 1.0, 0.0
        %v1834 = vsel %vm1770, 1.0, 0.0
        %v1835 = vsel %vm1771, 1.0, 0.0
        %v1836 = vsel %vm1772, 1.0, 0.0
        %v1837 = vsel %vm1773, 1.0, 0.0
        %v1838 = vsel %vm1774, 1.0, 0.0
        %v1839 = vsel %vm1775, 1.0, 0.0
        %v1840 = vsel %vm1776, 1.0, 0.0
        %v1841 = vsel %vm1777, 1.0, 0.0
        %v1842 = vsel %vm1778, 1.0, 0.0
        %v1843 = vsel %vm1779, 1.0, 0.0
        %v1844 = vsel %vm1780, 1.0, 0.0
        %v1845 = vsel %vm1781, 1.0, 0.0
        %v1846 = vsel %vm1782, 1.0, 0.0
        %v1847 = vsel %vm1783, 1.0, 0.0
        %v1848 = vsel %vm1784, 1.0, 0.0
        %v1849 = vsel %vm1785, 1.0, 0.0
        %v1850 = vsel %vm1786, 1.0, 0.0
        %v1851 = vsel %vm1787, 1.0, 0.0
        %v1852 = vsel %vm1788, 1.0, 0.0
        %v1853 = vsel %vm1789, 1.0, 0.0
        %v1854 = vsel %vm1790, 1.0, 0.0
        %v1855 = vsel %vm1791, 1.0, 0.0
        %v1856 = vpack.c.bf16 %v1796, %v1792
        %v1857 = vpack.c.bf16 %v1797, %v1793
        %v1858 = vpack.c.bf16 %v1798, %v1794
        %v1859 = vpack.c.bf16 %v1799, %v1795
        %v1860 = vpack.c.bf16 %v1804, %v1800
        %v1861 = vpack.c.bf16 %v1805, %v1801
        %v1862 = vpack.c.bf16 %v1806, %v1802
        %v1863 = vpack.c.bf16 %v1807, %v1803
        %v1864 = vpack.c.bf16 %v1812, %v1808
        %v1865 = vpack.c.bf16 %v1813, %v1809
        %v1866 = vpack.c.bf16 %v1814, %v1810
        %v1867 = vpack.c.bf16 %v1815, %v1811
        %v1868 = vpack.c.bf16 %v1820, %v1816
        %v1869 = vpack.c.bf16 %v1821, %v1817
        %v1870 = vpack.c.bf16 %v1822, %v1818
        %v1871 = vpack.c.bf16 %v1823, %v1819
        %v1872 = vpack.c.bf16 %v1828, %v1824
        %v1873 = vpack.c.bf16 %v1829, %v1825
        %v1874 = vpack.c.bf16 %v1830, %v1826
        %v1875 = vpack.c.bf16 %v1831, %v1827
        %v1876 = vpack.c.bf16 %v1836, %v1832
        %v1877 = vpack.c.bf16 %v1837, %v1833
        %v1878 = vpack.c.bf16 %v1838, %v1834
        %v1879 = vpack.c.bf16 %v1839, %v1835
        %v1880 = vpack.c.bf16 %v1844, %v1840
        %v1881 = vpack.c.bf16 %v1845, %v1841
        %v1882 = vpack.c.bf16 %v1846, %v1842
        %v1883 = vpack.c.bf16 %v1847, %v1843
        %v1884 = vpack.c.bf16 %v1852, %v1848
        %v1885 = vpack.c.bf16 %v1853, %v1849
        %v1886 = vpack.c.bf16 %v1854, %v1850
        %v1887 = vpack.c.bf16 %v1855, %v1851
        %1888 = vmatprep.subr.bf16.mxu0 %v1857
        %1889 = vmatpush1.bf16.msra.mxu0 %v1856
        %1890 = vmatprep.subr.bf16.mxu0 %v1861
        %1891 = vmatpush1.bf16.msra.mxu0 %v1860
        %1892 = vmatprep.subr.bf16.mxu0 %v1865
        %1893 = vmatpush1.bf16.msra.mxu0 %v1864
        %1894 = vmatprep.subr.bf16.mxu0 %v1869
        %1895 = vmatpush1.bf16.msra.mxu0 %v1868
        %1896 = vmatprep.subr.bf16.mxu0 %v1873
        %1897 = vmatpush1.bf16.msra.mxu0 %v1872
        %1898 = vmatprep.subr.bf16.mxu0 %v1877
        %1899 = vmatpush1.bf16.msra.mxu0 %v1876
        %1900 = vmatprep.subr.bf16.mxu0 %v1881
        %1901 = vmatpush1.bf16.msra.mxu0 %v1880
        %1902 = vmatprep.subr.bf16.mxu0 %v1885
        %1903 = vmatpush1.bf16.msra.mxu0 %v1884
        %1904 = vmatprep.subr.bf16.mxu0 0
        %1905 = vmatpush1.bf16.msra.mxu0 0
        %1906 = vmatprep.subr.bf16.mxu0 0
        %1907 = vmatpush1.bf16.msra.mxu0 0
        %1908 = vmatprep.subr.bf16.mxu0 0
        %1909 = vmatpush1.bf16.msra.mxu0 0
        %1910 = vmatprep.subr.bf16.mxu0 0
        %1911 = vmatpush1.bf16.msra.mxu0 0
        %1912 = vmatprep.subr.bf16.mxu0 0
        %1913 = vmatpush1.bf16.msra.mxu0 0
        %1914 = vmatprep.subr.bf16.mxu0 0
        %1915 = vmatpush1.bf16.msra.mxu0 0
        %1916 = vmatprep.subr.bf16.mxu0 0
        %1917 = vmatpush1.bf16.msra.mxu0 0
        %1918 = vmatprep.subr.bf16.mxu0 0
        %1919 = vmatpush1.bf16.msra.mxu0 0
        %1920 = vmatprep.mubr.bf16.mxu0 0
        %1921 = vmatmul.mubr.bf16.gmra.mrb[0].mxu0 %v721
        %v1922 = vpop.f32.mrb[0].mxu0
        %v1923 = vadd.f32 0.0, %v1922
        %v1924 = vpop.f32.mrb[0].mxu0
        %v1925 = vadd.f32 0.0, %v1924
        %v1926 = vpop.f32.mrb[0].mxu0
        %v1927 = vpop.f32.mrb[0].mxu0
        %1928 = vdwg.mxu0
        %1929 = vmatprep.subr.bf16.mxu0 %v1859
        %1930 = vmatpush1.bf16.msra.mxu0 %v1858
        %1931 = vmatprep.subr.bf16.mxu0 %v1863
        %1932 = vmatpush1.bf16.msra.mxu0 %v1862
        %1933 = vmatprep.subr.bf16.mxu0 %v1867
        %1934 = vmatpush1.bf16.msra.mxu0 %v1866
        %1935 = vmatprep.subr.bf16.mxu0 %v1871
        %1936 = vmatpush1.bf16.msra.mxu0 %v1870
        %1937 = vmatprep.subr.bf16.mxu0 %v1875
        %1938 = vmatpush1.bf16.msra.mxu0 %v1874
        %1939 = vmatprep.subr.bf16.mxu0 %v1879
        %1940 = vmatpush1.bf16.msra.mxu0 %v1878
        %1941 = vmatprep.subr.bf16.mxu0 %v1883
        %1942 = vmatpush1.bf16.msra.mxu0 %v1882
        %1943 = vmatprep.subr.bf16.mxu0 %v1887
        %1944 = vmatpush1.bf16.msra.mxu0 %v1886
        %1945 = vmatprep.subr.bf16.mxu0 0
        %1946 = vmatpush1.bf16.msra.mxu0 0
        %1947 = vmatprep.subr.bf16.mxu0 0
        %1948 = vmatpush1.bf16.msra.mxu0 0
        %1949 = vmatprep.subr.bf16.mxu0 0
        %1950 = vmatpush1.bf16.msra.mxu0 0
        %1951 = vmatprep.subr.bf16.mxu0 0
        %1952 = vmatpush1.bf16.msra.mxu0 0
        %1953 = vmatprep.subr.bf16.mxu0 0
        %1954 = vmatpush1.bf16.msra.mxu0 0
        %1955 = vmatprep.subr.bf16.mxu0 0
        %1956 = vmatpush1.bf16.msra.mxu0 0
        %1957 = vmatprep.subr.bf16.mxu0 0
        %1958 = vmatpush1.bf16.msra.mxu0 0
        %1959 = vmatprep.subr.bf16.mxu0 0
        %1960 = vmatpush1.bf16.msra.mxu0 0
        %1961 = vmatprep.mubr.bf16.mxu0 0
        %1962 = vmatmul.mubr.bf16.gmra.mrb[0].mxu0 %v721
        %v1963 = vpop.f32.mrb[0].mxu0
        %v1964 = vadd.f32 0.0, %v1963
        %v1965 = vpop.f32.mrb[0].mxu0
        %v1966 = vadd.f32 0.0, %v1965
        %v1967 = vpop.f32.mrb[0].mxu0
        %v1968 = vpop.f32.mrb[0].mxu0
        %1969 = vdwg.mxu0
        %v1970 = vlaneseq
        %v1971 = vshrl.u32 %v1970, 7
        %v1972 = vsub.s32 3, %v1971
        %v1973 = vrot.slane %v701, %v1972
        %v1974 = vlaneseq
        %v1975 = vshrl.u32 %v1974, 7
        %v1976 = vsub.s32 3, %v1975
        %v1977 = vrot.slane %v702, %v1976
        %v1978 = vlaneseq
        %v1979 = vshrl.u32 %v1978, 7
        %v1980 = vsub.s32 3, %v1979
        %v1981 = vrot.slane %v703, %v1980
        %v1982 = vlaneseq
        %v1983 = vshrl.u32 %v1982, 7
        %v1984 = vsub.s32 3, %v1983
        %v1985 = vrot.slane %v704, %v1984
        %v1986 = vmul.f32 %v1923, %v1973
        %v1987 = vmul.f32 %v1925, %v1977
        %v1988 = vmul.f32 %v1964, %v1981
        %v1989 = vmul.f32 %v1966, %v1985
        %v1990 = vfloor.f32 %v1986
        %v1991 = vfloor.f32 %v1987
        %v1992 = vfloor.f32 %v1988
        %v1993 = vfloor.f32 %v1989
        %v1994 = vmul.f32 %v1990, 0.5
        %v1995 = vmul.f32 %v1991, 0.5
        %v1996 = vmul.f32 %v1992, 0.5
        %v1997 = vmul.f32 %v1993, 0.5
        %v1998 = vfloor.f32 %v1994
        %v1999 = vfloor.f32 %v1995
        %v2000 = vfloor.f32 %v1996
        %v2001 = vfloor.f32 %v1997
        %v2002 = vmul.f32 %v1998, 2.0
        %v2003 = vmul.f32 %v1999, 2.0
        %v2004 = vmul.f32 %v2000, 2.0
        %v2005 = vmul.f32 %v2001, 2.0
        %v2006 = vsub.f32 %v1990, %v2002
        %v2007 = vsub.f32 %v1991, %v2003
        %v2008 = vsub.f32 %v1992, %v2004
        %v2009 = vsub.f32 %v1993, %v2005
        %v2010 = vmul.f32 %v2006, 2.0
        %v2011 = vmul.f32 %v2007, 2.0
        %v2012 = vmul.f32 %v2008, 2.0
        %v2013 = vmul.f32 %v2009, 2.0
        %v2014 = vsub.f32 %v2010, 1.0
        %v2015 = vsub.f32 %v2011, 1.0
        %v2016 = vsub.f32 %v2012, 1.0
        %v2017 = vsub.f32 %v2013, 1.0
        %v2018 = vlaneseq
        %v2019 = vshrl.u32 %v2018, 7
        %v2020 = vsub.s32 3, %v2019
        %v2021 = vrot.slane %v601, %v2020
        %v2022 = vlaneseq
        %v2023 = vshrl.u32 %v2022, 7
        %v2024 = vsub.s32 3, %v2023
        %v2025 = vrot.slane %v602, %v2024
        %v2026 = vlaneseq
        %v2027 = vshrl.u32 %v2026, 7
        %v2028 = vsub.s32 3, %v2027
        %v2029 = vrot.slane %v603, %v2028
        %v2030 = vlaneseq
        %v2031 = vshrl.u32 %v2030, 7
        %v2032 = vsub.s32 3, %v2031
        %v2033 = vrot.slane %v604, %v2032
        %v2034 = vmul.f32 %v2021, %v2014
        %v2035 = vmul.f32 %v2025, %v2015
        %v2036 = vmul.f32 %v2029, %v2016
        %v2037 = vmul.f32 %v2033, %v2017
        %v2038 = vadd.f32 %v1708, %v2034
        %v2039 = vadd.f32 %v1709, %v2035
        %v2040 = vadd.f32 %v1710, %v2036
        %v2041 = vadd.f32 %v1711, %v2037
        %v2042 = vlaneseq
        %v2043 = vshrl.u32 %v2042, 7
        %v2044 = vsub.s32 4, %v2043
        %v2045 = vrot.slane %v633, %v2044
        %v2046 = vlaneseq
        %v2047 = vshrl.u32 %v2046, 7
        %v2048 = vsub.s32 4, %v2047
        %v2049 = vrot.slane %v634, %v2048
        %v2050 = vlaneseq
        %v2051 = vshrl.u32 %v2050, 7
        %v2052 = vsub.s32 4, %v2051
        %v2053 = vrot.slane %v635, %v2052
        %v2054 = vlaneseq
        %v2055 = vshrl.u32 %v2054, 7
        %v2056 = vsub.s32 4, %v2055
        %v2057 = vrot.slane %v636, %v2056
        %vm2058 = vcmp.eq.s32.totalorder %v222, %v2045
        %vm2059 = vcmp.eq.s32.totalorder %v222, %v2049
        %vm2060 = vcmp.eq.s32.totalorder %v222, %v2053
        %vm2061 = vcmp.eq.s32.totalorder %v222, %v2057
        %vm2062 = vcmp.eq.s32.totalorder %v705, %v2045
        %vm2063 = vcmp.eq.s32.totalorder %v705, %v2049
        %vm2064 = vcmp.eq.s32.totalorder %v705, %v2053
        %vm2065 = vcmp.eq.s32.totalorder %v705, %v2057
        %vm2066 = vcmp.eq.s32.totalorder %v706, %v2045
        %vm2067 = vcmp.eq.s32.totalorder %v706, %v2049
        %vm2068 = vcmp.eq.s32.totalorder %v706, %v2053
        %vm2069 = vcmp.eq.s32.totalorder %v706, %v2057
        %vm2070 = vcmp.eq.s32.totalorder %v707, %v2045
        %vm2071 = vcmp.eq.s32.totalorder %v707, %v2049
        %vm2072 = vcmp.eq.s32.totalorder %v707, %v2053
        %vm2073 = vcmp.eq.s32.totalorder %v707, %v2057
        %vm2074 = vcmp.eq.s32.totalorder %v708, %v2045
        %vm2075 = vcmp.eq.s32.totalorder %v708, %v2049
        %vm2076 = vcmp.eq.s32.totalorder %v708, %v2053
        %vm2077 = vcmp.eq.s32.totalorder %v708, %v2057
        %vm2078 = vcmp.eq.s32.totalorder %v709, %v2045
        %vm2079 = vcmp.eq.s32.totalorder %v709, %v2049
        %vm2080 = vcmp.eq.s32.totalorder %v709, %v2053
        %vm2081 = vcmp.eq.s32.totalorder %v709, %v2057
        %vm2082 = vcmp.eq.s32.totalorder %v710, %v2045
        %vm2083 = vcmp.eq.s32.totalorder %v710, %v2049
        %vm2084 = vcmp.eq.s32.totalorder %v710, %v2053
        %vm2085 = vcmp.eq.s32.totalorder %v710, %v2057
        %vm2086 = vcmp.eq.s32.totalorder %v711, %v2045
        %vm2087 = vcmp.eq.s32.totalorder %v711, %v2049
        %vm2088 = vcmp.eq.s32.totalorder %v711, %v2053
        %vm2089 = vcmp.eq.s32.totalorder %v711, %v2057
        %vm2090 = vcmp.eq.s32.totalorder %v712, %v2045
        %vm2091 = vcmp.eq.s32.totalorder %v712, %v2049
        %vm2092 = vcmp.eq.s32.totalorder %v712, %v2053
        %vm2093 = vcmp.eq.s32.totalorder %v712, %v2057
        %vm2094 = vcmp.eq.s32.totalorder %v713, %v2045
        %vm2095 = vcmp.eq.s32.totalorder %v713, %v2049
        %vm2096 = vcmp.eq.s32.totalorder %v713, %v2053
        %vm2097 = vcmp.eq.s32.totalorder %v713, %v2057
        %vm2098 = vcmp.eq.s32.totalorder %v714, %v2045
        %vm2099 = vcmp.eq.s32.totalorder %v714, %v2049
        %vm2100 = vcmp.eq.s32.totalorder %v714, %v2053
        %vm2101 = vcmp.eq.s32.totalorder %v714, %v2057
        %vm2102 = vcmp.eq.s32.totalorder %v715, %v2045
        %vm2103 = vcmp.eq.s32.totalorder %v715, %v2049
        %vm2104 = vcmp.eq.s32.totalorder %v715, %v2053
        %vm2105 = vcmp.eq.s32.totalorder %v715, %v2057
        %vm2106 = vcmp.eq.s32.totalorder %v716, %v2045
        %vm2107 = vcmp.eq.s32.totalorder %v716, %v2049
        %vm2108 = vcmp.eq.s32.totalorder %v716, %v2053
        %vm2109 = vcmp.eq.s32.totalorder %v716, %v2057
        %vm2110 = vcmp.eq.s32.totalorder %v717, %v2045
        %vm2111 = vcmp.eq.s32.totalorder %v717, %v2049
        %vm2112 = vcmp.eq.s32.totalorder %v717, %v2053
        %vm2113 = vcmp.eq.s32.totalorder %v717, %v2057
        %vm2114 = vcmp.eq.s32.totalorder %v718, %v2045
        %vm2115 = vcmp.eq.s32.totalorder %v718, %v2049
        %vm2116 = vcmp.eq.s32.totalorder %v718, %v2053
        %vm2117 = vcmp.eq.s32.totalorder %v718, %v2057
        %vm2118 = vcmp.eq.s32.totalorder %v719, %v2045
        %vm2119 = vcmp.eq.s32.totalorder %v719, %v2049
        %vm2120 = vcmp.eq.s32.totalorder %v719, %v2053
        %vm2121 = vcmp.eq.s32.totalorder %v719, %v2057
        %v2122 = vsel %vm2058, 1.0, 0.0
        %v2123 = vsel %vm2059, 1.0, 0.0
        %v2124 = vsel %vm2060, 1.0, 0.0
        %v2125 = vsel %vm2061, 1.0, 0.0
        %v2126 = vsel %vm2062, 1.0, 0.0
        %v2127 = vsel %vm2063, 1.0, 0.0
        %v2128 = vsel %vm2064, 1.0, 0.0
        %v2129 = vsel %vm2065, 1.0, 0.0
        %v2130 = vsel %vm2066, 1.0, 0.0
        %v2131 = vsel %vm2067, 1.0, 0.0
        %v2132 = vsel %vm2068, 1.0, 0.0
        %v2133 = vsel %vm2069, 1.0, 0.0
        %v2134 = vsel %vm2070, 1.0, 0.0
        %v2135 = vsel %vm2071, 1.0, 0.0
        %v2136 = vsel %vm2072, 1.0, 0.0
        %v2137 = vsel %vm2073, 1.0, 0.0
        %v2138 = vsel %vm2074, 1.0, 0.0
        %v2139 = vsel %vm2075, 1.0, 0.0
        %v2140 = vsel %vm2076, 1.0, 0.0
        %v2141 = vsel %vm2077, 1.0, 0.0
        %v2142 = vsel %vm2078, 1.0, 0.0
        %v2143 = vsel %vm2079, 1.0, 0.0
        %v2144 = vsel %vm2080, 1.0, 0.0
        %v2145 = vsel %vm2081, 1.0, 0.0
        %v2146 = vsel %vm2082, 1.0, 0.0
        %v2147 = vsel %vm2083, 1.0, 0.0
        %v2148 = vsel %vm2084, 1.0, 0.0
        %v2149 = vsel %vm2085, 1.0, 0.0
        %v2150 = vsel %vm2086, 1.0, 0.0
        %v2151 = vsel %vm2087, 1.0, 0.0
        %v2152 = vsel %vm2088, 1.0, 0.0
        %v2153 = vsel %vm2089, 1.0, 0.0
        %v2154 = vsel %vm2090, 1.0, 0.0
        %v2155 = vsel %vm2091, 1.0, 0.0
        %v2156 = vsel %vm2092, 1.0, 0.0
        %v2157 = vsel %vm2093, 1.0, 0.0
        %v2158 = vsel %vm2094, 1.0, 0.0
        %v2159 = vsel %vm2095, 1.0, 0.0
        %v2160 = vsel %vm2096, 1.0, 0.0
        %v2161 = vsel %vm2097, 1.0, 0.0
        %v2162 = vsel %vm2098, 1.0, 0.0
        %v2163 = vsel %vm2099, 1.0, 0.0
        %v2164 = vsel %vm2100, 1.0, 0.0
        %v2165 = vsel %vm2101, 1.0, 0.0
        %v2166 = vsel %vm2102, 1.0, 0.0
        %v2167 = vsel %vm2103, 1.0, 0.0
        %v2168 = vsel %vm2104, 1.0, 0.0
        %v2169 = vsel %vm2105, 1.0, 0.0
        %v2170 = vsel %vm2106, 1.0, 0.0
        %v2171 = vsel %vm2107, 1.0, 0.0
        %v2172 = vsel %vm2108, 1.0, 0.0
        %v2173 = vsel %vm2109, 1.0, 0.0
        %v2174 = vsel %vm2110, 1.0, 0.0
        %v2175 = vsel %vm2111, 1.0, 0.0
        %v2176 = vsel %vm2112, 1.0, 0.0
        %v2177 = vsel %vm2113, 1.0, 0.0
        %v2178 = vsel %vm2114, 1.0, 0.0
        %v2179 = vsel %vm2115, 1.0, 0.0
        %v2180 = vsel %vm2116, 1.0, 0.0
        %v2181 = vsel %vm2117, 1.0, 0.0
        %v2182 = vsel %vm2118, 1.0, 0.0
        %v2183 = vsel %vm2119, 1.0, 0.0
        %v2184 = vsel %vm2120, 1.0, 0.0
        %v2185 = vsel %vm2121, 1.0, 0.0
        %v2186 = vpack.c.bf16 %v2126, %v2122
        %v2187 = vpack.c.bf16 %v2127, %v2123
        %v2188 = vpack.c.bf16 %v2128, %v2124
        %v2189 = vpack.c.bf16 %v2129, %v2125
        %v2190 = vpack.c.bf16 %v2134, %v2130
        %v2191 = vpack.c.bf16 %v2135, %v2131
        %v2192 = vpack.c.bf16 %v2136, %v2132
        %v2193 = vpack.c.bf16 %v2137, %v2133
        %v2194 = vpack.c.bf16 %v2142, %v2138
        %v2195 = vpack.c.bf16 %v2143, %v2139
        %v2196 = vpack.c.bf16 %v2144, %v2140
        %v2197 = vpack.c.bf16 %v2145, %v2141
        %v2198 = vpack.c.bf16 %v2150, %v2146
        %v2199 = vpack.c.bf16 %v2151, %v2147
        %v2200 = vpack.c.bf16 %v2152, %v2148
        %v2201 = vpack.c.bf16 %v2153, %v2149
        %v2202 = vpack.c.bf16 %v2158, %v2154
        %v2203 = vpack.c.bf16 %v2159, %v2155
        %v2204 = vpack.c.bf16 %v2160, %v2156
        %v2205 = vpack.c.bf16 %v2161, %v2157
        %v2206 = vpack.c.bf16 %v2166, %v2162
        %v2207 = vpack.c.bf16 %v2167, %v2163
        %v2208 = vpack.c.bf16 %v2168, %v2164
        %v2209 = vpack.c.bf16 %v2169, %v2165
        %v2210 = vpack.c.bf16 %v2174, %v2170
        %v2211 = vpack.c.bf16 %v2175, %v2171
        %v2212 = vpack.c.bf16 %v2176, %v2172
        %v2213 = vpack.c.bf16 %v2177, %v2173
        %v2214 = vpack.c.bf16 %v2182, %v2178
        %v2215 = vpack.c.bf16 %v2183, %v2179
        %v2216 = vpack.c.bf16 %v2184, %v2180
        %v2217 = vpack.c.bf16 %v2185, %v2181
        %2218 = vmatprep.subr.bf16.mxu0 %v2187
        %2219 = vmatpush1.bf16.msra.mxu0 %v2186
        %2220 = vmatprep.subr.bf16.mxu0 %v2191
        %2221 = vmatpush1.bf16.msra.mxu0 %v2190
        %2222 = vmatprep.subr.bf16.mxu0 %v2195
        %2223 = vmatpush1.bf16.msra.mxu0 %v2194
        %2224 = vmatprep.subr.bf16.mxu0 %v2199
        %2225 = vmatpush1.bf16.msra.mxu0 %v2198
        %2226 = vmatprep.subr.bf16.mxu0 %v2203
        %2227 = vmatpush1.bf16.msra.mxu0 %v2202
        %2228 = vmatprep.subr.bf16.mxu0 %v2207
        %2229 = vmatpush1.bf16.msra.mxu0 %v2206
        %2230 = vmatprep.subr.bf16.mxu0 %v2211
        %2231 = vmatpush1.bf16.msra.mxu0 %v2210
        %2232 = vmatprep.subr.bf16.mxu0 %v2215
        %2233 = vmatpush1.bf16.msra.mxu0 %v2214
        %2234 = vmatprep.subr.bf16.mxu0 0
        %2235 = vmatpush1.bf16.msra.mxu0 0
        %2236 = vmatprep.subr.bf16.mxu0 0
        %2237 = vmatpush1.bf16.msra.mxu0 0
        %2238 = vmatprep.subr.bf16.mxu0 0
        %2239 = vmatpush1.bf16.msra.mxu0 0
        %2240 = vmatprep.subr.bf16.mxu0 0
        %2241 = vmatpush1.bf16.msra.mxu0 0
        %2242 = vmatprep.subr.bf16.mxu0 0
        %2243 = vmatpush1.bf16.msra.mxu0 0
        %2244 = vmatprep.subr.bf16.mxu0 0
        %2245 = vmatpush1.bf16.msra.mxu0 0
        %2246 = vmatprep.subr.bf16.mxu0 0
        %2247 = vmatpush1.bf16.msra.mxu0 0
        %2248 = vmatprep.subr.bf16.mxu0 0
        %2249 = vmatpush1.bf16.msra.mxu0 0
        %2250 = vmatprep.mubr.bf16.mxu0 0
        %2251 = vmatmul.mubr.bf16.gmra.mrb[0].mxu0 %v721
        %v2252 = vpop.f32.mrb[0].mxu0
        %v2253 = vadd.f32 0.0, %v2252
        %v2254 = vpop.f32.mrb[0].mxu0
        %v2255 = vadd.f32 0.0, %v2254
        %v2256 = vpop.f32.mrb[0].mxu0
        %v2257 = vpop.f32.mrb[0].mxu0
        %2258 = vdwg.mxu0
        %2259 = vmatprep.subr.bf16.mxu0 %v2189
        %2260 = vmatpush1.bf16.msra.mxu0 %v2188
        %2261 = vmatprep.subr.bf16.mxu0 %v2193
        %2262 = vmatpush1.bf16.msra.mxu0 %v2192
        %2263 = vmatprep.subr.bf16.mxu0 %v2197
        %2264 = vmatpush1.bf16.msra.mxu0 %v2196
        %2265 = vmatprep.subr.bf16.mxu0 %v2201
        %2266 = vmatpush1.bf16.msra.mxu0 %v2200
        %2267 = vmatprep.subr.bf16.mxu0 %v2205
        %2268 = vmatpush1.bf16.msra.mxu0 %v2204
        %2269 = vmatprep.subr.bf16.mxu0 %v2209
        %2270 = vmatpush1.bf16.msra.mxu0 %v2208
        %2271 = vmatprep.subr.bf16.mxu0 %v2213
        %2272 = vmatpush1.bf16.msra.mxu0 %v2212
        %2273 = vmatprep.subr.bf16.mxu0 %v2217
        %2274 = vmatpush1.bf16.msra.mxu0 %v2216
        %2275 = vmatprep.subr.bf16.mxu0 0
        %2276 = vmatpush1.bf16.msra.mxu0 0
        %2277 = vmatprep.subr.bf16.mxu0 0
        %2278 = vmatpush1.bf16.msra.mxu0 0
        %2279 = vmatprep.subr.bf16.mxu0 0
        %2280 = vmatpush1.bf16.msra.mxu0 0
        %2281 = vmatprep.subr.bf16.mxu0 0
        %2282 = vmatpush1.bf16.msra.mxu0 0
        %2283 = vmatprep.subr.bf16.mxu0 0
        %2284 = vmatpush1.bf16.msra.mxu0 0
        %2285 = vmatprep.subr.bf16.mxu0 0
        %2286 = vmatpush1.bf16.msra.mxu0 0
        %2287 = vmatprep.subr.bf16.mxu0 0
        %2288 = vmatpush1.bf16.msra.mxu0 0
        %2289 = vmatprep.subr.bf16.mxu0 0
        %2290 = vmatpush1.bf16.msra.mxu0 0
        %2291 = vmatprep.mubr.bf16.mxu0 0
        %2292 = vmatmul.mubr.bf16.gmra.mrb[0].mxu0 %v721
        %v2293 = vpop.f32.mrb[0].mxu0
        %v2294 = vadd.f32 0.0, %v2293
        %v2295 = vpop.f32.mrb[0].mxu0
        %v2296 = vadd.f32 0.0, %v2295
        %v2297 = vpop.f32.mrb[0].mxu0
        %v2298 = vpop.f32.mrb[0].mxu0
        %2299 = vdwg.mxu0
        %v2300 = vlaneseq
        %v2301 = vshrl.u32 %v2300, 7
        %v2302 = vsub.s32 4, %v2301
        %v2303 = vrot.slane %v701, %v2302
        %v2304 = vlaneseq
        %v2305 = vshrl.u32 %v2304, 7
        %v2306 = vsub.s32 4, %v2305
        %v2307 = vrot.slane %v702, %v2306
        %v2308 = vlaneseq
        %v2309 = vshrl.u32 %v2308, 7
        %v2310 = vsub.s32 4, %v2309
        %v2311 = vrot.slane %v703, %v2310
        %v2312 = vlaneseq
        %v2313 = vshrl.u32 %v2312, 7
        %v2314 = vsub.s32 4, %v2313
        %v2315 = vrot.slane %v704, %v2314
        %v2316 = vmul.f32 %v2253, %v2303
        %v2317 = vmul.f32 %v2255, %v2307
        %v2318 = vmul.f32 %v2294, %v2311
        %v2319 = vmul.f32 %v2296, %v2315
        %v2320 = vfloor.f32 %v2316
        %v2321 = vfloor.f32 %v2317
        %v2322 = vfloor.f32 %v2318
        %v2323 = vfloor.f32 %v2319
        %v2324 = vmul.f32 %v2320, 0.5
        %v2325 = vmul.f32 %v2321, 0.5
        %v2326 = vmul.f32 %v2322, 0.5
        %v2327 = vmul.f32 %v2323, 0.5
        %v2328 = vfloor.f32 %v2324
        %v2329 = vfloor.f32 %v2325
        %v2330 = vfloor.f32 %v2326
        %v2331 = vfloor.f32 %v2327
        %v2332 = vmul.f32 %v2328, 2.0
        %v2333 = vmul.f32 %v2329, 2.0
        %v2334 = vmul.f32 %v2330, 2.0
        %v2335 = vmul.f32 %v2331, 2.0
        %v2336 = vsub.f32 %v2320, %v2332
        %v2337 = vsub.f32 %v2321, %v2333
        %v2338 = vsub.f32 %v2322, %v2334
        %v2339 = vsub.f32 %v2323, %v2335
        %v2340 = vmul.f32 %v2336, 2.0
        %v2341 = vmul.f32 %v2337, 2.0
        %v2342 = vmul.f32 %v2338, 2.0
        %v2343 = vmul.f32 %v2339, 2.0
        %v2344 = vsub.f32 %v2340, 1.0
        %v2345 = vsub.f32 %v2341, 1.0
        %v2346 = vsub.f32 %v2342, 1.0
        %v2347 = vsub.f32 %v2343, 1.0
        %v2348 = vlaneseq
        %v2349 = vshrl.u32 %v2348, 7
        %v2350 = vsub.s32 4, %v2349
        %v2351 = vrot.slane %v601, %v2350
        %v2352 = vlaneseq
        %v2353 = vshrl.u32 %v2352, 7
        %v2354 = vsub.s32 4, %v2353
        %v2355 = vrot.slane %v602, %v2354
        %v2356 = vlaneseq
        %v2357 = vshrl.u32 %v2356, 7
        %v2358 = vsub.s32 4, %v2357
        %v2359 = vrot.slane %v603, %v2358
        %v2360 = vlaneseq
        %v2361 = vshrl.u32 %v2360, 7
        %v2362 = vsub.s32 4, %v2361
        %v2363 = vrot.slane %v604, %v2362
        %v2364 = vmul.f32 %v2351, %v2344
        %v2365 = vmul.f32 %v2355, %v2345
        %v2366 = vmul.f32 %v2359, %v2346
        %v2367 = vmul.f32 %v2363, %v2347
        %v2368 = vadd.f32 %v2038, %v2364
        %v2369 = vadd.f32 %v2039, %v2365
        %v2370 = vadd.f32 %v2040, %v2366
        %v2371 = vadd.f32 %v2041, %v2367
        %v2372 = vlaneseq
        %v2373 = vshrl.u32 %v2372, 7
        %v2374 = vsub.s32 5, %v2373
        %v2375 = vrot.slane %v633, %v2374
        %v2376 = vlaneseq
        %v2377 = vshrl.u32 %v2376, 7
        %v2378 = vsub.s32 5, %v2377
        %v2379 = vrot.slane %v634, %v2378
        %v2380 = vlaneseq
        %v2381 = vshrl.u32 %v2380, 7
        %v2382 = vsub.s32 5, %v2381
        %v2383 = vrot.slane %v635, %v2382
        %v2384 = vlaneseq
        %v2385 = vshrl.u32 %v2384, 7
        %v2386 = vsub.s32 5, %v2385
        %v2387 = vrot.slane %v636, %v2386
        %vm2388 = vcmp.eq.s32.totalorder %v222, %v2375
        %vm2389 = vcmp.eq.s32.totalorder %v222, %v2379
        %vm2390 = vcmp.eq.s32.totalorder %v222, %v2383
        %vm2391 = vcmp.eq.s32.totalorder %v222, %v2387
        %vm2392 = vcmp.eq.s32.totalorder %v705, %v2375
        %vm2393 = vcmp.eq.s32.totalorder %v705, %v2379
        %vm2394 = vcmp.eq.s32.totalorder %v705, %v2383
        %vm2395 = vcmp.eq.s32.totalorder %v705, %v2387
        %vm2396 = vcmp.eq.s32.totalorder %v706, %v2375
        %vm2397 = vcmp.eq.s32.totalorder %v706, %v2379
        %vm2398 = vcmp.eq.s32.totalorder %v706, %v2383
        %vm2399 = vcmp.eq.s32.totalorder %v706, %v2387
        %vm2400 = vcmp.eq.s32.totalorder %v707, %v2375
        %vm2401 = vcmp.eq.s32.totalorder %v707, %v2379
        %vm2402 = vcmp.eq.s32.totalorder %v707, %v2383
        %vm2403 = vcmp.eq.s32.totalorder %v707, %v2387
        %vm2404 = vcmp.eq.s32.totalorder %v708, %v2375
        %vm2405 = vcmp.eq.s32.totalorder %v708, %v2379
        %vm2406 = vcmp.eq.s32.totalorder %v708, %v2383
        %vm2407 = vcmp.eq.s32.totalorder %v708, %v2387
        %vm2408 = vcmp.eq.s32.totalorder %v709, %v2375
        %vm2409 = vcmp.eq.s32.totalorder %v709, %v2379
        %vm2410 = vcmp.eq.s32.totalorder %v709, %v2383
        %vm2411 = vcmp.eq.s32.totalorder %v709, %v2387
        %vm2412 = vcmp.eq.s32.totalorder %v710, %v2375
        %vm2413 = vcmp.eq.s32.totalorder %v710, %v2379
        %vm2414 = vcmp.eq.s32.totalorder %v710, %v2383
        %vm2415 = vcmp.eq.s32.totalorder %v710, %v2387
        %vm2416 = vcmp.eq.s32.totalorder %v711, %v2375
        %vm2417 = vcmp.eq.s32.totalorder %v711, %v2379
        %vm2418 = vcmp.eq.s32.totalorder %v711, %v2383
        %vm2419 = vcmp.eq.s32.totalorder %v711, %v2387
        %vm2420 = vcmp.eq.s32.totalorder %v712, %v2375
        %vm2421 = vcmp.eq.s32.totalorder %v712, %v2379
        %vm2422 = vcmp.eq.s32.totalorder %v712, %v2383
        %vm2423 = vcmp.eq.s32.totalorder %v712, %v2387
        %vm2424 = vcmp.eq.s32.totalorder %v713, %v2375
        %vm2425 = vcmp.eq.s32.totalorder %v713, %v2379
        %vm2426 = vcmp.eq.s32.totalorder %v713, %v2383
        %vm2427 = vcmp.eq.s32.totalorder %v713, %v2387
        %vm2428 = vcmp.eq.s32.totalorder %v714, %v2375
        %vm2429 = vcmp.eq.s32.totalorder %v714, %v2379
        %vm2430 = vcmp.eq.s32.totalorder %v714, %v2383
        %vm2431 = vcmp.eq.s32.totalorder %v714, %v2387
        %vm2432 = vcmp.eq.s32.totalorder %v715, %v2375
        %vm2433 = vcmp.eq.s32.totalorder %v715, %v2379
        %vm2434 = vcmp.eq.s32.totalorder %v715, %v2383
        %vm2435 = vcmp.eq.s32.totalorder %v715, %v2387
        %vm2436 = vcmp.eq.s32.totalorder %v716, %v2375
        %vm2437 = vcmp.eq.s32.totalorder %v716, %v2379
        %vm2438 = vcmp.eq.s32.totalorder %v716, %v2383
        %vm2439 = vcmp.eq.s32.totalorder %v716, %v2387
        %vm2440 = vcmp.eq.s32.totalorder %v717, %v2375
        %vm2441 = vcmp.eq.s32.totalorder %v717, %v2379
        %vm2442 = vcmp.eq.s32.totalorder %v717, %v2383
        %vm2443 = vcmp.eq.s32.totalorder %v717, %v2387
        %vm2444 = vcmp.eq.s32.totalorder %v718, %v2375
        %vm2445 = vcmp.eq.s32.totalorder %v718, %v2379
        %vm2446 = vcmp.eq.s32.totalorder %v718, %v2383
        %vm2447 = vcmp.eq.s32.totalorder %v718, %v2387
        %vm2448 = vcmp.eq.s32.totalorder %v719, %v2375
        %vm2449 = vcmp.eq.s32.totalorder %v719, %v2379
        %vm2450 = vcmp.eq.s32.totalorder %v719, %v2383
        %vm2451 = vcmp.eq.s32.totalorder %v719, %v2387
        %v2452 = vsel %vm2388, 1.0, 0.0
        %v2453 = vsel %vm2389, 1.0, 0.0
        %v2454 = vsel %vm2390, 1.0, 0.0
        %v2455 = vsel %vm2391, 1.0, 0.0
        %v2456 = vsel %vm2392, 1.0, 0.0
        %v2457 = vsel %vm2393, 1.0, 0.0
        %v2458 = vsel %vm2394, 1.0, 0.0
        %v2459 = vsel %vm2395, 1.0, 0.0
        %v2460 = vsel %vm2396, 1.0, 0.0
        %v2461 = vsel %vm2397, 1.0, 0.0
        %v2462 = vsel %vm2398, 1.0, 0.0
        %v2463 = vsel %vm2399, 1.0, 0.0
        %v2464 = vsel %vm2400, 1.0, 0.0
        %v2465 = vsel %vm2401, 1.0, 0.0
        %v2466 = vsel %vm2402, 1.0, 0.0
        %v2467 = vsel %vm2403, 1.0, 0.0
        %v2468 = vsel %vm2404, 1.0, 0.0
        %v2469 = vsel %vm2405, 1.0, 0.0
        %v2470 = vsel %vm2406, 1.0, 0.0
        %v2471 = vsel %vm2407, 1.0, 0.0
        %v2472 = vsel %vm2408, 1.0, 0.0
        %v2473 = vsel %vm2409, 1.0, 0.0
        %v2474 = vsel %vm2410, 1.0, 0.0
        %v2475 = vsel %vm2411, 1.0, 0.0
        %v2476 = vsel %vm2412, 1.0, 0.0
        %v2477 = vsel %vm2413, 1.0, 0.0
        %v2478 = vsel %vm2414, 1.0, 0.0
        %v2479 = vsel %vm2415, 1.0, 0.0
        %v2480 = vsel %vm2416, 1.0, 0.0
        %v2481 = vsel %vm2417, 1.0, 0.0
        %v2482 = vsel %vm2418, 1.0, 0.0
        %v2483 = vsel %vm2419, 1.0, 0.0
        %v2484 = vsel %vm2420, 1.0, 0.0
        %v2485 = vsel %vm2421, 1.0, 0.0
        %v2486 = vsel %vm2422, 1.0, 0.0
        %v2487 = vsel %vm2423, 1.0, 0.0
        %v2488 = vsel %vm2424, 1.0, 0.0
        %v2489 = vsel %vm2425, 1.0, 0.0
        %v2490 = vsel %vm2426, 1.0, 0.0
        %v2491 = vsel %vm2427, 1.0, 0.0
        %v2492 = vsel %vm2428, 1.0, 0.0
        %v2493 = vsel %vm2429, 1.0, 0.0
        %v2494 = vsel %vm2430, 1.0, 0.0
        %v2495 = vsel %vm2431, 1.0, 0.0
        %v2496 = vsel %vm2432, 1.0, 0.0
        %v2497 = vsel %vm2433, 1.0, 0.0
        %v2498 = vsel %vm2434, 1.0, 0.0
        %v2499 = vsel %vm2435, 1.0, 0.0
        %v2500 = vsel %vm2436, 1.0, 0.0
        %v2501 = vsel %vm2437, 1.0, 0.0
        %v2502 = vsel %vm2438, 1.0, 0.0
        %v2503 = vsel %vm2439, 1.0, 0.0
        %v2504 = vsel %vm2440, 1.0, 0.0
        %v2505 = vsel %vm2441, 1.0, 0.0
        %v2506 = vsel %vm2442, 1.0, 0.0
        %v2507 = vsel %vm2443, 1.0, 0.0
        %v2508 = vsel %vm2444, 1.0, 0.0
        %v2509 = vsel %vm2445, 1.0, 0.0
        %v2510 = vsel %vm2446, 1.0, 0.0
        %v2511 = vsel %vm2447, 1.0, 0.0
        %v2512 = vsel %vm2448, 1.0, 0.0
        %v2513 = vsel %vm2449, 1.0, 0.0
        %v2514 = vsel %vm2450, 1.0, 0.0
        %v2515 = vsel %vm2451, 1.0, 0.0
        %v2516 = vpack.c.bf16 %v2456, %v2452
        %v2517 = vpack.c.bf16 %v2457, %v2453
        %v2518 = vpack.c.bf16 %v2458, %v2454
        %v2519 = vpack.c.bf16 %v2459, %v2455
        %v2520 = vpack.c.bf16 %v2464, %v2460
        %v2521 = vpack.c.bf16 %v2465, %v2461
        %v2522 = vpack.c.bf16 %v2466, %v2462
        %v2523 = vpack.c.bf16 %v2467, %v2463
        %v2524 = vpack.c.bf16 %v2472, %v2468
        %v2525 = vpack.c.bf16 %v2473, %v2469
        %v2526 = vpack.c.bf16 %v2474, %v2470
        %v2527 = vpack.c.bf16 %v2475, %v2471
        %v2528 = vpack.c.bf16 %v2480, %v2476
        %v2529 = vpack.c.bf16 %v2481, %v2477
        %v2530 = vpack.c.bf16 %v2482, %v2478
        %v2531 = vpack.c.bf16 %v2483, %v2479
        %v2532 = vpack.c.bf16 %v2488, %v2484
        %v2533 = vpack.c.bf16 %v2489, %v2485
        %v2534 = vpack.c.bf16 %v2490, %v2486
        %v2535 = vpack.c.bf16 %v2491, %v2487
        %v2536 = vpack.c.bf16 %v2496, %v2492
        %v2537 = vpack.c.bf16 %v2497, %v2493
        %v2538 = vpack.c.bf16 %v2498, %v2494
        %v2539 = vpack.c.bf16 %v2499, %v2495
        %v2540 = vpack.c.bf16 %v2504, %v2500
        %v2541 = vpack.c.bf16 %v2505, %v2501
        %v2542 = vpack.c.bf16 %v2506, %v2502
        %v2543 = vpack.c.bf16 %v2507, %v2503
        %v2544 = vpack.c.bf16 %v2512, %v2508
        %v2545 = vpack.c.bf16 %v2513, %v2509
        %v2546 = vpack.c.bf16 %v2514, %v2510
        %v2547 = vpack.c.bf16 %v2515, %v2511
        %2548 = vmatprep.subr.bf16.mxu0 %v2517
        %2549 = vmatpush1.bf16.msra.mxu0 %v2516
        %2550 = vmatprep.subr.bf16.mxu0 %v2521
        %2551 = vmatpush1.bf16.msra.mxu0 %v2520
        %2552 = vmatprep.subr.bf16.mxu0 %v2525
        %2553 = vmatpush1.bf16.msra.mxu0 %v2524
        %2554 = vmatprep.subr.bf16.mxu0 %v2529
        %2555 = vmatpush1.bf16.msra.mxu0 %v2528
        %2556 = vmatprep.subr.bf16.mxu0 %v2533
        %2557 = vmatpush1.bf16.msra.mxu0 %v2532
        %2558 = vmatprep.subr.bf16.mxu0 %v2537
        %2559 = vmatpush1.bf16.msra.mxu0 %v2536
        %2560 = vmatprep.subr.bf16.mxu0 %v2541
        %2561 = vmatpush1.bf16.msra.mxu0 %v2540
        %2562 = vmatprep.subr.bf16.mxu0 %v2545
        %2563 = vmatpush1.bf16.msra.mxu0 %v2544
        %2564 = vmatprep.subr.bf16.mxu0 0
        %2565 = vmatpush1.bf16.msra.mxu0 0
        %2566 = vmatprep.subr.bf16.mxu0 0
        %2567 = vmatpush1.bf16.msra.mxu0 0
        %2568 = vmatprep.subr.bf16.mxu0 0
        %2569 = vmatpush1.bf16.msra.mxu0 0
        %2570 = vmatprep.subr.bf16.mxu0 0
        %2571 = vmatpush1.bf16.msra.mxu0 0
        %2572 = vmatprep.subr.bf16.mxu0 0
        %2573 = vmatpush1.bf16.msra.mxu0 0
        %2574 = vmatprep.subr.bf16.mxu0 0
        %2575 = vmatpush1.bf16.msra.mxu0 0
        %2576 = vmatprep.subr.bf16.mxu0 0
        %2577 = vmatpush1.bf16.msra.mxu0 0
        %2578 = vmatprep.subr.bf16.mxu0 0
        %2579 = vmatpush1.bf16.msra.mxu0 0
        %2580 = vmatprep.mubr.bf16.mxu0 0
        %2581 = vmatmul.mubr.bf16.gmra.mrb[0].mxu0 %v721
        %v2582 = vpop.f32.mrb[0].mxu0
        %v2583 = vadd.f32 0.0, %v2582
        %v2584 = vpop.f32.mrb[0].mxu0
        %v2585 = vadd.f32 0.0, %v2584
        %v2586 = vpop.f32.mrb[0].mxu0
        %v2587 = vpop.f32.mrb[0].mxu0
        %2588 = vdwg.mxu0
        %2589 = vmatprep.subr.bf16.mxu0 %v2519
        %2590 = vmatpush1.bf16.msra.mxu0 %v2518
        %2591 = vmatprep.subr.bf16.mxu0 %v2523
        %2592 = vmatpush1.bf16.msra.mxu0 %v2522
        %2593 = vmatprep.subr.bf16.mxu0 %v2527
        %2594 = vmatpush1.bf16.msra.mxu0 %v2526
        %2595 = vmatprep.subr.bf16.mxu0 %v2531
        %2596 = vmatpush1.bf16.msra.mxu0 %v2530
        %2597 = vmatprep.subr.bf16.mxu0 %v2535
        %2598 = vmatpush1.bf16.msra.mxu0 %v2534
        %2599 = vmatprep.subr.bf16.mxu0 %v2539
        %2600 = vmatpush1.bf16.msra.mxu0 %v2538
        %2601 = vmatprep.subr.bf16.mxu0 %v2543
        %2602 = vmatpush1.bf16.msra.mxu0 %v2542
        %2603 = vmatprep.subr.bf16.mxu0 %v2547
        %2604 = vmatpush1.bf16.msra.mxu0 %v2546
        %2605 = vmatprep.subr.bf16.mxu0 0
        %2606 = vmatpush1.bf16.msra.mxu0 0
        %2607 = vmatprep.subr.bf16.mxu0 0
        %2608 = vmatpush1.bf16.msra.mxu0 0
        %2609 = vmatprep.subr.bf16.mxu0 0
        %2610 = vmatpush1.bf16.msra.mxu0 0
        %2611 = vmatprep.subr.bf16.mxu0 0
        %2612 = vmatpush1.bf16.msra.mxu0 0
        %2613 = vmatprep.subr.bf16.mxu0 0
        %2614 = vmatpush1.bf16.msra.mxu0 0
        %2615 = vmatprep.subr.bf16.mxu0 0
        %2616 = vmatpush1.bf16.msra.mxu0 0
        %2617 = vmatprep.subr.bf16.mxu0 0
        %2618 = vmatpush1.bf16.msra.mxu0 0
        %2619 = vmatprep.subr.bf16.mxu0 0
        %2620 = vmatpush1.bf16.msra.mxu0 0
        %2621 = vmatprep.mubr.bf16.mxu0 0
        %2622 = vmatmul.mubr.bf16.gmra.mrb[0].mxu0 %v721
        %v2623 = vpop.f32.mrb[0].mxu0
        %v2624 = vadd.f32 0.0, %v2623
        %v2625 = vpop.f32.mrb[0].mxu0
        %v2626 = vadd.f32 0.0, %v2625
        %v2627 = vpop.f32.mrb[0].mxu0
        %v2628 = vpop.f32.mrb[0].mxu0
        %2629 = vdwg.mxu0
        %v2630 = vlaneseq
        %v2631 = vshrl.u32 %v2630, 7
        %v2632 = vsub.s32 5, %v2631
        %v2633 = vrot.slane %v701, %v2632
        %v2634 = vlaneseq
        %v2635 = vshrl.u32 %v2634, 7
        %v2636 = vsub.s32 5, %v2635
        %v2637 = vrot.slane %v702, %v2636
        %v2638 = vlaneseq
        %v2639 = vshrl.u32 %v2638, 7
        %v2640 = vsub.s32 5, %v2639
        %v2641 = vrot.slane %v703, %v2640
        %v2642 = vlaneseq
        %v2643 = vshrl.u32 %v2642, 7
        %v2644 = vsub.s32 5, %v2643
        %v2645 = vrot.slane %v704, %v2644
        %v2646 = vmul.f32 %v2583, %v2633
        %v2647 = vmul.f32 %v2585, %v2637
        %v2648 = vmul.f32 %v2624, %v2641
        %v2649 = vmul.f32 %v2626, %v2645
        %v2650 = vfloor.f32 %v2646
        %v2651 = vfloor.f32 %v2647
        %v2652 = vfloor.f32 %v2648
        %v2653 = vfloor.f32 %v2649
        %v2654 = vmul.f32 %v2650, 0.5
        %v2655 = vmul.f32 %v2651, 0.5
        %v2656 = vmul.f32 %v2652, 0.5
        %v2657 = vmul.f32 %v2653, 0.5
        %v2658 = vfloor.f32 %v2654
        %v2659 = vfloor.f32 %v2655
        %v2660 = vfloor.f32 %v2656
        %v2661 = vfloor.f32 %v2657
        %v2662 = vmul.f32 %v2658, 2.0
        %v2663 = vmul.f32 %v2659, 2.0
        %v2664 = vmul.f32 %v2660, 2.0
        %v2665 = vmul.f32 %v2661, 2.0
        %v2666 = vsub.f32 %v2650, %v2662
        %v2667 = vsub.f32 %v2651, %v2663
        %v2668 = vsub.f32 %v2652, %v2664
        %v2669 = vsub.f32 %v2653, %v2665
        %v2670 = vmul.f32 %v2666, 2.0
        %v2671 = vmul.f32 %v2667, 2.0
        %v2672 = vmul.f32 %v2668, 2.0
        %v2673 = vmul.f32 %v2669, 2.0
        %v2674 = vsub.f32 %v2670, 1.0
        %v2675 = vsub.f32 %v2671, 1.0
        %v2676 = vsub.f32 %v2672, 1.0
        %v2677 = vsub.f32 %v2673, 1.0
        %v2678 = vlaneseq
        %v2679 = vshrl.u32 %v2678, 7
        %v2680 = vsub.s32 5, %v2679
        %v2681 = vrot.slane %v601, %v2680
        %v2682 = vlaneseq
        %v2683 = vshrl.u32 %v2682, 7
        %v2684 = vsub.s32 5, %v2683
        %v2685 = vrot.slane %v602, %v2684
        %v2686 = vlaneseq
        %v2687 = vshrl.u32 %v2686, 7
        %v2688 = vsub.s32 5, %v2687
        %v2689 = vrot.slane %v603, %v2688
        %v2690 = vlaneseq
        %v2691 = vshrl.u32 %v2690, 7
        %v2692 = vsub.s32 5, %v2691
        %v2693 = vrot.slane %v604, %v2692
        %v2694 = vmul.f32 %v2681, %v2674
        %v2695 = vmul.f32 %v2685, %v2675
        %v2696 = vmul.f32 %v2689, %v2676
        %v2697 = vmul.f32 %v2693, %v2677
        %v2698 = vadd.f32 %v2368, %v2694
        %v2699 = vadd.f32 %v2369, %v2695
        %v2700 = vadd.f32 %v2370, %v2696
        %v2701 = vadd.f32 %v2371, %v2697
        %v2702 = vlaneseq
        %v2703 = vshrl.u32 %v2702, 7
        %v2704 = vsub.s32 6, %v2703
        %v2705 = vrot.slane %v633, %v2704
        %v2706 = vlaneseq
        %v2707 = vshrl.u32 %v2706, 7
        %v2708 = vsub.s32 6, %v2707
        %v2709 = vrot.slane %v634, %v2708
        %v2710 = vlaneseq
        %v2711 = vshrl.u32 %v2710, 7
        %v2712 = vsub.s32 6, %v2711
        %v2713 = vrot.slane %v635, %v2712
        %v2714 = vlaneseq
        %v2715 = vshrl.u32 %v2714, 7
        %v2716 = vsub.s32 6, %v2715
        %v2717 = vrot.slane %v636, %v2716
        %vm2718 = vcmp.eq.s32.totalorder %v222, %v2705
        %vm2719 = vcmp.eq.s32.totalorder %v222, %v2709
        %vm2720 = vcmp.eq.s32.totalorder %v222, %v2713
        %vm2721 = vcmp.eq.s32.totalorder %v222, %v2717
        %vm2722 = vcmp.eq.s32.totalorder %v705, %v2705
        %vm2723 = vcmp.eq.s32.totalorder %v705, %v2709
        %vm2724 = vcmp.eq.s32.totalorder %v705, %v2713
        %vm2725 = vcmp.eq.s32.totalorder %v705, %v2717
        %vm2726 = vcmp.eq.s32.totalorder %v706, %v2705
        %vm2727 = vcmp.eq.s32.totalorder %v706, %v2709
        %vm2728 = vcmp.eq.s32.totalorder %v706, %v2713
        %vm2729 = vcmp.eq.s32.totalorder %v706, %v2717
        %vm2730 = vcmp.eq.s32.totalorder %v707, %v2705
        %vm2731 = vcmp.eq.s32.totalorder %v707, %v2709
        %vm2732 = vcmp.eq.s32.totalorder %v707, %v2713
        %vm2733 = vcmp.eq.s32.totalorder %v707, %v2717
        %vm2734 = vcmp.eq.s32.totalorder %v708, %v2705
        %vm2735 = vcmp.eq.s32.totalorder %v708, %v2709
        %vm2736 = vcmp.eq.s32.totalorder %v708, %v2713
        %vm2737 = vcmp.eq.s32.totalorder %v708, %v2717
        %vm2738 = vcmp.eq.s32.totalorder %v709, %v2705
        %vm2739 = vcmp.eq.s32.totalorder %v709, %v2709
        %vm2740 = vcmp.eq.s32.totalorder %v709, %v2713
        %vm2741 = vcmp.eq.s32.totalorder %v709, %v2717
        %vm2742 = vcmp.eq.s32.totalorder %v710, %v2705
        %vm2743 = vcmp.eq.s32.totalorder %v710, %v2709
        %vm2744 = vcmp.eq.s32.totalorder %v710, %v2713
        %vm2745 = vcmp.eq.s32.totalorder %v710, %v2717
        %vm2746 = vcmp.eq.s32.totalorder %v711, %v2705
        %vm2747 = vcmp.eq.s32.totalorder %v711, %v2709
        %vm2748 = vcmp.eq.s32.totalorder %v711, %v2713
        %vm2749 = vcmp.eq.s32.totalorder %v711, %v2717
        %vm2750 = vcmp.eq.s32.totalorder %v712, %v2705
        %vm2751 = vcmp.eq.s32.totalorder %v712, %v2709
        %vm2752 = vcmp.eq.s32.totalorder %v712, %v2713
        %vm2753 = vcmp.eq.s32.totalorder %v712, %v2717
        %vm2754 = vcmp.eq.s32.totalorder %v713, %v2705
        %vm2755 = vcmp.eq.s32.totalorder %v713, %v2709
        %vm2756 = vcmp.eq.s32.totalorder %v713, %v2713
        %vm2757 = vcmp.eq.s32.totalorder %v713, %v2717
        %vm2758 = vcmp.eq.s32.totalorder %v714, %v2705
        %vm2759 = vcmp.eq.s32.totalorder %v714, %v2709
        %vm2760 = vcmp.eq.s32.totalorder %v714, %v2713
        %vm2761 = vcmp.eq.s32.totalorder %v714, %v2717
        %vm2762 = vcmp.eq.s32.totalorder %v715, %v2705
        %vm2763 = vcmp.eq.s32.totalorder %v715, %v2709
        %vm2764 = vcmp.eq.s32.totalorder %v715, %v2713
        %vm2765 = vcmp.eq.s32.totalorder %v715, %v2717
        %vm2766 = vcmp.eq.s32.totalorder %v716, %v2705
        %vm2767 = vcmp.eq.s32.totalorder %v716, %v2709
        %vm2768 = vcmp.eq.s32.totalorder %v716, %v2713
        %vm2769 = vcmp.eq.s32.totalorder %v716, %v2717
        %vm2770 = vcmp.eq.s32.totalorder %v717, %v2705
        %vm2771 = vcmp.eq.s32.totalorder %v717, %v2709
        %vm2772 = vcmp.eq.s32.totalorder %v717, %v2713
        %vm2773 = vcmp.eq.s32.totalorder %v717, %v2717
        %vm2774 = vcmp.eq.s32.totalorder %v718, %v2705
        %vm2775 = vcmp.eq.s32.totalorder %v718, %v2709
        %vm2776 = vcmp.eq.s32.totalorder %v718, %v2713
        %vm2777 = vcmp.eq.s32.totalorder %v718, %v2717
        %vm2778 = vcmp.eq.s32.totalorder %v719, %v2705
        %vm2779 = vcmp.eq.s32.totalorder %v719, %v2709
        %vm2780 = vcmp.eq.s32.totalorder %v719, %v2713
        %vm2781 = vcmp.eq.s32.totalorder %v719, %v2717
        %v2782 = vsel %vm2718, 1.0, 0.0
        %v2783 = vsel %vm2719, 1.0, 0.0
        %v2784 = vsel %vm2720, 1.0, 0.0
        %v2785 = vsel %vm2721, 1.0, 0.0
        %v2786 = vsel %vm2722, 1.0, 0.0
        %v2787 = vsel %vm2723, 1.0, 0.0
        %v2788 = vsel %vm2724, 1.0, 0.0
        %v2789 = vsel %vm2725, 1.0, 0.0
        %v2790 = vsel %vm2726, 1.0, 0.0
        %v2791 = vsel %vm2727, 1.0, 0.0
        %v2792 = vsel %vm2728, 1.0, 0.0
        %v2793 = vsel %vm2729, 1.0, 0.0
        %v2794 = vsel %vm2730, 1.0, 0.0
        %v2795 = vsel %vm2731, 1.0, 0.0
        %v2796 = vsel %vm2732, 1.0, 0.0
        %v2797 = vsel %vm2733, 1.0, 0.0
        %v2798 = vsel %vm2734, 1.0, 0.0
        %v2799 = vsel %vm2735, 1.0, 0.0
        %v2800 = vsel %vm2736, 1.0, 0.0
        %v2801 = vsel %vm2737, 1.0, 0.0
        %v2802 = vsel %vm2738, 1.0, 0.0
        %v2803 = vsel %vm2739, 1.0, 0.0
        %v2804 = vsel %vm2740, 1.0, 0.0
        %v2805 = vsel %vm2741, 1.0, 0.0
        %v2806 = vsel %vm2742, 1.0, 0.0
        %v2807 = vsel %vm2743, 1.0, 0.0
        %v2808 = vsel %vm2744, 1.0, 0.0
        %v2809 = vsel %vm2745, 1.0, 0.0
        %v2810 = vsel %vm2746, 1.0, 0.0
        %v2811 = vsel %vm2747, 1.0, 0.0
        %v2812 = vsel %vm2748, 1.0, 0.0
        %v2813 = vsel %vm2749, 1.0, 0.0
        %v2814 = vsel %vm2750, 1.0, 0.0
        %v2815 = vsel %vm2751, 1.0, 0.0
        %v2816 = vsel %vm2752, 1.0, 0.0
        %v2817 = vsel %vm2753, 1.0, 0.0
        %v2818 = vsel %vm2754, 1.0, 0.0
        %v2819 = vsel %vm2755, 1.0, 0.0
        %v2820 = vsel %vm2756, 1.0, 0.0
        %v2821 = vsel %vm2757, 1.0, 0.0
        %v2822 = vsel %vm2758, 1.0, 0.0
        %v2823 = vsel %vm2759, 1.0, 0.0
        %v2824 = vsel %vm2760, 1.0, 0.0
        %v2825 = vsel %vm2761, 1.0, 0.0
        %v2826 = vsel %vm2762, 1.0, 0.0
        %v2827 = vsel %vm2763, 1.0, 0.0
        %v2828 = vsel %vm2764, 1.0, 0.0
        %v2829 = vsel %vm2765, 1.0, 0.0
        %v2830 = vsel %vm2766, 1.0, 0.0
        %v2831 = vsel %vm2767, 1.0, 0.0
        %v2832 = vsel %vm2768, 1.0, 0.0
        %v2833 = vsel %vm2769, 1.0, 0.0
        %v2834 = vsel %vm2770, 1.0, 0.0
        %v2835 = vsel %vm2771, 1.0, 0.0
        %v2836 = vsel %vm2772, 1.0, 0.0
        %v2837 = vsel %vm2773, 1.0, 0.0
        %v2838 = vsel %vm2774, 1.0, 0.0
        %v2839 = vsel %vm2775, 1.0, 0.0
        %v2840 = vsel %vm2776, 1.0, 0.0
        %v2841 = vsel %vm2777, 1.0, 0.0
        %v2842 = vsel %vm2778, 1.0, 0.0
        %v2843 = vsel %vm2779, 1.0, 0.0
        %v2844 = vsel %vm2780, 1.0, 0.0
        %v2845 = vsel %vm2781, 1.0, 0.0
        %v2846 = vpack.c.bf16 %v2786, %v2782
        %v2847 = vpack.c.bf16 %v2787, %v2783
        %v2848 = vpack.c.bf16 %v2788, %v2784
        %v2849 = vpack.c.bf16 %v2789, %v2785
        %v2850 = vpack.c.bf16 %v2794, %v2790
        %v2851 = vpack.c.bf16 %v2795, %v2791
        %v2852 = vpack.c.bf16 %v2796, %v2792
        %v2853 = vpack.c.bf16 %v2797, %v2793
        %v2854 = vpack.c.bf16 %v2802, %v2798
        %v2855 = vpack.c.bf16 %v2803, %v2799
        %v2856 = vpack.c.bf16 %v2804, %v2800
        %v2857 = vpack.c.bf16 %v2805, %v2801
        %v2858 = vpack.c.bf16 %v2810, %v2806
        %v2859 = vpack.c.bf16 %v2811, %v2807
        %v2860 = vpack.c.bf16 %v2812, %v2808
        %v2861 = vpack.c.bf16 %v2813, %v2809
        %v2862 = vpack.c.bf16 %v2818, %v2814
        %v2863 = vpack.c.bf16 %v2819, %v2815
        %v2864 = vpack.c.bf16 %v2820, %v2816
        %v2865 = vpack.c.bf16 %v2821, %v2817
        %v2866 = vpack.c.bf16 %v2826, %v2822
        %v2867 = vpack.c.bf16 %v2827, %v2823
        %v2868 = vpack.c.bf16 %v2828, %v2824
        %v2869 = vpack.c.bf16 %v2829, %v2825
        %v2870 = vpack.c.bf16 %v2834, %v2830
        %v2871 = vpack.c.bf16 %v2835, %v2831
        %v2872 = vpack.c.bf16 %v2836, %v2832
        %v2873 = vpack.c.bf16 %v2837, %v2833
        %v2874 = vpack.c.bf16 %v2842, %v2838
        %v2875 = vpack.c.bf16 %v2843, %v2839
        %v2876 = vpack.c.bf16 %v2844, %v2840
        %v2877 = vpack.c.bf16 %v2845, %v2841
        %2878 = vmatprep.subr.bf16.mxu0 %v2847
        %2879 = vmatpush1.bf16.msra.mxu0 %v2846
        %2880 = vmatprep.subr.bf16.mxu0 %v2851
        %2881 = vmatpush1.bf16.msra.mxu0 %v2850
        %2882 = vmatprep.subr.bf16.mxu0 %v2855
        %2883 = vmatpush1.bf16.msra.mxu0 %v2854
        %2884 = vmatprep.subr.bf16.mxu0 %v2859
        %2885 = vmatpush1.bf16.msra.mxu0 %v2858
        %2886 = vmatprep.subr.bf16.mxu0 %v2863
        %2887 = vmatpush1.bf16.msra.mxu0 %v2862
        %2888 = vmatprep.subr.bf16.mxu0 %v2867
        %2889 = vmatpush1.bf16.msra.mxu0 %v2866
        %2890 = vmatprep.subr.bf16.mxu0 %v2871
        %2891 = vmatpush1.bf16.msra.mxu0 %v2870
        %2892 = vmatprep.subr.bf16.mxu0 %v2875
        %2893 = vmatpush1.bf16.msra.mxu0 %v2874
        %2894 = vmatprep.subr.bf16.mxu0 0
        %2895 = vmatpush1.bf16.msra.mxu0 0
        %2896 = vmatprep.subr.bf16.mxu0 0
        %2897 = vmatpush1.bf16.msra.mxu0 0
        %2898 = vmatprep.subr.bf16.mxu0 0
        %2899 = vmatpush1.bf16.msra.mxu0 0
        %2900 = vmatprep.subr.bf16.mxu0 0
        %2901 = vmatpush1.bf16.msra.mxu0 0
        %2902 = vmatprep.subr.bf16.mxu0 0
        %2903 = vmatpush1.bf16.msra.mxu0 0
        %2904 = vmatprep.subr.bf16.mxu0 0
        %2905 = vmatpush1.bf16.msra.mxu0 0
        %2906 = vmatprep.subr.bf16.mxu0 0
        %2907 = vmatpush1.bf16.msra.mxu0 0
        %2908 = vmatprep.subr.bf16.mxu0 0
        %2909 = vmatpush1.bf16.msra.mxu0 0
        %2910 = vmatprep.mubr.bf16.mxu0 0
        %2911 = vmatmul.mubr.bf16.gmra.mrb[0].mxu0 %v721
        %v2912 = vpop.f32.mrb[0].mxu0
        %v2913 = vadd.f32 0.0, %v2912
        %v2914 = vpop.f32.mrb[0].mxu0
        %v2915 = vadd.f32 0.0, %v2914
        %v2916 = vpop.f32.mrb[0].mxu0
        %v2917 = vpop.f32.mrb[0].mxu0
        %2918 = vdwg.mxu0
        %2919 = vmatprep.subr.bf16.mxu0 %v2849
        %2920 = vmatpush1.bf16.msra.mxu0 %v2848
        %2921 = vmatprep.subr.bf16.mxu0 %v2853
        %2922 = vmatpush1.bf16.msra.mxu0 %v2852
        %2923 = vmatprep.subr.bf16.mxu0 %v2857
        %2924 = vmatpush1.bf16.msra.mxu0 %v2856
        %2925 = vmatprep.subr.bf16.mxu0 %v2861
        %2926 = vmatpush1.bf16.msra.mxu0 %v2860
        %2927 = vmatprep.subr.bf16.mxu0 %v2865
        %2928 = vmatpush1.bf16.msra.mxu0 %v2864
        %2929 = vmatprep.subr.bf16.mxu0 %v2869
        %2930 = vmatpush1.bf16.msra.mxu0 %v2868
        %2931 = vmatprep.subr.bf16.mxu0 %v2873
        %2932 = vmatpush1.bf16.msra.mxu0 %v2872
        %2933 = vmatprep.subr.bf16.mxu0 %v2877
        %2934 = vmatpush1.bf16.msra.mxu0 %v2876
        %2935 = vmatprep.subr.bf16.mxu0 0
        %2936 = vmatpush1.bf16.msra.mxu0 0
        %2937 = vmatprep.subr.bf16.mxu0 0
        %2938 = vmatpush1.bf16.msra.mxu0 0
        %2939 = vmatprep.subr.bf16.mxu0 0
        %2940 = vmatpush1.bf16.msra.mxu0 0
        %2941 = vmatprep.subr.bf16.mxu0 0
        %2942 = vmatpush1.bf16.msra.mxu0 0
        %2943 = vmatprep.subr.bf16.mxu0 0
        %2944 = vmatpush1.bf16.msra.mxu0 0
        %2945 = vmatprep.subr.bf16.mxu0 0
        %2946 = vmatpush1.bf16.msra.mxu0 0
        %2947 = vmatprep.subr.bf16.mxu0 0
        %2948 = vmatpush1.bf16.msra.mxu0 0
        %2949 = vmatprep.subr.bf16.mxu0 0
        %2950 = vmatpush1.bf16.msra.mxu0 0
        %2951 = vmatprep.mubr.bf16.mxu0 0
        %2952 = vmatmul.mubr.bf16.gmra.mrb[0].mxu0 %v721
        %v2953 = vpop.f32.mrb[0].mxu0
        %v2954 = vadd.f32 0.0, %v2953
        %v2955 = vpop.f32.mrb[0].mxu0
        %v2956 = vadd.f32 0.0, %v2955
        %v2957 = vpop.f32.mrb[0].mxu0
        %v2958 = vpop.f32.mrb[0].mxu0
        %2959 = vdwg.mxu0
        %v2960 = vlaneseq
        %v2961 = vshrl.u32 %v2960, 7
        %v2962 = vsub.s32 6, %v2961
        %v2963 = vrot.slane %v701, %v2962
        %v2964 = vlaneseq
        %v2965 = vshrl.u32 %v2964, 7
        %v2966 = vsub.s32 6, %v2965
        %v2967 = vrot.slane %v702, %v2966
        %v2968 = vlaneseq
        %v2969 = vshrl.u32 %v2968, 7
        %v2970 = vsub.s32 6, %v2969
        %v2971 = vrot.slane %v703, %v2970
        %v2972 = vlaneseq
        %v2973 = vshrl.u32 %v2972, 7
        %v2974 = vsub.s32 6, %v2973
        %v2975 = vrot.slane %v704, %v2974
        %v2976 = vmul.f32 %v2913, %v2963
        %v2977 = vmul.f32 %v2915, %v2967
        %v2978 = vmul.f32 %v2954, %v2971
        %v2979 = vmul.f32 %v2956, %v2975
        %v2980 = vfloor.f32 %v2976
        %v2981 = vfloor.f32 %v2977
        %v2982 = vfloor.f32 %v2978
        %v2983 = vfloor.f32 %v2979
        %v2984 = vmul.f32 %v2980, 0.5
        %v2985 = vmul.f32 %v2981, 0.5
        %v2986 = vmul.f32 %v2982, 0.5
        %v2987 = vmul.f32 %v2983, 0.5
        %v2988 = vfloor.f32 %v2984
        %v2989 = vfloor.f32 %v2985
        %v2990 = vfloor.f32 %v2986
        %v2991 = vfloor.f32 %v2987
        %v2992 = vmul.f32 %v2988, 2.0
        %v2993 = vmul.f32 %v2989, 2.0
        %v2994 = vmul.f32 %v2990, 2.0
        %v2995 = vmul.f32 %v2991, 2.0
        %v2996 = vsub.f32 %v2980, %v2992
        %v2997 = vsub.f32 %v2981, %v2993
        %v2998 = vsub.f32 %v2982, %v2994
        %v2999 = vsub.f32 %v2983, %v2995
        %v3000 = vmul.f32 %v2996, 2.0
        %v3001 = vmul.f32 %v2997, 2.0
        %v3002 = vmul.f32 %v2998, 2.0
        %v3003 = vmul.f32 %v2999, 2.0
        %v3004 = vsub.f32 %v3000, 1.0
        %v3005 = vsub.f32 %v3001, 1.0
        %v3006 = vsub.f32 %v3002, 1.0
        %v3007 = vsub.f32 %v3003, 1.0
        %v3008 = vlaneseq
        %v3009 = vshrl.u32 %v3008, 7
        %v3010 = vsub.s32 6, %v3009
        %v3011 = vrot.slane %v601, %v3010
        %v3012 = vlaneseq
        %v3013 = vshrl.u32 %v3012, 7
        %v3014 = vsub.s32 6, %v3013
        %v3015 = vrot.slane %v602, %v3014
        %v3016 = vlaneseq
        %v3017 = vshrl.u32 %v3016, 7
        %v3018 = vsub.s32 6, %v3017
        %v3019 = vrot.slane %v603, %v3018
        %v3020 = vlaneseq
        %v3021 = vshrl.u32 %v3020, 7
        %v3022 = vsub.s32 6, %v3021
        %v3023 = vrot.slane %v604, %v3022
        %v3024 = vmul.f32 %v3011, %v3004
        %v3025 = vmul.f32 %v3015, %v3005
        %v3026 = vmul.f32 %v3019, %v3006
        %v3027 = vmul.f32 %v3023, %v3007
        %v3028 = vadd.f32 %v2698, %v3024
        %v3029 = vadd.f32 %v2699, %v3025
        %v3030 = vadd.f32 %v2700, %v3026
        %v3031 = vadd.f32 %v2701, %v3027
        %v3032 = vlaneseq
        %v3033 = vshrl.u32 %v3032, 7
        %v3034 = vsub.s32 7, %v3033
        %v3035 = vrot.slane %v633, %v3034
        %v3036 = vlaneseq
        %v3037 = vshrl.u32 %v3036, 7
        %v3038 = vsub.s32 7, %v3037
        %v3039 = vrot.slane %v634, %v3038
        %v3040 = vlaneseq
        %v3041 = vshrl.u32 %v3040, 7
        %v3042 = vsub.s32 7, %v3041
        %v3043 = vrot.slane %v635, %v3042
        %v3044 = vlaneseq
        %v3045 = vshrl.u32 %v3044, 7
        %v3046 = vsub.s32 7, %v3045
        %v3047 = vrot.slane %v636, %v3046
        %vm3048 = vcmp.eq.s32.totalorder %v222, %v3035
        %vm3049 = vcmp.eq.s32.totalorder %v222, %v3039
        %vm3050 = vcmp.eq.s32.totalorder %v222, %v3043
        %vm3051 = vcmp.eq.s32.totalorder %v222, %v3047
        %vm3052 = vcmp.eq.s32.totalorder %v705, %v3035
        %vm3053 = vcmp.eq.s32.totalorder %v705, %v3039
        %vm3054 = vcmp.eq.s32.totalorder %v705, %v3043
        %vm3055 = vcmp.eq.s32.totalorder %v705, %v3047
        %vm3056 = vcmp.eq.s32.totalorder %v706, %v3035
        %vm3057 = vcmp.eq.s32.totalorder %v706, %v3039
        %vm3058 = vcmp.eq.s32.totalorder %v706, %v3043
        %vm3059 = vcmp.eq.s32.totalorder %v706, %v3047
        %vm3060 = vcmp.eq.s32.totalorder %v707, %v3035
        %vm3061 = vcmp.eq.s32.totalorder %v707, %v3039
        %vm3062 = vcmp.eq.s32.totalorder %v707, %v3043
        %vm3063 = vcmp.eq.s32.totalorder %v707, %v3047
        %vm3064 = vcmp.eq.s32.totalorder %v708, %v3035
        %vm3065 = vcmp.eq.s32.totalorder %v708, %v3039
        %vm3066 = vcmp.eq.s32.totalorder %v708, %v3043
        %vm3067 = vcmp.eq.s32.totalorder %v708, %v3047
        %vm3068 = vcmp.eq.s32.totalorder %v709, %v3035
        %vm3069 = vcmp.eq.s32.totalorder %v709, %v3039
        %vm3070 = vcmp.eq.s32.totalorder %v709, %v3043
        %vm3071 = vcmp.eq.s32.totalorder %v709, %v3047
        %vm3072 = vcmp.eq.s32.totalorder %v710, %v3035
        %vm3073 = vcmp.eq.s32.totalorder %v710, %v3039
        %vm3074 = vcmp.eq.s32.totalorder %v710, %v3043
        %vm3075 = vcmp.eq.s32.totalorder %v710, %v3047
        %vm3076 = vcmp.eq.s32.totalorder %v711, %v3035
        %vm3077 = vcmp.eq.s32.totalorder %v711, %v3039
        %vm3078 = vcmp.eq.s32.totalorder %v711, %v3043
        %vm3079 = vcmp.eq.s32.totalorder %v711, %v3047
        %vm3080 = vcmp.eq.s32.totalorder %v712, %v3035
        %vm3081 = vcmp.eq.s32.totalorder %v712, %v3039
        %vm3082 = vcmp.eq.s32.totalorder %v712, %v3043
        %vm3083 = vcmp.eq.s32.totalorder %v712, %v3047
        %vm3084 = vcmp.eq.s32.totalorder %v713, %v3035
        %vm3085 = vcmp.eq.s32.totalorder %v713, %v3039
        %vm3086 = vcmp.eq.s32.totalorder %v713, %v3043
        %vm3087 = vcmp.eq.s32.totalorder %v713, %v3047
        %vm3088 = vcmp.eq.s32.totalorder %v714, %v3035
        %vm3089 = vcmp.eq.s32.totalorder %v714, %v3039
        %vm3090 = vcmp.eq.s32.totalorder %v714, %v3043
        %vm3091 = vcmp.eq.s32.totalorder %v714, %v3047
        %vm3092 = vcmp.eq.s32.totalorder %v715, %v3035
        %vm3093 = vcmp.eq.s32.totalorder %v715, %v3039
        %vm3094 = vcmp.eq.s32.totalorder %v715, %v3043
        %vm3095 = vcmp.eq.s32.totalorder %v715, %v3047
        %vm3096 = vcmp.eq.s32.totalorder %v716, %v3035
        %vm3097 = vcmp.eq.s32.totalorder %v716, %v3039
        %vm3098 = vcmp.eq.s32.totalorder %v716, %v3043
        %vm3099 = vcmp.eq.s32.totalorder %v716, %v3047
        %vm3100 = vcmp.eq.s32.totalorder %v717, %v3035
        %vm3101 = vcmp.eq.s32.totalorder %v717, %v3039
        %vm3102 = vcmp.eq.s32.totalorder %v717, %v3043
        %vm3103 = vcmp.eq.s32.totalorder %v717, %v3047
        %vm3104 = vcmp.eq.s32.totalorder %v718, %v3035
        %vm3105 = vcmp.eq.s32.totalorder %v718, %v3039
        %vm3106 = vcmp.eq.s32.totalorder %v718, %v3043
        %vm3107 = vcmp.eq.s32.totalorder %v718, %v3047
        %vm3108 = vcmp.eq.s32.totalorder %v719, %v3035
        %vm3109 = vcmp.eq.s32.totalorder %v719, %v3039
        %vm3110 = vcmp.eq.s32.totalorder %v719, %v3043
        %vm3111 = vcmp.eq.s32.totalorder %v719, %v3047
        %v3112 = vsel %vm3048, 1.0, 0.0
        %v3113 = vsel %vm3049, 1.0, 0.0
        %v3114 = vsel %vm3050, 1.0, 0.0
        %v3115 = vsel %vm3051, 1.0, 0.0
        %v3116 = vsel %vm3052, 1.0, 0.0
        %v3117 = vsel %vm3053, 1.0, 0.0
        %v3118 = vsel %vm3054, 1.0, 0.0
        %v3119 = vsel %vm3055, 1.0, 0.0
        %v3120 = vsel %vm3056, 1.0, 0.0
        %v3121 = vsel %vm3057, 1.0, 0.0
        %v3122 = vsel %vm3058, 1.0, 0.0
        %v3123 = vsel %vm3059, 1.0, 0.0
        %v3124 = vsel %vm3060, 1.0, 0.0
        %v3125 = vsel %vm3061, 1.0, 0.0
        %v3126 = vsel %vm3062, 1.0, 0.0
        %v3127 = vsel %vm3063, 1.0, 0.0
        %v3128 = vsel %vm3064, 1.0, 0.0
        %v3129 = vsel %vm3065, 1.0, 0.0
        %v3130 = vsel %vm3066, 1.0, 0.0
        %v3131 = vsel %vm3067, 1.0, 0.0
        %v3132 = vsel %vm3068, 1.0, 0.0
        %v3133 = vsel %vm3069, 1.0, 0.0
        %v3134 = vsel %vm3070, 1.0, 0.0
        %v3135 = vsel %vm3071, 1.0, 0.0
        %v3136 = vsel %vm3072, 1.0, 0.0
        %v3137 = vsel %vm3073, 1.0, 0.0
        %v3138 = vsel %vm3074, 1.0, 0.0
        %v3139 = vsel %vm3075, 1.0, 0.0
        %v3140 = vsel %vm3076, 1.0, 0.0
        %v3141 = vsel %vm3077, 1.0, 0.0
        %v3142 = vsel %vm3078, 1.0, 0.0
        %v3143 = vsel %vm3079, 1.0, 0.0
        %v3144 = vsel %vm3080, 1.0, 0.0
        %v3145 = vsel %vm3081, 1.0, 0.0
        %v3146 = vsel %vm3082, 1.0, 0.0
        %v3147 = vsel %vm3083, 1.0, 0.0
        %v3148 = vsel %vm3084, 1.0, 0.0
        %v3149 = vsel %vm3085, 1.0, 0.0
        %v3150 = vsel %vm3086, 1.0, 0.0
        %v3151 = vsel %vm3087, 1.0, 0.0
        %v3152 = vsel %vm3088, 1.0, 0.0
        %v3153 = vsel %vm3089, 1.0, 0.0
        %v3154 = vsel %vm3090, 1.0, 0.0
        %v3155 = vsel %vm3091, 1.0, 0.0
        %v3156 = vsel %vm3092, 1.0, 0.0
        %v3157 = vsel %vm3093, 1.0, 0.0
        %v3158 = vsel %vm3094, 1.0, 0.0
        %v3159 = vsel %vm3095, 1.0, 0.0
        %v3160 = vsel %vm3096, 1.0, 0.0
        %v3161 = vsel %vm3097, 1.0, 0.0
        %v3162 = vsel %vm3098, 1.0, 0.0
        %v3163 = vsel %vm3099, 1.0, 0.0
        %v3164 = vsel %vm3100, 1.0, 0.0
        %v3165 = vsel %vm3101, 1.0, 0.0
        %v3166 = vsel %vm3102, 1.0, 0.0
        %v3167 = vsel %vm3103, 1.0, 0.0
        %v3168 = vsel %vm3104, 1.0, 0.0
        %v3169 = vsel %vm3105, 1.0, 0.0
        %v3170 = vsel %vm3106, 1.0, 0.0
        %v3171 = vsel %vm3107, 1.0, 0.0
        %v3172 = vsel %vm3108, 1.0, 0.0
        %v3173 = vsel %vm3109, 1.0, 0.0
        %v3174 = vsel %vm3110, 1.0, 0.0
        %v3175 = vsel %vm3111, 1.0, 0.0
        %v3176 = vpack.c.bf16 %v3116, %v3112
        %v3177 = vpack.c.bf16 %v3117, %v3113
        %v3178 = vpack.c.bf16 %v3118, %v3114
        %v3179 = vpack.c.bf16 %v3119, %v3115
        %v3180 = vpack.c.bf16 %v3124, %v3120
        %v3181 = vpack.c.bf16 %v3125, %v3121
        %v3182 = vpack.c.bf16 %v3126, %v3122
        %v3183 = vpack.c.bf16 %v3127, %v3123
        %v3184 = vpack.c.bf16 %v3132, %v3128
        %v3185 = vpack.c.bf16 %v3133, %v3129
        %v3186 = vpack.c.bf16 %v3134, %v3130
        %v3187 = vpack.c.bf16 %v3135, %v3131
        %v3188 = vpack.c.bf16 %v3140, %v3136
        %v3189 = vpack.c.bf16 %v3141, %v3137
        %v3190 = vpack.c.bf16 %v3142, %v3138
        %v3191 = vpack.c.bf16 %v3143, %v3139
        %v3192 = vpack.c.bf16 %v3148, %v3144
        %v3193 = vpack.c.bf16 %v3149, %v3145
        %v3194 = vpack.c.bf16 %v3150, %v3146
        %v3195 = vpack.c.bf16 %v3151, %v3147
        %v3196 = vpack.c.bf16 %v3156, %v3152
        %v3197 = vpack.c.bf16 %v3157, %v3153
        %v3198 = vpack.c.bf16 %v3158, %v3154
        %v3199 = vpack.c.bf16 %v3159, %v3155
        %v3200 = vpack.c.bf16 %v3164, %v3160
        %v3201 = vpack.c.bf16 %v3165, %v3161
        %v3202 = vpack.c.bf16 %v3166, %v3162
        %v3203 = vpack.c.bf16 %v3167, %v3163
        %v3204 = vpack.c.bf16 %v3172, %v3168
        %v3205 = vpack.c.bf16 %v3173, %v3169
        %v3206 = vpack.c.bf16 %v3174, %v3170
        %v3207 = vpack.c.bf16 %v3175, %v3171
        %3208 = vmatprep.subr.bf16.mxu0 %v3177
        %3209 = vmatpush1.bf16.msra.mxu0 %v3176
        %3210 = vmatprep.subr.bf16.mxu0 %v3181
        %3211 = vmatpush1.bf16.msra.mxu0 %v3180
        %3212 = vmatprep.subr.bf16.mxu0 %v3185
        %3213 = vmatpush1.bf16.msra.mxu0 %v3184
        %3214 = vmatprep.subr.bf16.mxu0 %v3189
        %3215 = vmatpush1.bf16.msra.mxu0 %v3188
        %3216 = vmatprep.subr.bf16.mxu0 %v3193
        %3217 = vmatpush1.bf16.msra.mxu0 %v3192
        %3218 = vmatprep.subr.bf16.mxu0 %v3197
        %3219 = vmatpush1.bf16.msra.mxu0 %v3196
        %3220 = vmatprep.subr.bf16.mxu0 %v3201
        %3221 = vmatpush1.bf16.msra.mxu0 %v3200
        %3222 = vmatprep.subr.bf16.mxu0 %v3205
        %3223 = vmatpush1.bf16.msra.mxu0 %v3204
        %3224 = vmatprep.subr.bf16.mxu0 0
        %3225 = vmatpush1.bf16.msra.mxu0 0
        %3226 = vmatprep.subr.bf16.mxu0 0
        %3227 = vmatpush1.bf16.msra.mxu0 0
        %3228 = vmatprep.subr.bf16.mxu0 0
        %3229 = vmatpush1.bf16.msra.mxu0 0
        %3230 = vmatprep.subr.bf16.mxu0 0
        %3231 = vmatpush1.bf16.msra.mxu0 0
        %3232 = vmatprep.subr.bf16.mxu0 0
        %3233 = vmatpush1.bf16.msra.mxu0 0
        %3234 = vmatprep.subr.bf16.mxu0 0
        %3235 = vmatpush1.bf16.msra.mxu0 0
        %3236 = vmatprep.subr.bf16.mxu0 0
        %3237 = vmatpush1.bf16.msra.mxu0 0
        %3238 = vmatprep.subr.bf16.mxu0 0
        %3239 = vmatpush1.bf16.msra.mxu0 0
        %3240 = vmatprep.mubr.bf16.mxu0 0
        %3241 = vmatmul.mubr.bf16.gmra.mrb[0].mxu0 %v721
        %v3242 = vpop.f32.mrb[0].mxu0
        %v3243 = vadd.f32 0.0, %v3242
        %v3244 = vpop.f32.mrb[0].mxu0
        %v3245 = vadd.f32 0.0, %v3244
        %v3246 = vpop.f32.mrb[0].mxu0
        %v3247 = vpop.f32.mrb[0].mxu0
        %3248 = vdwg.mxu0
        %3249 = vmatprep.subr.bf16.mxu0 %v3179
        %3250 = vmatpush1.bf16.msra.mxu0 %v3178
        %3251 = vmatprep.subr.bf16.mxu0 %v3183
        %3252 = vmatpush1.bf16.msra.mxu0 %v3182
        %3253 = vmatprep.subr.bf16.mxu0 %v3187
        %3254 = vmatpush1.bf16.msra.mxu0 %v3186
        %3255 = vmatprep.subr.bf16.mxu0 %v3191
        %3256 = vmatpush1.bf16.msra.mxu0 %v3190
        %3257 = vmatprep.subr.bf16.mxu0 %v3195
        %3258 = vmatpush1.bf16.msra.mxu0 %v3194
        %3259 = vmatprep.subr.bf16.mxu0 %v3199
        %3260 = vmatpush1.bf16.msra.mxu0 %v3198
        %3261 = vmatprep.subr.bf16.mxu0 %v3203
        %3262 = vmatpush1.bf16.msra.mxu0 %v3202
        %3263 = vmatprep.subr.bf16.mxu0 %v3207
        %3264 = vmatpush1.bf16.msra.mxu0 %v3206
        %3265 = vmatprep.subr.bf16.mxu0 0
        %3266 = vmatpush1.bf16.msra.mxu0 0
        %3267 = vmatprep.subr.bf16.mxu0 0
        %3268 = vmatpush1.bf16.msra.mxu0 0
        %3269 = vmatprep.subr.bf16.mxu0 0
        %3270 = vmatpush1.bf16.msra.mxu0 0
        %3271 = vmatprep.subr.bf16.mxu0 0
        %3272 = vmatpush1.bf16.msra.mxu0 0
        %3273 = vmatprep.subr.bf16.mxu0 0
        %3274 = vmatpush1.bf16.msra.mxu0 0
        %3275 = vmatprep.subr.bf16.mxu0 0
        %3276 = vmatpush1.bf16.msra.mxu0 0
        %3277 = vmatprep.subr.bf16.mxu0 0
        %3278 = vmatpush1.bf16.msra.mxu0 0
        %3279 = vmatprep.subr.bf16.mxu0 0
        %3280 = vmatpush1.bf16.msra.mxu0 0
        %3281 = vmatprep.mubr.bf16.mxu0 0
        %3282 = vmatmul.mubr.bf16.gmra.mrb[0].mxu0 %v721
        %v3283 = vpop.f32.mrb[0].mxu0
        %v3284 = vadd.f32 0.0, %v3283
        %v3285 = vpop.f32.mrb[0].mxu0
        %v3286 = vadd.f32 0.0, %v3285
        %v3287 = vpop.f32.mrb[0].mxu0
        %v3288 = vpop.f32.mrb[0].mxu0
        %3289 = vdwg.mxu0
        %v3290 = vlaneseq
        %v3291 = vshrl.u32 %v3290, 7
        %v3292 = vsub.s32 7, %v3291
        %v3293 = vrot.slane %v701, %v3292
        %v3294 = vlaneseq
        %v3295 = vshrl.u32 %v3294, 7
        %v3296 = vsub.s32 7, %v3295
        %v3297 = vrot.slane %v702, %v3296
        %v3298 = vlaneseq
        %v3299 = vshrl.u32 %v3298, 7
        %v3300 = vsub.s32 7, %v3299
        %v3301 = vrot.slane %v703, %v3300
        %v3302 = vlaneseq
        %v3303 = vshrl.u32 %v3302, 7
        %v3304 = vsub.s32 7, %v3303
        %v3305 = vrot.slane %v704, %v3304
        %v3306 = vmul.f32 %v3243, %v3293
        %v3307 = vmul.f32 %v3245, %v3297
        %v3308 = vmul.f32 %v3284, %v3301
        %v3309 = vmul.f32 %v3286, %v3305
        %v3310 = vfloor.f32 %v3306
        %v3311 = vfloor.f32 %v3307
        %v3312 = vfloor.f32 %v3308
        %v3313 = vfloor.f32 %v3309
        %v3314 = vmul.f32 %v3310, 0.5
        %v3315 = vmul.f32 %v3311, 0.5
        %v3316 = vmul.f32 %v3312, 0.5
        %v3317 = vmul.f32 %v3313, 0.5
        %v3318 = vfloor.f32 %v3314
        %v3319 = vfloor.f32 %v3315
        %v3320 = vfloor.f32 %v3316
        %v3321 = vfloor.f32 %v3317
        %v3322 = vmul.f32 %v3318, 2.0
        %v3323 = vmul.f32 %v3319, 2.0
        %v3324 = vmul.f32 %v3320, 2.0
        %v3325 = vmul.f32 %v3321, 2.0
        %v3326 = vsub.f32 %v3310, %v3322
        %v3327 = vsub.f32 %v3311, %v3323
        %v3328 = vsub.f32 %v3312, %v3324
        %v3329 = vsub.f32 %v3313, %v3325
        %v3330 = vmul.f32 %v3326, 2.0
        %v3331 = vmul.f32 %v3327, 2.0
        %v3332 = vmul.f32 %v3328, 2.0
        %v3333 = vmul.f32 %v3329, 2.0
        %v3334 = vsub.f32 %v3330, 1.0
        %v3335 = vsub.f32 %v3331, 1.0
        %v3336 = vsub.f32 %v3332, 1.0
        %v3337 = vsub.f32 %v3333, 1.0
        %v3338 = vlaneseq
        %v3339 = vshrl.u32 %v3338, 7
        %v3340 = vsub.s32 7, %v3339
        %v3341 = vrot.slane %v601, %v3340
        %v3342 = vlaneseq
        %v3343 = vshrl.u32 %v3342, 7
        %v3344 = vsub.s32 7, %v3343
        %v3345 = vrot.slane %v602, %v3344
        %v3346 = vlaneseq
        %v3347 = vshrl.u32 %v3346, 7
        %v3348 = vsub.s32 7, %v3347
        %v3349 = vrot.slane %v603, %v3348
        %v3350 = vlaneseq
        %v3351 = vshrl.u32 %v3350, 7
        %v3352 = vsub.s32 7, %v3351
        %v3353 = vrot.slane %v604, %v3352
        %v3354 = vmul.f32 %v3341, %v3334
        %v3355 = vmul.f32 %v3345, %v3335
        %v3356 = vmul.f32 %v3349, %v3336
        %v3357 = vmul.f32 %v3353, %v3337
        %v3358 = vadd.f32 %v3028, %v3354
        %v3359 = vadd.f32 %v3029, %v3355
        %v3360 = vadd.f32 %v3030, %v3356
        %v3361 = vadd.f32 %v3031, %v3357
        %v3366 = vcombine.low %v3358, %v3359
        %v3367 = vcombine.low %v3360, %v3361
        %v3369 = vunpack.c.l.s4 1983009808
        %v3370 = vunpack.c.0.s8 %v3369
        %v3371 = vlaneseq
        %v3372 = vshrl.u32 %v3371, 7
        %v3373 = vsub.s32 %v3370, %v3372
        %v3374 = vrot.slane %v3366, %v3373
        %v3376 = vunpack.c.l.s4 1983009808
        %v3377 = vunpack.c.0.s8 %v3376
        %v3378 = vlaneseq
        %v3379 = vshrl.u32 %v3378, 7
        %v3380 = vsub.s32 %v3377, %v3379
        %v3381 = vrot.slane %v3367, %v3380
        %v3382 = vcombine.low %v3374, %v3381
        %3384 = vst [vmem:[%s183] sm:$0xff] %v3382
        %s3385 = sand.u32 %s106, 1
        %s3386 = scalar_lea.sflag [#allocation7], %s3385
        %s3387 = sand.u32 %s106, 1
        %s3388 = smul.addr %s3387, 8
        %s3389 = scalar_lea.vmem [#allocation6], %s3388
        // Predicated region
        $region29: #{tpu_custom_call.1} parent=27 // pred_check
          %p3390 = pneg %p116
        $region30: #{tpu_custom_call.1} parent=27 // pred_check_branch
          %3392 = sbr.rel (%p3390) target = $region32
        $region31: #{tpu_custom_call.1} parent=27 // pred_region
          %s3393 = smul.u32 4, %s37
          %s3395 = ssub.s32 128, 128
          %3396 = vsyncadd %s3386, %s3395
          %s3397 = smul.addr %s38, 4
          %s3398 = sadd.s32 %s3393, %s3397
          %s3399 = smul.addr %s3398, 32
          %s3400 = scalar_lea.hbm %s5, %s3399
          %s3402 = sshll.u32 %s3389, 4
          %s3403 = int_to_ptr.vmem [resolvable:$true] %s3402
          %3405 = dma.vmem_to_hbm [thread:$0]  %s3403, 128, %s3400, %s3386
        $region32: #{tpu_custom_call.1} parent=27 // pred_fallthru
          _
      $region28: #{tpu_custom_call.1} parent=5 // pred_fallthru
        _
      %p3406 = scmp.le.s32.totalorder 2, %s28
      // Predicated region
      $region33: #{tpu_custom_call.1} parent=5 // pred_check
        %p3407 = pneg %p3406
      $region34: #{tpu_custom_call.1} parent=5 // pred_check_branch
        %3409 = sbr.rel (%p3407) target = $region36
      $region35: #{tpu_custom_call.1} parent=5 // pred_region
        %s3410 = ssub.s32 %s28, 2
        // Predicated region
        $region37: #{tpu_custom_call.1} parent=35 // pred_check
          %p3411 = pneg %p122
        $region38: #{tpu_custom_call.1} parent=35 // pred_check_branch
          %3413 = sbr.rel (%p3411) target = $region40
        $region39: #{tpu_custom_call.1} parent=35 // pred_region
          %s3414 = sand.u32 %s107, 1
          %s3415 = scalar_lea.sflag [#allocation7], %s3414
          %s3416 = sand.u32 %s107, 1
          %s3417 = smul.addr %s3416, 8
          %s3418 = scalar_lea.vmem [#allocation6], %s3417
          %3419 = dma.done %s3415, 128
        $region40: #{tpu_custom_call.1} parent=35 // pred_fallthru
          _
      $region36: #{tpu_custom_call.1} parent=5 // pred_fallthru
        _
    $region6: #{tpu_custom_call.1} parent=1 // loop_footer
      %s32 = sadd.s32 1, %s28
    $region7: #{tpu_custom_call.1} parent=1 // loop_footer_branch
      %27 = sbr.rel target = $region3
    $region8: #{tpu_custom_call.1} parent=1 // loop_exit
      _
    %3420 = vsyncpa [#allocation7], 1
    %s3421 = scalar_lea.sflag [#allocation7], 1
    %3422 = vsyncpa %s3421, 1

</llo_original>
